<compile_context>
chip_gen: v7x
topology: tpu7x:2x2x1
jax: 0.10.0
libtpu: 0.0.40
codegen_flags: <defaults>
</compile_context>

<pallas_src>
import functools
import math

import jax
import jax.numpy as jnp
from jax import lax
from jax.experimental import pallas as pl
from jax.experimental.pallas import tpu as pltpu


# -----------------------------------------------------------------------------
# Fused VarianceAdaptor kernel (one grid step == one batch element)
# -----------------------------------------------------------------------------
def variance_adaptor_kernel(x_ref, idx_ref,
                            w1_ref, b1_ref, g1_ref, be1_ref,
                            w2_ref, b2_ref, g2_ref, be2_ref,
                            wl_ref, bl_ref, emb_ref,
                            out_ref, dur_ref, pitch_ref, energy_ref,
                            *, K, Vp, Ve, beta, gamma, max_pitch_log, eps=1e-5):
    x = x_ref[0]                       # (T_in, D) f32
    idx = idx_ref[0]                   # (M, 1) int32 gather indices (T_in == pad sentinel)
    T_in = x.shape[0]
    M = idx.shape[0]
    pad = (K - 1) // 2

    def conv_relu_ln(h_f32, p, w_ref, b_ref, g_ref, be_ref):
        """Conv1d('same', bias) -> ReLU -> LayerNorm, for predictor index p."""
        T = h_f32.shape[0]
        H = w_ref.shape[-1]
        h = h_f32.astype(jnp.bfloat16)                       # bf16 MXU operands
        acc = jnp.zeros((T, H), jnp.float32)
        for k in range(K):                                   # static unroll over taps
            y = jnp.dot(h, w_ref[p, k], preferred_element_type=jnp.float32)
            s = pad - k
            if s != 0:
                # shift via XLU roll + zero the wrapped edge rows (== zero padding)
                y = pltpu.roll(y, shift=s % T, axis=0)
                ti = lax.broadcasted_iota(jnp.int32, (T, 1), 0)
                m = (ti >= s) if s > 0 else (ti < T + s)
                y = jnp.where(m, y, 0.0)
            acc = acc + y
        acc = jnp.maximum(acc + b_ref[p], 0.0)               # bias + ReLU (f32)
        mu = jnp.mean(acc, axis=-1, keepdims=True)           # LayerNorm over H (f32)
        var = jnp.mean(jnp.square(acc - mu), axis=-1, keepdims=True)
        acc = (acc - mu) * lax.rsqrt(var + eps)
        return acc * g_ref[p] + be_ref[p]

    def predictor(h_f32, p):
        h1 = conv_relu_ln(h_f32, p, w1_ref, b1_ref, g1_ref, be1_ref)
        # TODO(synk): dropout is stochastic; treated as identity (deterministic forward).
        h2 = conv_relu_ln(h1, p, w2_ref, b2_ref, g2_ref, be2_ref)
        # Linear(H -> 1) as a lane reduction (VPU/XLU) instead of an N=1 MXU matmul.
        return jnp.sum(h2 * wl_ref[p], axis=-1, keepdims=True) + bl_ref[p]   # (T, 1)

    # 1) duration predictor on the un-regulated input
    dur = predictor(x, 0)                                    # (T_in, 1)
    dur_ref[0] = dur.T                                       # lane-dense (1, T_in)

    # 2) length regulation: one-hot gather matmul (exact in f32).
    #    Padded positions carry the sentinel index T_in -> all-zero one-hot row.
    t_iota = lax.broadcasted_iota(jnp.int32, (M, T_in), 1)
    gather = (t_iota == idx).astype(jnp.float32)             # (M, T_in)
    reg = jnp.dot(gather, x, preferred_element_type=jnp.float32)     # (M, D)

    # 3) pitch / energy predictors on the regulated sequence
    pp = predictor(reg, 1)                                   # (M, 1)
    pe = predictor(reg, 2)                                   # (M, 1)
    pitch_ref[0] = pp.T                                      # lane-dense (1, M)
    energy_ref[0] = pe.T

    # 4) transforms + bucketize (target-free training branch)
    log_pitch = jnp.log1p((jnp.exp(pp * max_pitch_log) - 1.0) * beta) / max_pitch_log
    log_pitch = jnp.clip(log_pitch, 0.0, 1.0)
    idx_p = jnp.ceil(log_pitch * (Vp - 1)).astype(jnp.int32)          # [0, Vp)
    energy = jnp.clip(pe * gamma, 0.0, 1.0)
    idx_e = jnp.ceil(energy * (Ve - 1)).astype(jnp.int32) + Vp        # [Vp, Vp+Ve)

    # 5) both embedding lookups fused into ONE one-hot matmul on the stacked table
    v_iota = lax.broadcasted_iota(jnp.int32, (M, Vp + Ve), 1)
    oh = ((v_iota == idx_p) | (v_iota == idx_e)).astype(jnp.float32)  # (M, Vp+Ve)
    embs = jnp.dot(oh, emb_ref[...], preferred_element_type=jnp.float32)   # pitch+energy embeds

    # out = regulated + (regulated + pitch_embeds) + energy_embeds
    out_ref[0] = 2.0 * reg + embs


# -----------------------------------------------------------------------------
# Wrapper: parameter packing, gather-index computation, single pallas_call
# -----------------------------------------------------------------------------
def variance_adaptor_forward(x, duration_target, params, *,
                             mel_max_len, beta, gamma, max_pitch):
    B, T_in, D = x.shape
    dur_p, pit_p, ene_p = params["duration"], params["pitch"], params["energy"]
    K, _, H = dur_p[0].shape
    Vp = params["pitch_emb"].shape[0]
    Ve = params["energy_emb"].shape[0]
    M = mel_max_len

    # --- stack predictor params (order: duration=0, pitch=1, energy=2) ---
    def stack(i):
        return jnp.stack([dur_p[i], pit_p[i], ene_p[i]], axis=0)

    W1 = stack(0).astype(jnp.bfloat16)                       # (3, K, D, H) bf16
    B1, G1, BE1 = stack(1), stack(2), stack(3)               # (3, 1, H) f32
    W2 = stack(4).astype(jnp.bfloat16)                       # (3, K, H, H) bf16
    B2, G2, BE2 = stack(5), stack(6), stack(7)
    WL = jnp.stack([p[8].reshape(1, H) for p in (dur_p, pit_p, ene_p)], axis=0)  # (3,1,H)
    BL = stack(9).reshape(3, 1, 1)                           # (3, 1, 1)
    EMB = jnp.concatenate([params["pitch_emb"], params["energy_emb"]], axis=0)   # (Vp+Ve, D)

    # --- length-regulator source indices (searchsorted; sentinel T_in == padding) ---
    csum = jnp.cumsum(duration_target.astype(jnp.int32), axis=1)      # (B, T_in)
    pos = jnp.arange(M, dtype=jnp.int32)
    idx = jax.vmap(lambda c: jnp.searchsorted(c, pos, side="right"))(csum)
    idx = idx.astype(jnp.int32).reshape(B, M, 1)

    kernel = functools.partial(
        variance_adaptor_kernel, K=K, Vp=Vp, Ve=Ve,
        beta=float(beta), gamma=float(gamma),
        max_pitch_log=float(math.log1p(max_pitch)))

    def rep(a):  # whole-array block, replicated across the batch grid
        nd = a.ndim
        return pl.BlockSpec(a.shape, lambda b, _n=nd: (0,) * _n)

    out, dur, pit, ene = pl.pallas_call(
        kernel,
        grid=(B,),
        out_shape=(
            jax.ShapeDtypeStruct((B, M, D), jnp.float32),
            jax.ShapeDtypeStruct((B, 1, T_in), jnp.float32),
            jax.ShapeDtypeStruct((B, 1, M), jnp.float32),
            jax.ShapeDtypeStruct((B, 1, M), jnp.float32),
        ),
        in_specs=[
            pl.BlockSpec((1, T_in, D), lambda b: (b, 0, 0)),
            pl.BlockSpec((1, M, 1), lambda b: (b, 0, 0)),
            rep(W1), rep(B1), rep(G1), rep(BE1),
            rep(W2), rep(B2), rep(G2), rep(BE2),
            rep(WL), rep(BL), rep(EMB),
        ],
        out_specs=(
            pl.BlockSpec((1, M, D), lambda b: (b, 0, 0)),
            pl.BlockSpec((1, 1, T_in), lambda b: (b, 0, 0)),
            pl.BlockSpec((1, 1, M), lambda b: (b, 0, 0)),
            pl.BlockSpec((1, 1, M), lambda b: (b, 0, 0)),
        ),
        compiler_params=pltpu.CompilerParams(
            dimension_semantics=("parallel",)),
    )(x, idx, W1, B1, G1, BE1, W2, B2, G2, BE2, WL, BL, EMB)

    return out, dur[:, 0, :], pit[:, 0, :], ene[:, 0, :]


# -----------------------------------------------------------------------------
# Parameter init (one BasePredictor's worth of weights)
# -----------------------------------------------------------------------------
def init_base_params(key, D, H, K):
    ks = jax.random.split(key, 3)
    w1 = 0.1 * jax.random.normal(ks[0], (K, D, H), jnp.float32)
    b1 = jnp.zeros((1, H), jnp.float32)
    g1 = jnp.ones((1, H), jnp.float32)
    be1 = jnp.zeros((1, H), jnp.float32)
    w2 = 0.1 * jax.random.normal(ks[1], (K, H, H), jnp.float32)
    b2 = jnp.zeros((1, H), jnp.float32)
    g2 = jnp.ones((1, H), jnp.float32)
    be2 = jnp.zeros((1, H), jnp.float32)
    wl = 0.1 * jax.random.normal(ks[2], (H, 1), jnp.float32)
    bl = jnp.zeros((1, 1), jnp.float32)
    return (w1, b1, g1, be1, w2, b2, g2, be2, wl, bl)


if __name__ == "__main__":
    key = jax.random.PRNGKey(0)
    B, T_in, D, H, K = 2, 8, 32, 32, 3
    pitch_vocab_size = 32
    energy_vocab_size = 32
    mel_max_len = 16
    max_pitch = 500.0
    beta = gamma = 1.0

    ks = jax.random.split(key, 8)
    x = jax.random.normal(ks[0], (B, T_in, D), jnp.float32)
    duration_target = jnp.array([[2, 1, 3, 2, 1, 2, 2, 1],
                                 [1, 2, 2, 1, 3, 2, 1, 2]], jnp.int32)

    params = {
        "duration": init_base_params(ks[1], D, H, K),
        "pitch": init_base_params(ks[2], D, H, K),
        "energy": init_base_params(ks[3], D, H, K),
        "pitch_emb": 0.1 * jax.random.normal(ks[4], (pitch_vocab_size, D), jnp.float32),
        "energy_emb": 0.1 * jax.random.normal(ks[5], (energy_vocab_size, D), jnp.float32),
    }

    out, dur_p, pitch_p, energy_p = variance_adaptor_forward(
        x, duration_target, params,
        mel_max_len=mel_max_len, beta=beta, gamma=gamma, max_pitch=max_pitch)

    jax.block_until_ready((out, dur_p, pitch_p, energy_p))
    assert out.shape == (B, mel_max_len, D)
    assert dur_p.shape == (B, T_in)
    assert pitch_p.shape == (B, mel_max_len)
    assert energy_p.shape == (B, mel_max_len)
    assert bool(jnp.all(jnp.isfinite(out)))
    print("KERNEL_OK")
</pallas_src>

<mosaic_0001>
module attributes {stable_mosaic.version = 11 : i64} {
  func.func @variance_adaptor_kernel(%arg0: i32, %arg1: memref<1x8x32xf32, #tpu.memory_space<vmem>>, %arg2: memref<1x16x1xi32, #tpu.memory_space<vmem>>, %arg3: memref<3x3x32x32xbf16, #tpu.memory_space<vmem>>, %arg4: memref<3x1x32xf32, #tpu.memory_space<vmem>>, %arg5: memref<3x1x32xf32, #tpu.memory_space<vmem>>, %arg6: memref<3x1x32xf32, #tpu.memory_space<vmem>>, %arg7: memref<3x3x32x32xbf16, #tpu.memory_space<vmem>>, %arg8: memref<3x1x32xf32, #tpu.memory_space<vmem>>, %arg9: memref<3x1x32xf32, #tpu.memory_space<vmem>>, %arg10: memref<3x1x32xf32, #tpu.memory_space<vmem>>, %arg11: memref<3x1x32xf32, #tpu.memory_space<vmem>>, %arg12: memref<3x1x1xf32, #tpu.memory_space<vmem>>, %arg13: memref<64x32xf32, #tpu.memory_space<vmem>>, %arg14: memref<1x16x32xf32, #tpu.memory_space<vmem>>, %arg15: memref<1x1x8xf32, #tpu.memory_space<vmem>>, %arg16: memref<1x1x16xf32, #tpu.memory_space<vmem>>, %arg17: memref<1x1x16xf32, #tpu.memory_space<vmem>>) attributes {dimension_semantics = [#tpu.dimension_semantics<parallel>], iteration_bounds = array<i64: 2>, scalar_prefetch = 0 : i64, scratch_operands = 0 : i64, tpu.core_type = #tpu.core_type<tc>, window_params = [{transform_indices = @transform_0, window_bounds = array<i64: 1, 8, 32>}, {transform_indices = @transform_1, window_bounds = array<i64: 1, 16, 1>}, {pipeline_mode = #tpu.pipeline_mode<synchronous>, transform_indices = @transform_2, window_bounds = array<i64: 3, 3, 32, 32>}, {pipeline_mode = #tpu.pipeline_mode<synchronous>, transform_indices = @transform_3, window_bounds = array<i64: 3, 1, 32>}, {pipeline_mode = #tpu.pipeline_mode<synchronous>, transform_indices = @transform_4, window_bounds = array<i64: 3, 1, 32>}, {pipeline_mode = #tpu.pipeline_mode<synchronous>, transform_indices = @transform_5, window_bounds = array<i64: 3, 1, 32>}, {pipeline_mode = #tpu.pipeline_mode<synchronous>, transform_indices = @transform_6, window_bounds = array<i64: 3, 3, 32, 32>}, {pipeline_mode = #tpu.pipeline_mode<synchronous>, transform_indices = @transform_7, window_bounds = array<i64: 3, 1, 32>}, {pipeline_mode = #tpu.pipeline_mode<synchronous>, transform_indices = @transform_8, window_bounds = array<i64: 3, 1, 32>}, {pipeline_mode = #tpu.pipeline_mode<synchronous>, transform_indices = @transform_9, window_bounds = array<i64: 3, 1, 32>}, {pipeline_mode = #tpu.pipeline_mode<synchronous>, transform_indices = @transform_10, window_bounds = array<i64: 3, 1, 32>}, {pipeline_mode = #tpu.pipeline_mode<synchronous>, transform_indices = @transform_11, window_bounds = array<i64: 3, 1, 1>}, {pipeline_mode = #tpu.pipeline_mode<synchronous>, transform_indices = @transform_12, window_bounds = array<i64: 64, 32>}, {transform_indices = @transform_13, window_bounds = array<i64: 1, 16, 32>}, {transform_indices = @transform_14, window_bounds = array<i64: 1, 1, 8>}, {transform_indices = @transform_15, window_bounds = array<i64: 1, 1, 16>}, {transform_indices = @transform_16, window_bounds = array<i64: 1, 1, 16>}]} {
    %c0 = arith.constant 0 : index
    %c0_0 = arith.constant 0 : index
    %c0_1 = arith.constant 0 : index
    %0 = vector.load %arg1[%c0, %c0_0, %c0_1] : memref<1x8x32xf32, #tpu.memory_space<vmem>>, vector<1x8x32xf32>
    %1 = vector.shape_cast %0 : vector<1x8x32xf32> to vector<8x32xf32>
    %c0_2 = arith.constant 0 : index
    %c0_3 = arith.constant 0 : index
    %c0_4 = arith.constant 0 : index
    %2 = vector.load %arg2[%c0_2, %c0_3, %c0_4] : memref<1x16x1xi32, #tpu.memory_space<vmem>>, vector<1x16x1xi32>
    %3 = vector.shape_cast %2 : vector<1x16x1xi32> to vector<16x1xi32>
    %4 = arith.truncf %1 : vector<8x32xf32> to vector<8x32xbf16>
    %cst = arith.constant 0.000000e+00 : f32
    %5 = vector.broadcast %cst : f32 to vector<8x32xf32>
    %c0_5 = arith.constant 0 : index
    %c0_6 = arith.constant 0 : index
    %c0_7 = arith.constant 0 : index
    %c0_8 = arith.constant 0 : index
    %6 = vector.load %arg3[%c0_5, %c0_6, %c0_7, %c0_8] : memref<3x3x32x32xbf16, #tpu.memory_space<vmem>>, vector<1x1x32x32xbf16>
    %7 = vector.shape_cast %6 : vector<1x1x32x32xbf16> to vector<32x32xbf16>
    %cst_9 = arith.constant dense<0.000000e+00> : vector<8x32xf32>
    %8 = tpu.matmul %4, %7, %cst_9 {dimension_numbers = #tpu.dot_dimension_numbers<[1], [0], [0], [1], [0, 0, 1, 1], [], []>} : vector<8x32xbf16>, vector<32x32xbf16>, vector<8x32xf32> -> vector<8x32xf32>
    %c1_i32 = arith.constant 1 : i32
    %9 = tpu.dynamic_rotate %8 by %c1_i32 dim 0 : vector<8x32xf32>, i32 -> vector<8x32xf32>
    %10 = tpu.iota {dimensions = array<i32: 0>} : vector<8x1xi32>
    %c1_i32_10 = arith.constant 1 : i32
    %11 = vector.broadcast %c1_i32_10 : i32 to vector<8x1xi32>
    %12 = arith.cmpi sge, %10, %11 : vector<8x1xi32>
    %cst_11 = arith.constant 0.000000e+00 : f32
    %13 = vector.shape_cast %12 : vector<8x1xi1> to vector<8x1xi1>
    %14 = vector.broadcast %13 : vector<8x1xi1> to vector<8x32xi1>
    %15 = vector.broadcast %cst_11 : f32 to vector<8x32xf32>
    %16 = arith.select %14, %9, %15 : vector<8x32xi1>, vector<8x32xf32>
    %17 = arith.addf %5, %16 : vector<8x32xf32>
    %c0_12 = arith.constant 0 : index
    %c1 = arith.constant 1 : index
    %c0_13 = arith.constant 0 : index
    %c0_14 = arith.constant 0 : index
    %18 = vector.load %arg3[%c0_12, %c1, %c0_13, %c0_14] : memref<3x3x32x32xbf16, #tpu.memory_space<vmem>>, vector<1x1x32x32xbf16>
    %19 = vector.shape_cast %18 : vector<1x1x32x32xbf16> to vector<32x32xbf16>
    %cst_15 = arith.constant dense<0.000000e+00> : vector<8x32xf32>
    %20 = tpu.matmul %4, %19, %cst_15 {dimension_numbers = #tpu.dot_dimension_numbers<[1], [0], [0], [1], [0, 0, 1, 1], [], []>} : vector<8x32xbf16>, vector<32x32xbf16>, vector<8x32xf32> -> vector<8x32xf32>
    %21 = arith.addf %17, %20 : vector<8x32xf32>
    %c0_16 = arith.constant 0 : index
    %c2 = arith.constant 2 : index
    %c0_17 = arith.constant 0 : index
    %c0_18 = arith.constant 0 : index
    %22 = vector.load %arg3[%c0_16, %c2, %c0_17, %c0_18] : memref<3x3x32x32xbf16, #tpu.memory_space<vmem>>, vector<1x1x32x32xbf16>
    %23 = vector.shape_cast %22 : vector<1x1x32x32xbf16> to vector<32x32xbf16>
    %cst_19 = arith.constant dense<0.000000e+00> : vector<8x32xf32>
    %24 = tpu.matmul %4, %23, %cst_19 {dimension_numbers = #tpu.dot_dimension_numbers<[1], [0], [0], [1], [0, 0, 1, 1], [], []>} : vector<8x32xbf16>, vector<32x32xbf16>, vector<8x32xf32> -> vector<8x32xf32>
    %c7_i32 = arith.constant 7 : i32
    %25 = tpu.dynamic_rotate %24 by %c7_i32 dim 0 : vector<8x32xf32>, i32 -> vector<8x32xf32>
    %26 = tpu.iota {dimensions = array<i32: 0>} : vector<8x1xi32>
    %c7_i32_20 = arith.constant 7 : i32
    %27 = vector.broadcast %c7_i32_20 : i32 to vector<8x1xi32>
    %28 = arith.cmpi slt, %26, %27 : vector<8x1xi32>
    %cst_21 = arith.constant 0.000000e+00 : f32
    %29 = vector.shape_cast %28 : vector<8x1xi1> to vector<8x1xi1>
    %30 = vector.broadcast %29 : vector<8x1xi1> to vector<8x32xi1>
    %31 = vector.broadcast %cst_21 : f32 to vector<8x32xf32>
    %32 = arith.select %30, %25, %31 : vector<8x32xi1>, vector<8x32xf32>
    %33 = arith.addf %21, %32 : vector<8x32xf32>
    %c0_22 = arith.constant 0 : index
    %c0_23 = arith.constant 0 : index
    %c0_24 = arith.constant 0 : index
    %34 = vector.load %arg4[%c0_22, %c0_23, %c0_24] : memref<3x1x32xf32, #tpu.memory_space<vmem>>, vector<1x1x32xf32>
    %35 = vector.shape_cast %34 : vector<1x1x32xf32> to vector<1x32xf32>
    %36 = vector.broadcast %35 : vector<1x32xf32> to vector<8x32xf32>
    %37 = arith.addf %33, %36 : vector<8x32xf32>
    %cst_25 = arith.constant 0.000000e+00 : f32
    %38 = vector.broadcast %cst_25 : f32 to vector<8x32xf32>
    %39 = arith.maximumf %37, %38 : vector<8x32xf32>
    %cst_26 = arith.constant dense<0.000000e+00> : vector<8xf32>
    %40 = vector.multi_reduction <add>, %39, %cst_26 [1] : vector<8x32xf32> to vector<8xf32>
    %41 = vector.shape_cast %40 : vector<8xf32> to vector<8x1xf32>
    %cst_27 = arith.constant 3.200000e+01 : f32
    %42 = vector.broadcast %cst_27 : f32 to vector<8x1xf32>
    %43 = arith.divf %41, %42 : vector<8x1xf32>
    %44 = vector.broadcast %43 : vector<8x1xf32> to vector<8x32xf32>
    %45 = arith.subf %39, %44 : vector<8x32xf32>
    %46 = arith.mulf %45, %45 : vector<8x32xf32>
    %cst_28 = arith.constant dense<0.000000e+00> : vector<8xf32>
    %47 = vector.multi_reduction <add>, %46, %cst_28 [1] : vector<8x32xf32> to vector<8xf32>
    %48 = vector.shape_cast %47 : vector<8xf32> to vector<8x1xf32>
    %cst_29 = arith.constant 3.200000e+01 : f32
    %49 = vector.broadcast %cst_29 : f32 to vector<8x1xf32>
    %50 = arith.divf %48, %49 : vector<8x1xf32>
    %51 = vector.broadcast %43 : vector<8x1xf32> to vector<8x32xf32>
    %52 = arith.subf %39, %51 : vector<8x32xf32>
    %cst_30 = arith.constant 9.99999974E-6 : f32
    %53 = vector.broadcast %cst_30 : f32 to vector<8x1xf32>
    %54 = arith.addf %50, %53 : vector<8x1xf32>
    %55 = math.rsqrt %54 : vector<8x1xf32>
    %56 = vector.broadcast %55 : vector<8x1xf32> to vector<8x32xf32>
    %57 = arith.mulf %52, %56 : vector<8x32xf32>
    %c0_31 = arith.constant 0 : index
    %c0_32 = arith.constant 0 : index
    %c0_33 = arith.constant 0 : index
    %58 = vector.load %arg5[%c0_31, %c0_32, %c0_33] : memref<3x1x32xf32, #tpu.memory_space<vmem>>, vector<1x1x32xf32>
    %59 = vector.shape_cast %58 : vector<1x1x32xf32> to vector<1x32xf32>
    %60 = vector.broadcast %59 : vector<1x32xf32> to vector<8x32xf32>
    %61 = arith.mulf %57, %60 : vector<8x32xf32>
    %c0_34 = arith.constant 0 : index
    %c0_35 = arith.constant 0 : index
    %c0_36 = arith.constant 0 : index
    %62 = vector.load %arg6[%c0_34, %c0_35, %c0_36] : memref<3x1x32xf32, #tpu.memory_space<vmem>>, vector<1x1x32xf32>
    %63 = vector.shape_cast %62 : vector<1x1x32xf32> to vector<1x32xf32>
    %64 = vector.broadcast %63 : vector<1x32xf32> to vector<8x32xf32>
    %65 = arith.addf %61, %64 : vector<8x32xf32>
    %66 = arith.truncf %65 : vector<8x32xf32> to vector<8x32xbf16>
    %cst_37 = arith.constant 0.000000e+00 : f32
    %67 = vector.broadcast %cst_37 : f32 to vector<8x32xf32>
    %c0_38 = arith.constant 0 : index
    %c0_39 = arith.constant 0 : index
    %c0_40 = arith.constant 0 : index
    %c0_41 = arith.constant 0 : index
    %68 = vector.load %arg7[%c0_38, %c0_39, %c0_40, %c0_41] : memref<3x3x32x32xbf16, #tpu.memory_space<vmem>>, vector<1x1x32x32xbf16>
    %69 = vector.shape_cast %68 : vector<1x1x32x32xbf16> to vector<32x32xbf16>
    %cst_42 = arith.constant dense<0.000000e+00> : vector<8x32xf32>
    %70 = tpu.matmul %66, %69, %cst_42 {dimension_numbers = #tpu.dot_dimension_numbers<[1], [0], [0], [1], [0, 0, 1, 1], [], []>} : vector<8x32xbf16>, vector<32x32xbf16>, vector<8x32xf32> -> vector<8x32xf32>
    %c1_i32_43 = arith.constant 1 : i32
    %71 = tpu.dynamic_rotate %70 by %c1_i32_43 dim 0 : vector<8x32xf32>, i32 -> vector<8x32xf32>
    %72 = tpu.iota {dimensions = array<i32: 0>} : vector<8x1xi32>
    %c1_i32_44 = arith.constant 1 : i32
    %73 = vector.broadcast %c1_i32_44 : i32 to vector<8x1xi32>
    %74 = arith.cmpi sge, %72, %73 : vector<8x1xi32>
    %cst_45 = arith.constant 0.000000e+00 : f32
    %75 = vector.shape_cast %74 : vector<8x1xi1> to vector<8x1xi1>
    %76 = vector.broadcast %75 : vector<8x1xi1> to vector<8x32xi1>
    %77 = vector.broadcast %cst_45 : f32 to vector<8x32xf32>
    %78 = arith.select %76, %71, %77 : vector<8x32xi1>, vector<8x32xf32>
    %79 = arith.addf %67, %78 : vector<8x32xf32>
    %c0_46 = arith.constant 0 : index
    %c1_47 = arith.constant 1 : index
    %c0_48 = arith.constant 0 : index
    %c0_49 = arith.constant 0 : index
    %80 = vector.load %arg7[%c0_46, %c1_47, %c0_48, %c0_49] : memref<3x3x32x32xbf16, #tpu.memory_space<vmem>>, vector<1x1x32x32xbf16>
    %81 = vector.shape_cast %80 : vector<1x1x32x32xbf16> to vector<32x32xbf16>
    %cst_50 = arith.constant dense<0.000000e+00> : vector<8x32xf32>
    %82 = tpu.matmul %66, %81, %cst_50 {dimension_numbers = #tpu.dot_dimension_numbers<[1], [0], [0], [1], [0, 0, 1, 1], [], []>} : vector<8x32xbf16>, vector<32x32xbf16>, vector<8x32xf32> -> vector<8x32xf32>
    %83 = arith.addf %79, %82 : vector<8x32xf32>
    %c0_51 = arith.constant 0 : index
    %c2_52 = arith.constant 2 : index
    %c0_53 = arith.constant 0 : index
    %c0_54 = arith.constant 0 : index
    %84 = vector.load %arg7[%c0_51, %c2_52, %c0_53, %c0_54] : memref<3x3x32x32xbf16, #tpu.memory_space<vmem>>, vector<1x1x32x32xbf16>
    %85 = vector.shape_cast %84 : vector<1x1x32x32xbf16> to vector<32x32xbf16>
    %cst_55 = arith.constant dense<0.000000e+00> : vector<8x32xf32>
    %86 = tpu.matmul %66, %85, %cst_55 {dimension_numbers = #tpu.dot_dimension_numbers<[1], [0], [0], [1], [0, 0, 1, 1], [], []>} : vector<8x32xbf16>, vector<32x32xbf16>, vector<8x32xf32> -> vector<8x32xf32>
    %c7_i32_56 = arith.constant 7 : i32
    %87 = tpu.dynamic_rotate %86 by %c7_i32_56 dim 0 : vector<8x32xf32>, i32 -> vector<8x32xf32>
    %88 = tpu.iota {dimensions = array<i32: 0>} : vector<8x1xi32>
    %c7_i32_57 = arith.constant 7 : i32
    %89 = vector.broadcast %c7_i32_57 : i32 to vector<8x1xi32>
    %90 = arith.cmpi slt, %88, %89 : vector<8x1xi32>
    %cst_58 = arith.constant 0.000000e+00 : f32
    %91 = vector.shape_cast %90 : vector<8x1xi1> to vector<8x1xi1>
    %92 = vector.broadcast %91 : vector<8x1xi1> to vector<8x32xi1>
    %93 = vector.broadcast %cst_58 : f32 to vector<8x32xf32>
    %94 = arith.select %92, %87, %93 : vector<8x32xi1>, vector<8x32xf32>
    %95 = arith.addf %83, %94 : vector<8x32xf32>
    %c0_59 = arith.constant 0 : index
    %c0_60 = arith.constant 0 : index
    %c0_61 = arith.constant 0 : index
    %96 = vector.load %arg8[%c0_59, %c0_60, %c0_61] : memref<3x1x32xf32, #tpu.memory_space<vmem>>, vector<1x1x32xf32>
    %97 = vector.shape_cast %96 : vector<1x1x32xf32> to vector<1x32xf32>
    %98 = vector.broadcast %97 : vector<1x32xf32> to vector<8x32xf32>
    %99 = arith.addf %95, %98 : vector<8x32xf32>
    %cst_62 = arith.constant 0.000000e+00 : f32
    %100 = vector.broadcast %cst_62 : f32 to vector<8x32xf32>
    %101 = arith.maximumf %99, %100 : vector<8x32xf32>
    %cst_63 = arith.constant dense<0.000000e+00> : vector<8xf32>
    %102 = vector.multi_reduction <add>, %101, %cst_63 [1] : vector<8x32xf32> to vector<8xf32>
    %103 = vector.shape_cast %102 : vector<8xf32> to vector<8x1xf32>
    %cst_64 = arith.constant 3.200000e+01 : f32
    %104 = vector.broadcast %cst_64 : f32 to vector<8x1xf32>
    %105 = arith.divf %103, %104 : vector<8x1xf32>
    %106 = vector.broadcast %105 : vector<8x1xf32> to vector<8x32xf32>
    %107 = arith.subf %101, %106 : vector<8x32xf32>
    %108 = arith.mulf %107, %107 : vector<8x32xf32>
    %cst_65 = arith.constant dense<0.000000e+00> : vector<8xf32>
    %109 = vector.multi_reduction <add>, %108, %cst_65 [1] : vector<8x32xf32> to vector<8xf32>
    %110 = vector.shape_cast %109 : vector<8xf32> to vector<8x1xf32>
    %cst_66 = arith.constant 3.200000e+01 : f32
    %111 = vector.broadcast %cst_66 : f32 to vector<8x1xf32>
    %112 = arith.divf %110, %111 : vector<8x1xf32>
    %113 = vector.broadcast %105 : vector<8x1xf32> to vector<8x32xf32>
    %114 = arith.subf %101, %113 : vector<8x32xf32>
    %cst_67 = arith.constant 9.99999974E-6 : f32
    %115 = vector.broadcast %cst_67 : f32 to vector<8x1xf32>
    %116 = arith.addf %112, %115 : vector<8x1xf32>
    %117 = math.rsqrt %116 : vector<8x1xf32>
    %118 = vector.broadcast %117 : vector<8x1xf32> to vector<8x32xf32>
    %119 = arith.mulf %114, %118 : vector<8x32xf32>
    %c0_68 = arith.constant 0 : index
    %c0_69 = arith.constant 0 : index
    %c0_70 = arith.constant 0 : index
    %120 = vector.load %arg9[%c0_68, %c0_69, %c0_70] : memref<3x1x32xf32, #tpu.memory_space<vmem>>, vector<1x1x32xf32>
    %121 = vector.shape_cast %120 : vector<1x1x32xf32> to vector<1x32xf32>
    %122 = vector.broadcast %121 : vector<1x32xf32> to vector<8x32xf32>
    %123 = arith.mulf %119, %122 : vector<8x32xf32>
    %c0_71 = arith.constant 0 : index
    %c0_72 = arith.constant 0 : index
    %c0_73 = arith.constant 0 : index
    %124 = vector.load %arg10[%c0_71, %c0_72, %c0_73] : memref<3x1x32xf32, #tpu.memory_space<vmem>>, vector<1x1x32xf32>
    %125 = vector.shape_cast %124 : vector<1x1x32xf32> to vector<1x32xf32>
    %126 = vector.broadcast %125 : vector<1x32xf32> to vector<8x32xf32>
    %127 = arith.addf %123, %126 : vector<8x32xf32>
    %c0_74 = arith.constant 0 : index
    %c0_75 = arith.constant 0 : index
    %c0_76 = arith.constant 0 : index
    %128 = vector.load %arg11[%c0_74, %c0_75, %c0_76] : memref<3x1x32xf32, #tpu.memory_space<vmem>>, vector<1x1x32xf32>
    %129 = vector.shape_cast %128 : vector<1x1x32xf32> to vector<1x32xf32>
    %130 = vector.broadcast %129 : vector<1x32xf32> to vector<8x32xf32>
    %131 = arith.mulf %127, %130 : vector<8x32xf32>
    %cst_77 = arith.constant dense<0.000000e+00> : vector<8xf32>
    %132 = vector.multi_reduction <add>, %131, %cst_77 [1] : vector<8x32xf32> to vector<8xf32>
    %133 = vector.shape_cast %132 : vector<8xf32> to vector<8x1xf32>
    %c0_78 = arith.constant 0 : index
    %c0_79 = arith.constant 0 : index
    %c0_80 = arith.constant 0 : index
    %134 = vector.load %arg12[%c0_78, %c0_79, %c0_80] : memref<3x1x1xf32, #tpu.memory_space<vmem>>, vector<1x1x1xf32>
    %135 = vector.shape_cast %134 : vector<1x1x1xf32> to vector<1x1xf32>
    %136 = vector.broadcast %135 : vector<1x1xf32> to vector<8x1xf32>
    %137 = arith.addf %133, %136 : vector<8x1xf32>
    %138 = tpu.transpose %137, [1, 0] : vector<8x1xf32> -> vector<1x8xf32>
    %c0_81 = arith.constant 0 : index
    %c0_82 = arith.constant 0 : index
    %c0_83 = arith.constant 0 : index
    %139 = vector.load %arg15[%c0_81, %c0_82, %c0_83] : memref<1x1x8xf32, #tpu.memory_space<vmem>>, vector<1x1x8xf32>
    %140 = vector.shape_cast %139 : vector<1x1x8xf32> to vector<1x8xf32>
    %141 = vector.shape_cast %138 : vector<1x8xf32> to vector<1x1x8xf32>
    tpu.vector_store %arg15[%c0_81, %c0_82, %c0_83], %141 {strides = array<i32>} : memref<1x1x8xf32, #tpu.memory_space<vmem>>, vector<1x1x8xf32>,
    %142 = tpu.iota {dimensions = array<i32: 1>} : vector<16x8xi32>
    %143 = vector.broadcast %3 : vector<16x1xi32> to vector<16x8xi32>
    %144 = arith.cmpi eq, %142, %143 : vector<16x8xi32>
    %145 = arith.extui %144 : vector<16x8xi1> to vector<16x8xi32>
    %146 = arith.sitofp %145 : vector<16x8xi32> to vector<16x8xf32>
    %cst_84 = arith.constant dense<0.000000e+00> : vector<16x32xf32>
    %147 = tpu.matmul %146, %1, %cst_84 {dimension_numbers = #tpu.dot_dimension_numbers<[1], [0], [0], [1], [0, 0, 1, 1], [], []>} : vector<16x8xf32>, vector<8x32xf32>, vector<16x32xf32> -> vector<16x32xf32>
    %148 = arith.truncf %147 : vector<16x32xf32> to vector<16x32xbf16>
    %cst_85 = arith.constant 0.000000e+00 : f32
    %149 = vector.broadcast %cst_85 : f32 to vector<16x32xf32>
    %c1_86 = arith.constant 1 : index
    %c0_87 = arith.constant 0 : index
    %c0_88 = arith.constant 0 : index
    %c0_89 = arith.constant 0 : index
    %150 = vector.load %arg3[%c1_86, %c0_87, %c0_88, %c0_89] : memref<3x3x32x32xbf16, #tpu.memory_space<vmem>>, vector<1x1x32x32xbf16>
    %151 = vector.shape_cast %150 : vector<1x1x32x32xbf16> to vector<32x32xbf16>
    %cst_90 = arith.constant dense<0.000000e+00> : vector<16x32xf32>
    %152 = tpu.matmul %148, %151, %cst_90 {dimension_numbers = #tpu.dot_dimension_numbers<[1], [0], [0], [1], [0, 0, 1, 1], [], []>} : vector<16x32xbf16>, vector<32x32xbf16>, vector<16x32xf32> -> vector<16x32xf32>
    %c1_i32_91 = arith.constant 1 : i32
    %153 = tpu.dynamic_rotate %152 by %c1_i32_91 dim 0 : vector<16x32xf32>, i32 -> vector<16x32xf32>
    %154 = tpu.iota {dimensions = array<i32: 0>} : vector<16x1xi32>
    %c1_i32_92 = arith.constant 1 : i32
    %155 = vector.broadcast %c1_i32_92 : i32 to vector<16x1xi32>
    %156 = arith.cmpi sge, %154, %155 : vector<16x1xi32>
    %cst_93 = arith.constant 0.000000e+00 : f32
    %157 = vector.shape_cast %156 : vector<16x1xi1> to vector<16x1xi1>
    %158 = vector.broadcast %157 : vector<16x1xi1> to vector<16x32xi1>
    %159 = vector.broadcast %cst_93 : f32 to vector<16x32xf32>
    %160 = arith.select %158, %153, %159 : vector<16x32xi1>, vector<16x32xf32>
    %161 = arith.addf %149, %160 : vector<16x32xf32>
    %c1_94 = arith.constant 1 : index
    %c1_95 = arith.constant 1 : index
    %c0_96 = arith.constant 0 : index
    %c0_97 = arith.constant 0 : index
    %162 = vector.load %arg3[%c1_94, %c1_95, %c0_96, %c0_97] : memref<3x3x32x32xbf16, #tpu.memory_space<vmem>>, vector<1x1x32x32xbf16>
    %163 = vector.shape_cast %162 : vector<1x1x32x32xbf16> to vector<32x32xbf16>
    %cst_98 = arith.constant dense<0.000000e+00> : vector<16x32xf32>
    %164 = tpu.matmul %148, %163, %cst_98 {dimension_numbers = #tpu.dot_dimension_numbers<[1], [0], [0], [1], [0, 0, 1, 1], [], []>} : vector<16x32xbf16>, vector<32x32xbf16>, vector<16x32xf32> -> vector<16x32xf32>
    %165 = arith.addf %161, %164 : vector<16x32xf32>
    %c1_99 = arith.constant 1 : index
    %c2_100 = arith.constant 2 : index
    %c0_101 = arith.constant 0 : index
    %c0_102 = arith.constant 0 : index
    %166 = vector.load %arg3[%c1_99, %c2_100, %c0_101, %c0_102] : memref<3x3x32x32xbf16, #tpu.memory_space<vmem>>, vector<1x1x32x32xbf16>
    %167 = vector.shape_cast %166 : vector<1x1x32x32xbf16> to vector<32x32xbf16>
    %cst_103 = arith.constant dense<0.000000e+00> : vector<16x32xf32>
    %168 = tpu.matmul %148, %167, %cst_103 {dimension_numbers = #tpu.dot_dimension_numbers<[1], [0], [0], [1], [0, 0, 1, 1], [], []>} : vector<16x32xbf16>, vector<32x32xbf16>, vector<16x32xf32> -> vector<16x32xf32>
    %c15_i32 = arith.constant 15 : i32
    %169 = tpu.dynamic_rotate %168 by %c15_i32 dim 0 : vector<16x32xf32>, i32 -> vector<16x32xf32>
    %170 = tpu.iota {dimensions = array<i32: 0>} : vector<16x1xi32>
    %c15_i32_104 = arith.constant 15 : i32
    %171 = vector.broadcast %c15_i32_104 : i32 to vector<16x1xi32>
    %172 = arith.cmpi slt, %170, %171 : vector<16x1xi32>
    %cst_105 = arith.constant 0.000000e+00 : f32
    %173 = vector.shape_cast %172 : vector<16x1xi1> to vector<16x1xi1>
    %174 = vector.broadcast %173 : vector<16x1xi1> to vector<16x32xi1>
    %175 = vector.broadcast %cst_105 : f32 to vector<16x32xf32>
    %176 = arith.select %174, %169, %175 : vector<16x32xi1>, vector<16x32xf32>
    %177 = arith.addf %165, %176 : vector<16x32xf32>
    %c1_106 = arith.constant 1 : index
    %c0_107 = arith.constant 0 : index
    %c0_108 = arith.constant 0 : index
    %178 = vector.load %arg4[%c1_106, %c0_107, %c0_108] : memref<3x1x32xf32, #tpu.memory_space<vmem>>, vector<1x1x32xf32>
    %179 = vector.shape_cast %178 : vector<1x1x32xf32> to vector<1x32xf32>
    %180 = vector.broadcast %179 : vector<1x32xf32> to vector<16x32xf32>
    %181 = arith.addf %177, %180 : vector<16x32xf32>
    %cst_109 = arith.constant 0.000000e+00 : f32
    %182 = vector.broadcast %cst_109 : f32 to vector<16x32xf32>
    %183 = arith.maximumf %181, %182 : vector<16x32xf32>
    %cst_110 = arith.constant dense<0.000000e+00> : vector<16xf32>
    %184 = vector.multi_reduction <add>, %183, %cst_110 [1] : vector<16x32xf32> to vector<16xf32>
    %185 = vector.shape_cast %184 : vector<16xf32> to vector<16x1xf32>
    %cst_111 = arith.constant 3.200000e+01 : f32
    %186 = vector.broadcast %cst_111 : f32 to vector<16x1xf32>
    %187 = arith.divf %185, %186 : vector<16x1xf32>
    %188 = vector.broadcast %187 : vector<16x1xf32> to vector<16x32xf32>
    %189 = arith.subf %183, %188 : vector<16x32xf32>
    %190 = arith.mulf %189, %189 : vector<16x32xf32>
    %cst_112 = arith.constant dense<0.000000e+00> : vector<16xf32>
    %191 = vector.multi_reduction <add>, %190, %cst_112 [1] : vector<16x32xf32> to vector<16xf32>
    %192 = vector.shape_cast %191 : vector<16xf32> to vector<16x1xf32>
    %cst_113 = arith.constant 3.200000e+01 : f32
    %193 = vector.broadcast %cst_113 : f32 to vector<16x1xf32>
    %194 = arith.divf %192, %193 : vector<16x1xf32>
    %195 = vector.broadcast %187 : vector<16x1xf32> to vector<16x32xf32>
    %196 = arith.subf %183, %195 : vector<16x32xf32>
    %cst_114 = arith.constant 9.99999974E-6 : f32
    %197 = vector.broadcast %cst_114 : f32 to vector<16x1xf32>
    %198 = arith.addf %194, %197 : vector<16x1xf32>
    %199 = math.rsqrt %198 : vector<16x1xf32>
    %200 = vector.broadcast %199 : vector<16x1xf32> to vector<16x32xf32>
    %201 = arith.mulf %196, %200 : vector<16x32xf32>
    %c1_115 = arith.constant 1 : index
    %c0_116 = arith.constant 0 : index
    %c0_117 = arith.constant 0 : index
    %202 = vector.load %arg5[%c1_115, %c0_116, %c0_117] : memref<3x1x32xf32, #tpu.memory_space<vmem>>, vector<1x1x32xf32>
    %203 = vector.shape_cast %202 : vector<1x1x32xf32> to vector<1x32xf32>
    %204 = vector.broadcast %203 : vector<1x32xf32> to vector<16x32xf32>
    %205 = arith.mulf %201, %204 : vector<16x32xf32>
    %c1_118 = arith.constant 1 : index
    %c0_119 = arith.constant 0 : index
    %c0_120 = arith.constant 0 : index
    %206 = vector.load %arg6[%c1_118, %c0_119, %c0_120] : memref<3x1x32xf32, #tpu.memory_space<vmem>>, vector<1x1x32xf32>
    %207 = vector.shape_cast %206 : vector<1x1x32xf32> to vector<1x32xf32>
    %208 = vector.broadcast %207 : vector<1x32xf32> to vector<16x32xf32>
    %209 = arith.addf %205, %208 : vector<16x32xf32>
    %210 = arith.truncf %209 : vector<16x32xf32> to vector<16x32xbf16>
    %cst_121 = arith.constant 0.000000e+00 : f32
    %211 = vector.broadcast %cst_121 : f32 to vector<16x32xf32>
    %c1_122 = arith.constant 1 : index
    %c0_123 = arith.constant 0 : index
    %c0_124 = arith.constant 0 : index
    %c0_125 = arith.constant 0 : index
    %212 = vector.load %arg7[%c1_122, %c0_123, %c0_124, %c0_125] : memref<3x3x32x32xbf16, #tpu.memory_space<vmem>>, vector<1x1x32x32xbf16>
    %213 = vector.shape_cast %212 : vector<1x1x32x32xbf16> to vector<32x32xbf16>
    %cst_126 = arith.constant dense<0.000000e+00> : vector<16x32xf32>
    %214 = tpu.matmul %210, %213, %cst_126 {dimension_numbers = #tpu.dot_dimension_numbers<[1], [0], [0], [1], [0, 0, 1, 1], [], []>} : vector<16x32xbf16>, vector<32x32xbf16>, vector<16x32xf32> -> vector<16x32xf32>
    %c1_i32_127 = arith.constant 1 : i32
    %215 = tpu.dynamic_rotate %214 by %c1_i32_127 dim 0 : vector<16x32xf32>, i32 -> vector<16x32xf32>
    %216 = tpu.iota {dimensions = array<i32: 0>} : vector<16x1xi32>
    %c1_i32_128 = arith.constant 1 : i32
    %217 = vector.broadcast %c1_i32_128 : i32 to vector<16x1xi32>
    %218 = arith.cmpi sge, %216, %217 : vector<16x1xi32>
    %cst_129 = arith.constant 0.000000e+00 : f32
    %219 = vector.shape_cast %218 : vector<16x1xi1> to vector<16x1xi1>
    %220 = vector.broadcast %219 : vector<16x1xi1> to vector<16x32xi1>
    %221 = vector.broadcast %cst_129 : f32 to vector<16x32xf32>
    %222 = arith.select %220, %215, %221 : vector<16x32xi1>, vector<16x32xf32>
    %223 = arith.addf %211, %222 : vector<16x32xf32>
    %c1_130 = arith.constant 1 : index
    %c1_131 = arith.constant 1 : index
    %c0_132 = arith.constant 0 : index
    %c0_133 = arith.constant 0 : index
    %224 = vector.load %arg7[%c1_130, %c1_131, %c0_132, %c0_133] : memref<3x3x32x32xbf16, #tpu.memory_space<vmem>>, vector<1x1x32x32xbf16>
    %225 = vector.shape_cast %224 : vector<1x1x32x32xbf16> to vector<32x32xbf16>
    %cst_134 = arith.constant dense<0.000000e+00> : vector<16x32xf32>
    %226 = tpu.matmul %210, %225, %cst_134 {dimension_numbers = #tpu.dot_dimension_numbers<[1], [0], [0], [1], [0, 0, 1, 1], [], []>} : vector<16x32xbf16>, vector<32x32xbf16>, vector<16x32xf32> -> vector<16x32xf32>
    %227 = arith.addf %223, %226 : vector<16x32xf32>
    %c1_135 = arith.constant 1 : index
    %c2_136 = arith.constant 2 : index
    %c0_137 = arith.constant 0 : index
    %c0_138 = arith.constant 0 : index
    %228 = vector.load %arg7[%c1_135, %c2_136, %c0_137, %c0_138] : memref<3x3x32x32xbf16, #tpu.memory_space<vmem>>, vector<1x1x32x32xbf16>
    %229 = vector.shape_cast %228 : vector<1x1x32x32xbf16> to vector<32x32xbf16>
    %cst_139 = arith.constant dense<0.000000e+00> : vector<16x32xf32>
    %230 = tpu.matmul %210, %229, %cst_139 {dimension_numbers = #tpu.dot_dimension_numbers<[1], [0], [0], [1], [0, 0, 1, 1], [], []>} : vector<16x32xbf16>, vector<32x32xbf16>, vector<16x32xf32> -> vector<16x32xf32>
    %c15_i32_140 = arith.constant 15 : i32
    %231 = tpu.dynamic_rotate %230 by %c15_i32_140 dim 0 : vector<16x32xf32>, i32 -> vector<16x32xf32>
    %232 = tpu.iota {dimensions = array<i32: 0>} : vector<16x1xi32>
    %c15_i32_141 = arith.constant 15 : i32
    %233 = vector.broadcast %c15_i32_141 : i32 to vector<16x1xi32>
    %234 = arith.cmpi slt, %232, %233 : vector<16x1xi32>
    %cst_142 = arith.constant 0.000000e+00 : f32
    %235 = vector.shape_cast %234 : vector<16x1xi1> to vector<16x1xi1>
    %236 = vector.broadcast %235 : vector<16x1xi1> to vector<16x32xi1>
    %237 = vector.broadcast %cst_142 : f32 to vector<16x32xf32>
    %238 = arith.select %236, %231, %237 : vector<16x32xi1>, vector<16x32xf32>
    %239 = arith.addf %227, %238 : vector<16x32xf32>
    %c1_143 = arith.constant 1 : index
    %c0_144 = arith.constant 0 : index
    %c0_145 = arith.constant 0 : index
    %240 = vector.load %arg8[%c1_143, %c0_144, %c0_145] : memref<3x1x32xf32, #tpu.memory_space<vmem>>, vector<1x1x32xf32>
    %241 = vector.shape_cast %240 : vector<1x1x32xf32> to vector<1x32xf32>
    %242 = vector.broadcast %241 : vector<1x32xf32> to vector<16x32xf32>
    %243 = arith.addf %239, %242 : vector<16x32xf32>
    %cst_146 = arith.constant 0.000000e+00 : f32
    %244 = vector.broadcast %cst_146 : f32 to vector<16x32xf32>
    %245 = arith.maximumf %243, %244 : vector<16x32xf32>
    %cst_147 = arith.constant dense<0.000000e+00> : vector<16xf32>
    %246 = vector.multi_reduction <add>, %245, %cst_147 [1] : vector<16x32xf32> to vector<16xf32>
    %247 = vector.shape_cast %246 : vector<16xf32> to vector<16x1xf32>
    %cst_148 = arith.constant 3.200000e+01 : f32
    %248 = vector.broadcast %cst_148 : f32 to vector<16x1xf32>
    %249 = arith.divf %247, %248 : vector<16x1xf32>
    %250 = vector.broadcast %249 : vector<16x1xf32> to vector<16x32xf32>
    %251 = arith.subf %245, %250 : vector<16x32xf32>
    %252 = arith.mulf %251, %251 : vector<16x32xf32>
    %cst_149 = arith.constant dense<0.000000e+00> : vector<16xf32>
    %253 = vector.multi_reduction <add>, %252, %cst_149 [1] : vector<16x32xf32> to vector<16xf32>
    %254 = vector.shape_cast %253 : vector<16xf32> to vector<16x1xf32>
    %cst_150 = arith.constant 3.200000e+01 : f32
    %255 = vector.broadcast %cst_150 : f32 to vector<16x1xf32>
    %256 = arith.divf %254, %255 : vector<16x1xf32>
    %257 = vector.broadcast %249 : vector<16x1xf32> to vector<16x32xf32>
    %258 = arith.subf %245, %257 : vector<16x32xf32>
    %cst_151 = arith.constant 9.99999974E-6 : f32
    %259 = vector.broadcast %cst_151 : f32 to vector<16x1xf32>
    %260 = arith.addf %256, %259 : vector<16x1xf32>
    %261 = math.rsqrt %260 : vector<16x1xf32>
    %262 = vector.broadcast %261 : vector<16x1xf32> to vector<16x32xf32>
    %263 = arith.mulf %258, %262 : vector<16x32xf32>
    %c1_152 = arith.constant 1 : index
    %c0_153 = arith.constant 0 : index
    %c0_154 = arith.constant 0 : index
    %264 = vector.load %arg9[%c1_152, %c0_153, %c0_154] : memref<3x1x32xf32, #tpu.memory_space<vmem>>, vector<1x1x32xf32>
    %265 = vector.shape_cast %264 : vector<1x1x32xf32> to vector<1x32xf32>
    %266 = vector.broadcast %265 : vector<1x32xf32> to vector<16x32xf32>
    %267 = arith.mulf %263, %266 : vector<16x32xf32>
    %c1_155 = arith.constant 1 : index
    %c0_156 = arith.constant 0 : index
    %c0_157 = arith.constant 0 : index
    %268 = vector.load %arg10[%c1_155, %c0_156, %c0_157] : memref<3x1x32xf32, #tpu.memory_space<vmem>>, vector<1x1x32xf32>
    %269 = vector.shape_cast %268 : vector<1x1x32xf32> to vector<1x32xf32>
    %270 = vector.broadcast %269 : vector<1x32xf32> to vector<16x32xf32>
    %271 = arith.addf %267, %270 : vector<16x32xf32>
    %c1_158 = arith.constant 1 : index
    %c0_159 = arith.constant 0 : index
    %c0_160 = arith.constant 0 : index
    %272 = vector.load %arg11[%c1_158, %c0_159, %c0_160] : memref<3x1x32xf32, #tpu.memory_space<vmem>>, vector<1x1x32xf32>
    %273 = vector.shape_cast %272 : vector<1x1x32xf32> to vector<1x32xf32>
    %274 = vector.broadcast %273 : vector<1x32xf32> to vector<16x32xf32>
    %275 = arith.mulf %271, %274 : vector<16x32xf32>
    %cst_161 = arith.constant dense<0.000000e+00> : vector<16xf32>
    %276 = vector.multi_reduction <add>, %275, %cst_161 [1] : vector<16x32xf32> to vector<16xf32>
    %277 = vector.shape_cast %276 : vector<16xf32> to vector<16x1xf32>
    %c1_162 = arith.constant 1 : index
    %c0_163 = arith.constant 0 : index
    %c0_164 = arith.constant 0 : index
    %278 = vector.load %arg12[%c1_162, %c0_163, %c0_164] : memref<3x1x1xf32, #tpu.memory_space<vmem>>, vector<1x1x1xf32>
    %279 = vector.shape_cast %278 : vector<1x1x1xf32> to vector<1x1xf32>
    %280 = vector.broadcast %279 : vector<1x1xf32> to vector<16x1xf32>
    %281 = arith.addf %277, %280 : vector<16x1xf32>
    %282 = arith.truncf %147 : vector<16x32xf32> to vector<16x32xbf16>
    %cst_165 = arith.constant 0.000000e+00 : f32
    %283 = vector.broadcast %cst_165 : f32 to vector<16x32xf32>
    %c2_166 = arith.constant 2 : index
    %c0_167 = arith.constant 0 : index
    %c0_168 = arith.constant 0 : index
    %c0_169 = arith.constant 0 : index
    %284 = vector.load %arg3[%c2_166, %c0_167, %c0_168, %c0_169] : memref<3x3x32x32xbf16, #tpu.memory_space<vmem>>, vector<1x1x32x32xbf16>
    %285 = vector.shape_cast %284 : vector<1x1x32x32xbf16> to vector<32x32xbf16>
    %cst_170 = arith.constant dense<0.000000e+00> : vector<16x32xf32>
    %286 = tpu.matmul %282, %285, %cst_170 {dimension_numbers = #tpu.dot_dimension_numbers<[1], [0], [0], [1], [0, 0, 1, 1], [], []>} : vector<16x32xbf16>, vector<32x32xbf16>, vector<16x32xf32> -> vector<16x32xf32>
    %c1_i32_171 = arith.constant 1 : i32
    %287 = tpu.dynamic_rotate %286 by %c1_i32_171 dim 0 : vector<16x32xf32>, i32 -> vector<16x32xf32>
    %288 = tpu.iota {dimensions = array<i32: 0>} : vector<16x1xi32>
    %c1_i32_172 = arith.constant 1 : i32
    %289 = vector.broadcast %c1_i32_172 : i32 to vector<16x1xi32>
    %290 = arith.cmpi sge, %288, %289 : vector<16x1xi32>
    %cst_173 = arith.constant 0.000000e+00 : f32
    %291 = vector.shape_cast %290 : vector<16x1xi1> to vector<16x1xi1>
    %292 = vector.broadcast %291 : vector<16x1xi1> to vector<16x32xi1>
    %293 = vector.broadcast %cst_173 : f32 to vector<16x32xf32>
    %294 = arith.select %292, %287, %293 : vector<16x32xi1>, vector<16x32xf32>
    %295 = arith.addf %283, %294 : vector<16x32xf32>
    %c2_174 = arith.constant 2 : index
    %c1_175 = arith.constant 1 : index
    %c0_176 = arith.constant 0 : index
    %c0_177 = arith.constant 0 : index
    %296 = vector.load %arg3[%c2_174, %c1_175, %c0_176, %c0_177] : memref<3x3x32x32xbf16, #tpu.memory_space<vmem>>, vector<1x1x32x32xbf16>
    %297 = vector.shape_cast %296 : vector<1x1x32x32xbf16> to vector<32x32xbf16>
    %cst_178 = arith.constant dense<0.000000e+00> : vector<16x32xf32>
    %298 = tpu.matmul %282, %297, %cst_178 {dimension_numbers = #tpu.dot_dimension_numbers<[1], [0], [0], [1], [0, 0, 1, 1], [], []>} : vector<16x32xbf16>, vector<32x32xbf16>, vector<16x32xf32> -> vector<16x32xf32>
    %299 = arith.addf %295, %298 : vector<16x32xf32>
    %c2_179 = arith.constant 2 : index
    %c2_180 = arith.constant 2 : index
    %c0_181 = arith.constant 0 : index
    %c0_182 = arith.constant 0 : index
    %300 = vector.load %arg3[%c2_179, %c2_180, %c0_181, %c0_182] : memref<3x3x32x32xbf16, #tpu.memory_space<vmem>>, vector<1x1x32x32xbf16>
    %301 = vector.shape_cast %300 : vector<1x1x32x32xbf16> to vector<32x32xbf16>
    %cst_183 = arith.constant dense<0.000000e+00> : vector<16x32xf32>
    %302 = tpu.matmul %282, %301, %cst_183 {dimension_numbers = #tpu.dot_dimension_numbers<[1], [0], [0], [1], [0, 0, 1, 1], [], []>} : vector<16x32xbf16>, vector<32x32xbf16>, vector<16x32xf32> -> vector<16x32xf32>
    %c15_i32_184 = arith.constant 15 : i32
    %303 = tpu.dynamic_rotate %302 by %c15_i32_184 dim 0 : vector<16x32xf32>, i32 -> vector<16x32xf32>
    %304 = tpu.iota {dimensions = array<i32: 0>} : vector<16x1xi32>
    %c15_i32_185 = arith.constant 15 : i32
    %305 = vector.broadcast %c15_i32_185 : i32 to vector<16x1xi32>
    %306 = arith.cmpi slt, %304, %305 : vector<16x1xi32>
    %cst_186 = arith.constant 0.000000e+00 : f32
    %307 = vector.shape_cast %306 : vector<16x1xi1> to vector<16x1xi1>
    %308 = vector.broadcast %307 : vector<16x1xi1> to vector<16x32xi1>
    %309 = vector.broadcast %cst_186 : f32 to vector<16x32xf32>
    %310 = arith.select %308, %303, %309 : vector<16x32xi1>, vector<16x32xf32>
    %311 = arith.addf %299, %310 : vector<16x32xf32>
    %c2_187 = arith.constant 2 : index
    %c0_188 = arith.constant 0 : index
    %c0_189 = arith.constant 0 : index
    %312 = vector.load %arg4[%c2_187, %c0_188, %c0_189] : memref<3x1x32xf32, #tpu.memory_space<vmem>>, vector<1x1x32xf32>
    %313 = vector.shape_cast %312 : vector<1x1x32xf32> to vector<1x32xf32>
    %314 = vector.broadcast %313 : vector<1x32xf32> to vector<16x32xf32>
    %315 = arith.addf %311, %314 : vector<16x32xf32>
    %cst_190 = arith.constant 0.000000e+00 : f32
    %316 = vector.broadcast %cst_190 : f32 to vector<16x32xf32>
    %317 = arith.maximumf %315, %316 : vector<16x32xf32>
    %cst_191 = arith.constant dense<0.000000e+00> : vector<16xf32>
    %318 = vector.multi_reduction <add>, %317, %cst_191 [1] : vector<16x32xf32> to vector<16xf32>
    %319 = vector.shape_cast %318 : vector<16xf32> to vector<16x1xf32>
    %cst_192 = arith.constant 3.200000e+01 : f32
    %320 = vector.broadcast %cst_192 : f32 to vector<16x1xf32>
    %321 = arith.divf %319, %320 : vector<16x1xf32>
    %322 = vector.broadcast %321 : vector<16x1xf32> to vector<16x32xf32>
    %323 = arith.subf %317, %322 : vector<16x32xf32>
    %324 = arith.mulf %323, %323 : vector<16x32xf32>
    %cst_193 = arith.constant dense<0.000000e+00> : vector<16xf32>
    %325 = vector.multi_reduction <add>, %324, %cst_193 [1] : vector<16x32xf32> to vector<16xf32>
    %326 = vector.shape_cast %325 : vector<16xf32> to vector<16x1xf32>
    %cst_194 = arith.constant 3.200000e+01 : f32
    %327 = vector.broadcast %cst_194 : f32 to vector<16x1xf32>
    %328 = arith.divf %326, %327 : vector<16x1xf32>
    %329 = vector.broadcast %321 : vector<16x1xf32> to vector<16x32xf32>
    %330 = arith.subf %317, %329 : vector<16x32xf32>
    %cst_195 = arith.constant 9.99999974E-6 : f32
    %331 = vector.broadcast %cst_195 : f32 to vector<16x1xf32>
    %332 = arith.addf %328, %331 : vector<16x1xf32>
    %333 = math.rsqrt %332 : vector<16x1xf32>
    %334 = vector.broadcast %333 : vector<16x1xf32> to vector<16x32xf32>
    %335 = arith.mulf %330, %334 : vector<16x32xf32>
    %c2_196 = arith.constant 2 : index
    %c0_197 = arith.constant 0 : index
    %c0_198 = arith.constant 0 : index
    %336 = vector.load %arg5[%c2_196, %c0_197, %c0_198] : memref<3x1x32xf32, #tpu.memory_space<vmem>>, vector<1x1x32xf32>
    %337 = vector.shape_cast %336 : vector<1x1x32xf32> to vector<1x32xf32>
    %338 = vector.broadcast %337 : vector<1x32xf32> to vector<16x32xf32>
    %339 = arith.mulf %335, %338 : vector<16x32xf32>
    %c2_199 = arith.constant 2 : index
    %c0_200 = arith.constant 0 : index
    %c0_201 = arith.constant 0 : index
    %340 = vector.load %arg6[%c2_199, %c0_200, %c0_201] : memref<3x1x32xf32, #tpu.memory_space<vmem>>, vector<1x1x32xf32>
    %341 = vector.shape_cast %340 : vector<1x1x32xf32> to vector<1x32xf32>
    %342 = vector.broadcast %341 : vector<1x32xf32> to vector<16x32xf32>
    %343 = arith.addf %339, %342 : vector<16x32xf32>
    %344 = arith.truncf %343 : vector<16x32xf32> to vector<16x32xbf16>
    %cst_202 = arith.constant 0.000000e+00 : f32
    %345 = vector.broadcast %cst_202 : f32 to vector<16x32xf32>
    %c2_203 = arith.constant 2 : index
    %c0_204 = arith.constant 0 : index
    %c0_205 = arith.constant 0 : index
    %c0_206 = arith.constant 0 : index
    %346 = vector.load %arg7[%c2_203, %c0_204, %c0_205, %c0_206] : memref<3x3x32x32xbf16, #tpu.memory_space<vmem>>, vector<1x1x32x32xbf16>
    %347 = vector.shape_cast %346 : vector<1x1x32x32xbf16> to vector<32x32xbf16>
    %cst_207 = arith.constant dense<0.000000e+00> : vector<16x32xf32>
    %348 = tpu.matmul %344, %347, %cst_207 {dimension_numbers = #tpu.dot_dimension_numbers<[1], [0], [0], [1], [0, 0, 1, 1], [], []>} : vector<16x32xbf16>, vector<32x32xbf16>, vector<16x32xf32> -> vector<16x32xf32>
    %c1_i32_208 = arith.constant 1 : i32
    %349 = tpu.dynamic_rotate %348 by %c1_i32_208 dim 0 : vector<16x32xf32>, i32 -> vector<16x32xf32>
    %350 = tpu.iota {dimensions = array<i32: 0>} : vector<16x1xi32>
    %c1_i32_209 = arith.constant 1 : i32
    %351 = vector.broadcast %c1_i32_209 : i32 to vector<16x1xi32>
    %352 = arith.cmpi sge, %350, %351 : vector<16x1xi32>
    %cst_210 = arith.constant 0.000000e+00 : f32
    %353 = vector.shape_cast %352 : vector<16x1xi1> to vector<16x1xi1>
    %354 = vector.broadcast %353 : vector<16x1xi1> to vector<16x32xi1>
    %355 = vector.broadcast %cst_210 : f32 to vector<16x32xf32>
    %356 = arith.select %354, %349, %355 : vector<16x32xi1>, vector<16x32xf32>
    %357 = arith.addf %345, %356 : vector<16x32xf32>
    %c2_211 = arith.constant 2 : index
    %c1_212 = arith.constant 1 : index
    %c0_213 = arith.constant 0 : index
    %c0_214 = arith.constant 0 : index
    %358 = vector.load %arg7[%c2_211, %c1_212, %c0_213, %c0_214] : memref<3x3x32x32xbf16, #tpu.memory_space<vmem>>, vector<1x1x32x32xbf16>
    %359 = vector.shape_cast %358 : vector<1x1x32x32xbf16> to vector<32x32xbf16>
    %cst_215 = arith.constant dense<0.000000e+00> : vector<16x32xf32>
    %360 = tpu.matmul %344, %359, %cst_215 {dimension_numbers = #tpu.dot_dimension_numbers<[1], [0], [0], [1], [0, 0, 1, 1], [], []>} : vector<16x32xbf16>, vector<32x32xbf16>, vector<16x32xf32> -> vector<16x32xf32>
    %361 = arith.addf %357, %360 : vector<16x32xf32>
    %c2_216 = arith.constant 2 : index
    %c2_217 = arith.constant 2 : index
    %c0_218 = arith.constant 0 : index
    %c0_219 = arith.constant 0 : index
    %362 = vector.load %arg7[%c2_216, %c2_217, %c0_218, %c0_219] : memref<3x3x32x32xbf16, #tpu.memory_space<vmem>>, vector<1x1x32x32xbf16>
    %363 = vector.shape_cast %362 : vector<1x1x32x32xbf16> to vector<32x32xbf16>
    %cst_220 = arith.constant dense<0.000000e+00> : vector<16x32xf32>
    %364 = tpu.matmul %344, %363, %cst_220 {dimension_numbers = #tpu.dot_dimension_numbers<[1], [0], [0], [1], [0, 0, 1, 1], [], []>} : vector<16x32xbf16>, vector<32x32xbf16>, vector<16x32xf32> -> vector<16x32xf32>
    %c15_i32_221 = arith.constant 15 : i32
    %365 = tpu.dynamic_rotate %364 by %c15_i32_221 dim 0 : vector<16x32xf32>, i32 -> vector<16x32xf32>
    %366 = tpu.iota {dimensions = array<i32: 0>} : vector<16x1xi32>
    %c15_i32_222 = arith.constant 15 : i32
    %367 = vector.broadcast %c15_i32_222 : i32 to vector<16x1xi32>
    %368 = arith.cmpi slt, %366, %367 : vector<16x1xi32>
    %cst_223 = arith.constant 0.000000e+00 : f32
    %369 = vector.shape_cast %368 : vector<16x1xi1> to vector<16x1xi1>
    %370 = vector.broadcast %369 : vector<16x1xi1> to vector<16x32xi1>
    %371 = vector.broadcast %cst_223 : f32 to vector<16x32xf32>
    %372 = arith.select %370, %365, %371 : vector<16x32xi1>, vector<16x32xf32>
    %373 = arith.addf %361, %372 : vector<16x32xf32>
    %c2_224 = arith.constant 2 : index
    %c0_225 = arith.constant 0 : index
    %c0_226 = arith.constant 0 : index
    %374 = vector.load %arg8[%c2_224, %c0_225, %c0_226] : memref<3x1x32xf32, #tpu.memory_space<vmem>>, vector<1x1x32xf32>
    %375 = vector.shape_cast %374 : vector<1x1x32xf32> to vector<1x32xf32>
    %376 = vector.broadcast %375 : vector<1x32xf32> to vector<16x32xf32>
    %377 = arith.addf %373, %376 : vector<16x32xf32>
    %cst_227 = arith.constant 0.000000e+00 : f32
    %378 = vector.broadcast %cst_227 : f32 to vector<16x32xf32>
    %379 = arith.maximumf %377, %378 : vector<16x32xf32>
    %cst_228 = arith.constant dense<0.000000e+00> : vector<16xf32>
    %380 = vector.multi_reduction <add>, %379, %cst_228 [1] : vector<16x32xf32> to vector<16xf32>
    %381 = vector.shape_cast %380 : vector<16xf32> to vector<16x1xf32>
    %cst_229 = arith.constant 3.200000e+01 : f32
    %382 = vector.broadcast %cst_229 : f32 to vector<16x1xf32>
    %383 = arith.divf %381, %382 : vector<16x1xf32>
    %384 = vector.broadcast %383 : vector<16x1xf32> to vector<16x32xf32>
    %385 = arith.subf %379, %384 : vector<16x32xf32>
    %386 = arith.mulf %385, %385 : vector<16x32xf32>
    %cst_230 = arith.constant dense<0.000000e+00> : vector<16xf32>
    %387 = vector.multi_reduction <add>, %386, %cst_230 [1] : vector<16x32xf32> to vector<16xf32>
    %388 = vector.shape_cast %387 : vector<16xf32> to vector<16x1xf32>
    %cst_231 = arith.constant 3.200000e+01 : f32
    %389 = vector.broadcast %cst_231 : f32 to vector<16x1xf32>
    %390 = arith.divf %388, %389 : vector<16x1xf32>
    %391 = vector.broadcast %383 : vector<16x1xf32> to vector<16x32xf32>
    %392 = arith.subf %379, %391 : vector<16x32xf32>
    %cst_232 = arith.constant 9.99999974E-6 : f32
    %393 = vector.broadcast %cst_232 : f32 to vector<16x1xf32>
    %394 = arith.addf %390, %393 : vector<16x1xf32>
    %395 = math.rsqrt %394 : vector<16x1xf32>
    %396 = vector.broadcast %395 : vector<16x1xf32> to vector<16x32xf32>
    %397 = arith.mulf %392, %396 : vector<16x32xf32>
    %c2_233 = arith.constant 2 : index
    %c0_234 = arith.constant 0 : index
    %c0_235 = arith.constant 0 : index
    %398 = vector.load %arg9[%c2_233, %c0_234, %c0_235] : memref<3x1x32xf32, #tpu.memory_space<vmem>>, vector<1x1x32xf32>
    %399 = vector.shape_cast %398 : vector<1x1x32xf32> to vector<1x32xf32>
    %400 = vector.broadcast %399 : vector<1x32xf32> to vector<16x32xf32>
    %401 = arith.mulf %397, %400 : vector<16x32xf32>
    %c2_236 = arith.constant 2 : index
    %c0_237 = arith.constant 0 : index
    %c0_238 = arith.constant 0 : index
    %402 = vector.load %arg10[%c2_236, %c0_237, %c0_238] : memref<3x1x32xf32, #tpu.memory_space<vmem>>, vector<1x1x32xf32>
    %403 = vector.shape_cast %402 : vector<1x1x32xf32> to vector<1x32xf32>
    %404 = vector.broadcast %403 : vector<1x32xf32> to vector<16x32xf32>
    %405 = arith.addf %401, %404 : vector<16x32xf32>
    %c2_239 = arith.constant 2 : index
    %c0_240 = arith.constant 0 : index
    %c0_241 = arith.constant 0 : index
    %406 = vector.load %arg11[%c2_239, %c0_240, %c0_241] : memref<3x1x32xf32, #tpu.memory_space<vmem>>, vector<1x1x32xf32>
    %407 = vector.shape_cast %406 : vector<1x1x32xf32> to vector<1x32xf32>
    %408 = vector.broadcast %407 : vector<1x32xf32> to vector<16x32xf32>
    %409 = arith.mulf %405, %408 : vector<16x32xf32>
    %cst_242 = arith.constant dense<0.000000e+00> : vector<16xf32>
    %410 = vector.multi_reduction <add>, %409, %cst_242 [1] : vector<16x32xf32> to vector<16xf32>
    %411 = vector.shape_cast %410 : vector<16xf32> to vector<16x1xf32>
    %c2_243 = arith.constant 2 : index
    %c0_244 = arith.constant 0 : index
    %c0_245 = arith.constant 0 : index
    %412 = vector.load %arg12[%c2_243, %c0_244, %c0_245] : memref<3x1x1xf32, #tpu.memory_space<vmem>>, vector<1x1x1xf32>
    %413 = vector.shape_cast %412 : vector<1x1x1xf32> to vector<1x1xf32>
    %414 = vector.broadcast %413 : vector<1x1xf32> to vector<16x1xf32>
    %415 = arith.addf %411, %414 : vector<16x1xf32>
    %416 = tpu.transpose %281, [1, 0] : vector<16x1xf32> -> vector<1x16xf32>
    %c0_246 = arith.constant 0 : index
    %c0_247 = arith.constant 0 : index
    %c0_248 = arith.constant 0 : index
    %417 = vector.load %arg16[%c0_246, %c0_247, %c0_248] : memref<1x1x16xf32, #tpu.memory_space<vmem>>, vector<1x1x16xf32>
    %418 = vector.shape_cast %417 : vector<1x1x16xf32> to vector<1x16xf32>
    %419 = vector.shape_cast %416 : vector<1x16xf32> to vector<1x1x16xf32>
    tpu.vector_store %arg16[%c0_246, %c0_247, %c0_248], %419 {strides = array<i32>} : memref<1x1x16xf32, #tpu.memory_space<vmem>>, vector<1x1x16xf32>,
    %420 = tpu.transpose %415, [1, 0] : vector<16x1xf32> -> vector<1x16xf32>
    %c0_249 = arith.constant 0 : index
    %c0_250 = arith.constant 0 : index
    %c0_251 = arith.constant 0 : index
    %421 = vector.load %arg17[%c0_249, %c0_250, %c0_251] : memref<1x1x16xf32, #tpu.memory_space<vmem>>, vector<1x1x16xf32>
    %422 = vector.shape_cast %421 : vector<1x1x16xf32> to vector<1x16xf32>
    %423 = vector.shape_cast %420 : vector<1x16xf32> to vector<1x1x16xf32>
    tpu.vector_store %arg17[%c0_249, %c0_250, %c0_251], %423 {strides = array<i32>} : memref<1x1x16xf32, #tpu.memory_space<vmem>>, vector<1x1x16xf32>,
    %cst_252 = arith.constant 6.21660614 : f32
    %424 = vector.broadcast %cst_252 : f32 to vector<16x1xf32>
    %425 = arith.mulf %281, %424 : vector<16x1xf32>
    %426 = math.exp %425 : vector<16x1xf32>
    %cst_253 = arith.constant 1.000000e+00 : f32
    %427 = vector.broadcast %cst_253 : f32 to vector<16x1xf32>
    %428 = arith.subf %426, %427 : vector<16x1xf32>
    %cst_254 = arith.constant 1.000000e+00 : f32
    %429 = vector.broadcast %cst_254 : f32 to vector<16x1xf32>
    %430 = arith.mulf %428, %429 : vector<16x1xf32>
    %431 = math.log1p %430 : vector<16x1xf32>
    %cst_255 = arith.constant 6.21660614 : f32
    %432 = vector.broadcast %cst_255 : f32 to vector<16x1xf32>
    %433 = arith.divf %431, %432 : vector<16x1xf32>
    %cst_256 = arith.constant 0.000000e+00 : f32
    %cst_257 = arith.constant 1.000000e+00 : f32
    %434 = vector.broadcast %cst_256 : f32 to vector<16x1xf32>
    %435 = arith.maximumf %434, %433 : vector<16x1xf32>
    %436 = vector.broadcast %cst_257 : f32 to vector<16x1xf32>
    %437 = arith.minimumf %436, %435 : vector<16x1xf32>
    %cst_258 = arith.constant 3.100000e+01 : f32
    %438 = vector.broadcast %cst_258 : f32 to vector<16x1xf32>
    %439 = arith.mulf %437, %438 : vector<16x1xf32>
    %440 = math.ceil %439 : vector<16x1xf32>
    %441 = arith.fptosi %440 : vector<16x1xf32> to vector<16x1xi32>
    %cst_259 = arith.constant 1.000000e+00 : f32
    %442 = vector.broadcast %cst_259 : f32 to vector<16x1xf32>
    %443 = arith.mulf %415, %442 : vector<16x1xf32>
    %cst_260 = arith.constant 0.000000e+00 : f32
    %cst_261 = arith.constant 1.000000e+00 : f32
    %444 = vector.broadcast %cst_260 : f32 to vector<16x1xf32>
    %445 = arith.maximumf %444, %443 : vector<16x1xf32>
    %446 = vector.broadcast %cst_261 : f32 to vector<16x1xf32>
    %447 = arith.minimumf %446, %445 : vector<16x1xf32>
    %cst_262 = arith.constant 3.100000e+01 : f32
    %448 = vector.broadcast %cst_262 : f32 to vector<16x1xf32>
    %449 = arith.mulf %447, %448 : vector<16x1xf32>
    %450 = math.ceil %449 : vector<16x1xf32>
    %451 = arith.fptosi %450 : vector<16x1xf32> to vector<16x1xi32>
    %c32_i32 = arith.constant 32 : i32
    %452 = vector.broadcast %c32_i32 : i32 to vector<16x1xi32>
    %453 = arith.addi %451, %452 : vector<16x1xi32>
    %454 = tpu.iota {dimensions = array<i32: 1>} : vector<16x64xi32>
    %455 = vector.broadcast %441 : vector<16x1xi32> to vector<16x64xi32>
    %456 = arith.cmpi eq, %454, %455 : vector<16x64xi32>
    %457 = vector.broadcast %453 : vector<16x1xi32> to vector<16x64xi32>
    %458 = arith.cmpi eq, %454, %457 : vector<16x64xi32>
    %459 = arith.ori %456, %458 : vector<16x64xi1>
    %460 = arith.extui %459 : vector<16x64xi1> to vector<16x64xi32>
    %461 = arith.sitofp %460 : vector<16x64xi32> to vector<16x64xf32>
    %c0_263 = arith.constant 0 : index
    %c0_264 = arith.constant 0 : index
    %462 = vector.load %arg13[%c0_263, %c0_264] : memref<64x32xf32, #tpu.memory_space<vmem>>, vector<64x32xf32>
    %cst_265 = arith.constant dense<0.000000e+00> : vector<16x32xf32>
    %463 = tpu.matmul %461, %462, %cst_265 {dimension_numbers = #tpu.dot_dimension_numbers<[1], [0], [0], [1], [0, 0, 1, 1], [], []>} : vector<16x64xf32>, vector<64x32xf32>, vector<16x32xf32> -> vector<16x32xf32>
    %cst_266 = arith.constant 2.000000e+00 : f32
    %464 = vector.broadcast %cst_266 : f32 to vector<16x32xf32>
    %465 = arith.mulf %464, %147 : vector<16x32xf32>
    %466 = arith.addf %465, %463 : vector<16x32xf32>
    %c0_267 = arith.constant 0 : index
    %c0_268 = arith.constant 0 : index
    %c0_269 = arith.constant 0 : index
    %467 = vector.load %arg14[%c0_267, %c0_268, %c0_269] : memref<1x16x32xf32, #tpu.memory_space<vmem>>, vector<1x16x32xf32>
    %468 = vector.shape_cast %467 : vector<1x16x32xf32> to vector<16x32xf32>
    %469 = vector.shape_cast %466 : vector<16x32xf32> to vector<1x16x32xf32>
    tpu.vector_store %arg14[%c0_267, %c0_268, %c0_269], %469 {strides = array<i32>} : memref<1x16x32xf32, #tpu.memory_space<vmem>>, vector<1x16x32xf32>,
    return
  }
  func.func @transform_0(%arg0: i32) -> (i32, i32, i32) {
    %c0_i32 = arith.constant 0 : i32
    %c0_i32_0 = arith.constant 0 : i32
    %c0_i32_1 = arith.constant 0 : i32
    return %arg0, %c0_i32, %c0_i32_0 : i32, i32, i32
  }
  func.func @transform_1(%arg0: i32) -> (i32, i32, i32) {
    %c0_i32 = arith.constant 0 : i32
    %c0_i32_0 = arith.constant 0 : i32
    %c0_i32_1 = arith.constant 0 : i32
    return %arg0, %c0_i32, %c0_i32_0 : i32, i32, i32
  }
  func.func @transform_2(%arg0: i32) -> (i32, i32, i32, i32) {
    %c0_i32 = arith.constant 0 : i32
    %c0_i32_0 = arith.constant 0 : i32
    %c0_i32_1 = arith.constant 0 : i32
    %c0_i32_2 = arith.constant 0 : i32
    %c0_i32_3 = arith.constant 0 : i32
    return %c0_i32, %c0_i32_0, %c0_i32_1, %c0_i32_2 : i32, i32, i32, i32
  }
  func.func @transform_3(%arg0: i32) -> (i32, i32, i32) {
    %c0_i32 = arith.constant 0 : i32
    %c0_i32_0 = arith.constant 0 : i32
    %c0_i32_1 = arith.constant 0 : i32
    %c0_i32_2 = arith.constant 0 : i32
    return %c0_i32, %c0_i32_0, %c0_i32_1 : i32, i32, i32
  }
  func.func @transform_4(%arg0: i32) -> (i32, i32, i32) {
    %c0_i32 = arith.constant 0 : i32
    %c0_i32_0 = arith.constant 0 : i32
    %c0_i32_1 = arith.constant 0 : i32
    %c0_i32_2 = arith.constant 0 : i32
    return %c0_i32, %c0_i32_0, %c0_i32_1 : i32, i32, i32
  }
  func.func @transform_5(%arg0: i32) -> (i32, i32, i32) {
    %c0_i32 = arith.constant 0 : i32
    %c0_i32_0 = arith.constant 0 : i32
    %c0_i32_1 = arith.constant 0 : i32
    %c0_i32_2 = arith.constant 0 : i32
    return %c0_i32, %c0_i32_0, %c0_i32_1 : i32, i32, i32
  }
  func.func @transform_6(%arg0: i32) -> (i32, i32, i32, i32) {
    %c0_i32 = arith.constant 0 : i32
    %c0_i32_0 = arith.constant 0 : i32
    %c0_i32_1 = arith.constant 0 : i32
    %c0_i32_2 = arith.constant 0 : i32
    %c0_i32_3 = arith.constant 0 : i32
    return %c0_i32, %c0_i32_0, %c0_i32_1, %c0_i32_2 : i32, i32, i32, i32
  }
  func.func @transform_7(%arg0: i32) -> (i32, i32, i32) {
    %c0_i32 = arith.constant 0 : i32
    %c0_i32_0 = arith.constant 0 : i32
    %c0_i32_1 = arith.constant 0 : i32
    %c0_i32_2 = arith.constant 0 : i32
    return %c0_i32, %c0_i32_0, %c0_i32_1 : i32, i32, i32
  }
  func.func @transform_8(%arg0: i32) -> (i32, i32, i32) {
    %c0_i32 = arith.constant 0 : i32
    %c0_i32_0 = arith.constant 0 : i32
    %c0_i32_1 = arith.constant 0 : i32
    %c0_i32_2 = arith.constant 0 : i32
    return %c0_i32, %c0_i32_0, %c0_i32_1 : i32, i32, i32
  }
  func.func @transform_9(%arg0: i32) -> (i32, i32, i32) {
    %c0_i32 = arith.constant 0 : i32
    %c0_i32_0 = arith.constant 0 : i32
    %c0_i32_1 = arith.constant 0 : i32
    %c0_i32_2 = arith.constant 0 : i32
    return %c0_i32, %c0_i32_0, %c0_i32_1 : i32, i32, i32
  }
  func.func @transform_10(%arg0: i32) -> (i32, i32, i32) {
    %c0_i32 = arith.constant 0 : i32
    %c0_i32_0 = arith.constant 0 : i32
    %c0_i32_1 = arith.constant 0 : i32
    %c0_i32_2 = arith.constant 0 : i32
    return %c0_i32, %c0_i32_0, %c0_i32_1 : i32, i32, i32
  }
  func.func @transform_11(%arg0: i32) -> (i32, i32, i32) {
    %c0_i32 = arith.constant 0 : i32
    %c0_i32_0 = arith.constant 0 : i32
    %c0_i32_1 = arith.constant 0 : i32
    %c0_i32_2 = arith.constant 0 : i32
    return %c0_i32, %c0_i32_0, %c0_i32_1 : i32, i32, i32
  }
  func.func @transform_12(%arg0: i32) -> (i32, i32) {
    %c0_i32 = arith.constant 0 : i32
    %c0_i32_0 = arith.constant 0 : i32
    %c0_i32_1 = arith.constant 0 : i32
    return %c0_i32, %c0_i32_0 : i32, i32
  }
  func.func @transform_13(%arg0: i32) -> (i32, i32, i32) {
    %c0_i32 = arith.constant 0 : i32
    %c0_i32_0 = arith.constant 0 : i32
    %c0_i32_1 = arith.constant 0 : i32
    return %arg0, %c0_i32, %c0_i32_0 : i32, i32, i32
  }
  func.func @transform_14(%arg0: i32) -> (i32, i32, i32) {
    %c0_i32 = arith.constant 0 : i32
    %c0_i32_0 = arith.constant 0 : i32
    %c0_i32_1 = arith.constant 0 : i32
    return %arg0, %c0_i32, %c0_i32_0 : i32, i32, i32
  }
  func.func @transform_15(%arg0: i32) -> (i32, i32, i32) {
    %c0_i32 = arith.constant 0 : i32
    %c0_i32_0 = arith.constant 0 : i32
    %c0_i32_1 = arith.constant 0 : i32
    return %arg0, %c0_i32, %c0_i32_0 : i32, i32, i32
  }
  func.func @transform_16(%arg0: i32) -> (i32, i32, i32) {
    %c0_i32 = arith.constant 0 : i32
    %c0_i32_0 = arith.constant 0 : i32
    %c0_i32_1 = arith.constant 0 : i32
    return %arg0, %c0_i32, %c0_i32_0 : i32, i32, i32
  }
}

</mosaic_0001>

<llo_original>
// kernel: tpu_custom_call.1
$region0: #{tpu_custom_call.1}
  #allocation0 [shape = 'u32[]', space=smem, size = 0x4, offset = 0x4, fixed_abs, tag = 'smem constant byte address 0x4 - core index']
  #allocation1 [shape = 'u32[144,128]{1,0:T(1,128)}', space=vmem, size = 0x12000, scoped, tag = 'internal scratch']
  %s0 = inlined_call_operand.hbm [shape: f32[2,8,32], index: 0, kind: input, shape index: {}]
  %s1 = inlined_call_operand.vmem [shape: s32[2,16,1], index: 1, kind: input, shape index: {}]
  %s2 = inlined_call_operand.hbm [shape: bf16[3,3,32,32], index: 2, kind: input, shape index: {}]
  %s3 = inlined_call_operand.vmem [shape: f32[3,1,32], index: 3, kind: input, shape index: {}]
  %s4 = inlined_call_operand.hbm [shape: f32[3,1,32], index: 4, kind: input, shape index: {}]
  %s5 = inlined_call_operand.hbm [shape: f32[3,1,32], index: 5, kind: input, shape index: {}]
  %s6 = inlined_call_operand.vmem [shape: bf16[3,3,32,32], index: 6, kind: input, shape index: {}]
  %s7 = inlined_call_operand.hbm [shape: f32[3,1,32], index: 7, kind: input, shape index: {}]
  %s8 = inlined_call_operand.hbm [shape: f32[3,1,32], index: 8, kind: input, shape index: {}]
  %s9 = inlined_call_operand.hbm [shape: f32[3,1,32], index: 9, kind: input, shape index: {}]
  %s10 = inlined_call_operand.hbm [shape: f32[3,1,32], index: 10, kind: input, shape index: {}]
  %s11 = inlined_call_operand.vmem [shape: f32[3,1,1], index: 11, kind: input, shape index: {}]
  %s12 = inlined_call_operand.vmem [shape: f32[64,32], index: 12, kind: input, shape index: {}]
  %s13 = inlined_call_operand.hbm [shape: f32[2,16,32], index: 13, kind: output, shape index: {0}]
  %s14 = inlined_call_operand.hbm [shape: f32[2,1,8], index: 14, kind: output, shape index: {1}]
  %s15 = inlined_call_operand.hbm [shape: f32[2,1,16], index: 15, kind: output, shape index: {2}]
  %s16 = inlined_call_operand.hbm [shape: f32[2,1,16], index: 16, kind: output, shape index: {3}]
  %17 = xla_tuple %s13, %s14, %s15, %s16
  %s18 = sld [smem:[#allocation0]]
  $region141: #{tpu_custom_call.1} parent=0
    _
  %s20 = ssub.s32 1, %s18
  %s21 = scalar_select 0, %s20, %s18
  $region1: #{tpu_custom_call.1} parent=0
    #allocation2 [shape = 'u8[8192]{0}', space=vmem, size = 0x2000, scoped, tag = 'input window, operand 0']
    #allocation3 [shape = 's32[2]{0}', space=sflag, size = 0x8, scoped, tag = 'scoped memory for tpu_custom_call.1']
    #allocation4 [shape = 's32[2]{0}', space=sflag, size = 0x8, scoped, tag = 'scoped memory for tpu_custom_call.1']
    #allocation5 [shape = 'u8[73728]{0}', space=vmem, size = 0x12000, scoped, tag = 'input window, operand 2, single buffered']
    #allocation6 [shape = 's32[1]{0}', space=sflag, size = 0x4, scoped, tag = 'scoped memory for tpu_custom_call.1']
    #allocation7 [shape = 'u8[1536]{0}', space=vmem, size = 0x800, scoped, tag = 'input window, operand 4, single buffered']
    #allocation8 [shape = 'u8[1536]{0}', space=vmem, size = 0x800, scoped, tag = 'input window, operand 5, single buffered']
    #allocation9 [shape = 's32[1]{0}', space=sflag, size = 0x4, scoped, tag = 'scoped memory for tpu_custom_call.1']
    #allocation10 [shape = 'u8[1536]{0}', space=vmem, size = 0x800, scoped, tag = 'input window, operand 7, single buffered']
    #allocation11 [shape = 'u8[1536]{0}', space=vmem, size = 0x800, scoped, tag = 'input window, operand 8, single buffered']
    #allocation12 [shape = 's32[1]{0}', space=sflag, size = 0x4, scoped, tag = 'scoped memory for tpu_custom_call.1']
    #allocation13 [shape = 'u8[1536]{0}', space=vmem, size = 0x800, scoped, tag = 'input window, operand 9, single buffered']
    #allocation14 [shape = 'u8[1536]{0}', space=vmem, size = 0x800, scoped, tag = 'input window, operand 10, single buffered']
    #allocation15 [shape = 's32[1]{0}', space=sflag, size = 0x4, scoped, tag = 'scoped memory for tpu_custom_call.1']
    #allocation16 [shape = 'u8[16384]{0}', space=vmem, size = 0x4000, scoped, tag = 'output window, operand 0']
    #allocation17 [shape = 'u8[1024]{0}', space=vmem, size = 0x400, scoped, tag = 'output window, operand 1']
    #allocation18 [shape = 's32[2]{0}', space=sflag, size = 0x8, scoped, tag = 'scoped memory for tpu_custom_call.1']
    #allocation19 [shape = 'u8[1024]{0}', space=vmem, size = 0x400, scoped, tag = 'output window, operand 2']
    #allocation20 [shape = 'u8[1024]{0}', space=vmem, size = 0x400, scoped, tag = 'output window, operand 3']
    #allocation21 [shape = 's32[2]{0}', space=sflag, size = 0x8, scoped, tag = 'scoped memory for tpu_custom_call.1']
    %22 = vsyncpa [#allocation3], 0
    %s23 = scalar_lea.sflag [#allocation3], 1
    %24 = vsyncpa %s23, 0
    %25 = vsyncpa [#allocation6], 0
    %26 = vsyncpa [#allocation9], 0
    %27 = vsyncpa [#allocation12], 0
    %28 = vsyncpa [#allocation15], 0
    %29 = vsyncpa [#allocation4], 0
    %s30 = scalar_lea.sflag [#allocation4], 1
    %31 = vsyncpa %s30, 0
    %32 = vsyncpa [#allocation18], 0
    %s33 = scalar_lea.sflag [#allocation18], 1
    %34 = vsyncpa %s33, 0
    %35 = vsyncpa [#allocation21], 0
    %s36 = scalar_lea.sflag [#allocation21], 1
    %37 = vsyncpa %s36, 0
    loop: start=0, step=1, limit=4
    $region2: #{tpu_custom_call.1} parent=1 // loop_pre_header
      _
    $region3: #{tpu_custom_call.1} parent=1 // loop_header
      %s39 = sphi 0, %s43
      %p40 = scmp.ge.s32.totalorder %s39, 4
      %s49 = sphi 0, %s51
      %s52 = sphi 0, %s49
      %s53 = sphi 0, %s52
      %s69 = sphi 0, %s53
      %s75 = sphi 0, %s77
      %s78 = sphi 0, %s75
      %s79 = sphi 0, %s78
      %s95 = sphi 0, %s79
      %s99 = sphi 0, %s99
      %s101 = sphi 0, %s99
      %s102 = sphi 0, %s101
      %s116 = sphi 0, %s102
      %s120 = sphi 0, %s120
      %s122 = sphi 0, %s120
      %s123 = sphi 0, %s122
      %s137 = sphi 0, %s123
      %s141 = sphi 0, %s141
      %s143 = sphi 0, %s141
      %s144 = sphi 0, %s143
      %s158 = sphi 0, %s144
      %s162 = sphi 0, %s162
      %s164 = sphi 0, %s162
      %s165 = sphi 0, %s164
      %s179 = sphi 0, %s165
      %s183 = sphi 0, %s183
      %s185 = sphi 0, %s183
      %s186 = sphi 0, %s185
      %s200 = sphi 0, %s186
      %s204 = sphi 0, %s204
      %s206 = sphi 0, %s204
      %s207 = sphi 0, %s206
      %s221 = sphi 0, %s207
      %s225 = sphi 0, %s225
      %s227 = sphi 0, %s225
      %s228 = sphi 0, %s227
      %s242 = sphi 0, %s228
      %s246 = sphi 0, %s246
      %s248 = sphi 0, %s246
      %s249 = sphi 0, %s248
      %s263 = sphi 0, %s249
      %s267 = sphi 0, %s267
      %s269 = sphi 0, %s267
      %s270 = sphi 0, %s269
      %s284 = sphi 0, %s270
      %s288 = sphi 0, %s288
      %s290 = sphi 0, %s288
      %s291 = sphi 0, %s290
      %s305 = sphi 0, %s291
      %s309 = sphi 0, %s309
      %s311 = sphi 0, %s309
      %s312 = sphi 0, %s311
      %s326 = sphi 0, %s312
      %s332 = sphi 0, %s334
      %s335 = sphi 0, %s332
      %s336 = sphi 0, %s335
      %s352 = sphi 0, %s336
      %s358 = sphi 0, %s360
      %s361 = sphi 0, %s358
      %s362 = sphi 0, %s361
      %s378 = sphi 0, %s362
      %s384 = sphi 0, %s386
      %s387 = sphi 0, %s384
      %s388 = sphi 0, %s387
      %s404 = sphi 0, %s388
      %s410 = sphi 0, %s412
      %s413 = sphi 0, %s410
      %s414 = sphi 0, %s413
      %s430 = sphi 0, %s414
    $region4: #{tpu_custom_call.1} parent=1 // loop_header_branch
      %42 = sbr.rel (%p40) target = $region8
    $region5: #{tpu_custom_call.1} parent=1 // loop_body
      %s44 = ssub.s32 %s39, 1
      %s45 = ssub.s32 %s39, 2
      %s46 = sadd.s32 %s39, 1
      %s47 = ssub.s32 %s39, %s46
      %p48 = scmp.eq.s32.totalorder %s47, 0
      %s50 = sadd.s32 %s49, 1
      %s51 = scalar_select %p48, %s49, %s50
      %p54 = pneg %p48
      %p55 = scmp.eq.s32.totalorder %s39, 1
      %p56 = por %p54, %p55
      %p57 = scmp.ne.s32.totalorder %s49, %s52
      %p58 = scmp.eq.s32.totalorder %s39, 0
      %p59 = por %p57, %p58
      %p60 = scmp.ne.s32.totalorder %s49, %s52
      %p61 = scmp.eq.s32.totalorder %s44, 1
      %p62 = por %p60, %p61
      %p63 = scmp.ne.s32.totalorder %s52, %s53
      %p64 = scmp.eq.s32.totalorder %s44, 0
      %p65 = por %p63, %p64
      %p66 = scmp.ne.s32.totalorder %s52, %s53
      %p67 = scmp.eq.s32.totalorder %s45, 1
      %p68 = por %p66, %p67
      %p70 = scmp.ne.s32.totalorder %s53, %s69
      %p71 = scmp.eq.s32.totalorder %s45, 0
      %p72 = por %p70, %p71
      %s73 = ssub.s32 %s39, %s46
      %p74 = scmp.eq.s32.totalorder %s73, 0
      %s76 = sadd.s32 %s75, 1
      %s77 = scalar_select %p74, %s75, %s76
      %p80 = pneg %p74
      %p81 = scmp.eq.s32.totalorder %s39, 1
      %p82 = por %p80, %p81
      %p83 = scmp.ne.s32.totalorder %s75, %s78
      %p84 = scmp.eq.s32.totalorder %s39, 0
      %p85 = por %p83, %p84
      %p86 = scmp.ne.s32.totalorder %s75, %s78
      %p87 = scmp.eq.s32.totalorder %s44, 1
      %p88 = por %p86, %p87
      %p89 = scmp.ne.s32.totalorder %s78, %s79
      %p90 = scmp.eq.s32.totalorder %s44, 0
      %p91 = por %p89, %p90
      %p92 = scmp.ne.s32.totalorder %s78, %s79
      %p93 = scmp.eq.s32.totalorder %s45, 1
      %p94 = por %p92, %p93
      %p96 = scmp.ne.s32.totalorder %s79, %s95
      %p97 = scmp.eq.s32.totalorder %s45, 0
      %p98 = por %p96, %p97
      %s100 = sadd.s32 %s99, 1
      %p103 = scmp.eq.s32.totalorder %s39, 1
      %p104 = scmp.ne.s32.totalorder %s99, %s101
      %p105 = scmp.eq.s32.totalorder %s39, 0
      %p106 = por %p104, %p105
      %p107 = scmp.ne.s32.totalorder %s99, %s101
      %p108 = scmp.eq.s32.totalorder %s44, 1
      %p109 = por %p107, %p108
      %p110 = scmp.ne.s32.totalorder %s101, %s102
      %p111 = scmp.eq.s32.totalorder %s44, 0
      %p112 = por %p110, %p111
      %p113 = scmp.ne.s32.totalorder %s101, %s102
      %p114 = scmp.eq.s32.totalorder %s45, 1
      %p115 = por %p113, %p114
      %p117 = scmp.ne.s32.totalorder %s102, %s116
      %p118 = scmp.eq.s32.totalorder %s45, 0
      %p119 = por %p117, %p118
      %s121 = sadd.s32 %s120, 1
      %p124 = scmp.eq.s32.totalorder %s39, 1
      %p125 = scmp.ne.s32.totalorder %s120, %s122
      %p126 = scmp.eq.s32.totalorder %s39, 0
      %p127 = por %p125, %p126
      %p128 = scmp.ne.s32.totalorder %s120, %s122
      %p129 = scmp.eq.s32.totalorder %s44, 1
      %p130 = por %p128, %p129
      %p131 = scmp.ne.s32.totalorder %s122, %s123
      %p132 = scmp.eq.s32.totalorder %s44, 0
      %p133 = por %p131, %p132
      %p134 = scmp.ne.s32.totalorder %s122, %s123
      %p135 = scmp.eq.s32.totalorder %s45, 1
      %p136 = por %p134, %p135
      %p138 = scmp.ne.s32.totalorder %s123, %s137
      %p139 = scmp.eq.s32.totalorder %s45, 0
      %p140 = por %p138, %p139
      %s142 = sadd.s32 %s141, 1
      %p145 = scmp.eq.s32.totalorder %s39, 1
      %p146 = scmp.ne.s32.totalorder %s141, %s143
      %p147 = scmp.eq.s32.totalorder %s39, 0
      %p148 = por %p146, %p147
      %p149 = scmp.ne.s32.totalorder %s141, %s143
      %p150 = scmp.eq.s32.totalorder %s44, 1
      %p151 = por %p149, %p150
      %p152 = scmp.ne.s32.totalorder %s143, %s144
      %p153 = scmp.eq.s32.totalorder %s44, 0
      %p154 = por %p152, %p153
      %p155 = scmp.ne.s32.totalorder %s143, %s144
      %p156 = scmp.eq.s32.totalorder %s45, 1
      %p157 = por %p155, %p156
      %p159 = scmp.ne.s32.totalorder %s144, %s158
      %p160 = scmp.eq.s32.totalorder %s45, 0
      %p161 = por %p159, %p160
      %s163 = sadd.s32 %s162, 1
      %p166 = scmp.eq.s32.totalorder %s39, 1
      %p167 = scmp.ne.s32.totalorder %s162, %s164
      %p168 = scmp.eq.s32.totalorder %s39, 0
      %p169 = por %p167, %p168
      %p170 = scmp.ne.s32.totalorder %s162, %s164
      %p171 = scmp.eq.s32.totalorder %s44, 1
      %p172 = por %p170, %p171
      %p173 = scmp.ne.s32.totalorder %s164, %s165
      %p174 = scmp.eq.s32.totalorder %s44, 0
      %p175 = por %p173, %p174
      %p176 = scmp.ne.s32.totalorder %s164, %s165
      %p177 = scmp.eq.s32.totalorder %s45, 1
      %p178 = por %p176, %p177
      %p180 = scmp.ne.s32.totalorder %s165, %s179
      %p181 = scmp.eq.s32.totalorder %s45, 0
      %p182 = por %p180, %p181
      %s184 = sadd.s32 %s183, 1
      %p187 = scmp.eq.s32.totalorder %s39, 1
      %p188 = scmp.ne.s32.totalorder %s183, %s185
      %p189 = scmp.eq.s32.totalorder %s39, 0
      %p190 = por %p188, %p189
      %p191 = scmp.ne.s32.totalorder %s183, %s185
      %p192 = scmp.eq.s32.totalorder %s44, 1
      %p193 = por %p191, %p192
      %p194 = scmp.ne.s32.totalorder %s185, %s186
      %p195 = scmp.eq.s32.totalorder %s44, 0
      %p196 = por %p194, %p195
      %p197 = scmp.ne.s32.totalorder %s185, %s186
      %p198 = scmp.eq.s32.totalorder %s45, 1
      %p199 = por %p197, %p198
      %p201 = scmp.ne.s32.totalorder %s186, %s200
      %p202 = scmp.eq.s32.totalorder %s45, 0
      %p203 = por %p201, %p202
      %s205 = sadd.s32 %s204, 1
      %p208 = scmp.eq.s32.totalorder %s39, 1
      %p209 = scmp.ne.s32.totalorder %s204, %s206
      %p210 = scmp.eq.s32.totalorder %s39, 0
      %p211 = por %p209, %p210
      %p212 = scmp.ne.s32.totalorder %s204, %s206
      %p213 = scmp.eq.s32.totalorder %s44, 1
      %p214 = por %p212, %p213
      %p215 = scmp.ne.s32.totalorder %s206, %s207
      %p216 = scmp.eq.s32.totalorder %s44, 0
      %p217 = por %p215, %p216
      %p218 = scmp.ne.s32.totalorder %s206, %s207
      %p219 = scmp.eq.s32.totalorder %s45, 1
      %p220 = por %p218, %p219
      %p222 = scmp.ne.s32.totalorder %s207, %s221
      %p223 = scmp.eq.s32.totalorder %s45, 0
      %p224 = por %p222, %p223
      %s226 = sadd.s32 %s225, 1
      %p229 = scmp.eq.s32.totalorder %s39, 1
      %p230 = scmp.ne.s32.totalorder %s225, %s227
      %p231 = scmp.eq.s32.totalorder %s39, 0
      %p232 = por %p230, %p231
      %p233 = scmp.ne.s32.totalorder %s225, %s227
      %p234 = scmp.eq.s32.totalorder %s44, 1
      %p235 = por %p233, %p234
      %p236 = scmp.ne.s32.totalorder %s227, %s228
      %p237 = scmp.eq.s32.totalorder %s44, 0
      %p238 = por %p236, %p237
      %p239 = scmp.ne.s32.totalorder %s227, %s228
      %p240 = scmp.eq.s32.totalorder %s45, 1
      %p241 = por %p239, %p240
      %p243 = scmp.ne.s32.totalorder %s228, %s242
      %p244 = scmp.eq.s32.totalorder %s45, 0
      %p245 = por %p243, %p244
      %s247 = sadd.s32 %s246, 1
      %p250 = scmp.eq.s32.totalorder %s39, 1
      %p251 = scmp.ne.s32.totalorder %s246, %s248
      %p252 = scmp.eq.s32.totalorder %s39, 0
      %p253 = por %p251, %p252
      %p254 = scmp.ne.s32.totalorder %s246, %s248
      %p255 = scmp.eq.s32.totalorder %s44, 1
      %p256 = por %p254, %p255
      %p257 = scmp.ne.s32.totalorder %s248, %s249
      %p258 = scmp.eq.s32.totalorder %s44, 0
      %p259 = por %p257, %p258
      %p260 = scmp.ne.s32.totalorder %s248, %s249
      %p261 = scmp.eq.s32.totalorder %s45, 1
      %p262 = por %p260, %p261
      %p264 = scmp.ne.s32.totalorder %s249, %s263
      %p265 = scmp.eq.s32.totalorder %s45, 0
      %p266 = por %p264, %p265
      %s268 = sadd.s32 %s267, 1
      %p271 = scmp.eq.s32.totalorder %s39, 1
      %p272 = scmp.ne.s32.totalorder %s267, %s269
      %p273 = scmp.eq.s32.totalorder %s39, 0
      %p274 = por %p272, %p273
      %p275 = scmp.ne.s32.totalorder %s267, %s269
      %p276 = scmp.eq.s32.totalorder %s44, 1
      %p277 = por %p275, %p276
      %p278 = scmp.ne.s32.totalorder %s269, %s270
      %p279 = scmp.eq.s32.totalorder %s44, 0
      %p280 = por %p278, %p279
      %p281 = scmp.ne.s32.totalorder %s269, %s270
      %p282 = scmp.eq.s32.totalorder %s45, 1
      %p283 = por %p281, %p282
      %p285 = scmp.ne.s32.totalorder %s270, %s284
      %p286 = scmp.eq.s32.totalorder %s45, 0
      %p287 = por %p285, %p286
      %s289 = sadd.s32 %s288, 1
      %p292 = scmp.eq.s32.totalorder %s39, 1
      %p293 = scmp.ne.s32.totalorder %s288, %s290
      %p294 = scmp.eq.s32.totalorder %s39, 0
      %p295 = por %p293, %p294
      %p296 = scmp.ne.s32.totalorder %s288, %s290
      %p297 = scmp.eq.s32.totalorder %s44, 1
      %p298 = por %p296, %p297
      %p299 = scmp.ne.s32.totalorder %s290, %s291
      %p300 = scmp.eq.s32.totalorder %s44, 0
      %p301 = por %p299, %p300
      %p302 = scmp.ne.s32.totalorder %s290, %s291
      %p303 = scmp.eq.s32.totalorder %s45, 1
      %p304 = por %p302, %p303
      %p306 = scmp.ne.s32.totalorder %s291, %s305
      %p307 = scmp.eq.s32.totalorder %s45, 0
      %p308 = por %p306, %p307
      %s310 = sadd.s32 %s309, 1
      %p313 = scmp.eq.s32.totalorder %s39, 1
      %p314 = scmp.ne.s32.totalorder %s309, %s311
      %p315 = scmp.eq.s32.totalorder %s39, 0
      %p316 = por %p314, %p315
      %p317 = scmp.ne.s32.totalorder %s309, %s311
      %p318 = scmp.eq.s32.totalorder %s44, 1
      %p319 = por %p317, %p318
      %p320 = scmp.ne.s32.totalorder %s311, %s312
      %p321 = scmp.eq.s32.totalorder %s44, 0
      %p322 = por %p320, %p321
      %p323 = scmp.ne.s32.totalorder %s311, %s312
      %p324 = scmp.eq.s32.totalorder %s45, 1
      %p325 = por %p323, %p324
      %p327 = scmp.ne.s32.totalorder %s312, %s326
      %p328 = scmp.eq.s32.totalorder %s45, 0
      %p329 = por %p327, %p328
      %s330 = ssub.s32 %s39, %s46
      %p331 = scmp.eq.s32.totalorder %s330, 0
      %s333 = sadd.s32 %s332, 1
      %s334 = scalar_select %p331, %s332, %s333
      %p337 = pneg %p331
      %p338 = scmp.eq.s32.totalorder %s39, 1
      %p339 = por %p337, %p338
      %p340 = scmp.ne.s32.totalorder %s332, %s335
      %p341 = scmp.eq.s32.totalorder %s39, 0
      %p342 = por %p340, %p341
      %p343 = scmp.ne.s32.totalorder %s332, %s335
      %p344 = scmp.eq.s32.totalorder %s44, 1
      %p345 = por %p343, %p344
      %p346 = scmp.ne.s32.totalorder %s335, %s336
      %p347 = scmp.eq.s32.totalorder %s44, 0
      %p348 = por %p346, %p347
      %p349 = scmp.ne.s32.totalorder %s335, %s336
      %p350 = scmp.eq.s32.totalorder %s45, 1
      %p351 = por %p349, %p350
      %p353 = scmp.ne.s32.totalorder %s336, %s352
      %p354 = scmp.eq.s32.totalorder %s45, 0
      %p355 = por %p353, %p354
      %s356 = ssub.s32 %s39, %s46
      %p357 = scmp.eq.s32.totalorder %s356, 0
      %s359 = sadd.s32 %s358, 1
      %s360 = scalar_select %p357, %s358, %s359
      %p363 = pneg %p357
      %p364 = scmp.eq.s32.totalorder %s39, 1
      %p365 = por %p363, %p364
      %p366 = scmp.ne.s32.totalorder %s358, %s361
      %p367 = scmp.eq.s32.totalorder %s39, 0
      %p368 = por %p366, %p367
      %p369 = scmp.ne.s32.totalorder %s358, %s361
      %p370 = scmp.eq.s32.totalorder %s44, 1
      %p371 = por %p369, %p370
      %p372 = scmp.ne.s32.totalorder %s361, %s362
      %p373 = scmp.eq.s32.totalorder %s44, 0
      %p374 = por %p372, %p373
      %p375 = scmp.ne.s32.totalorder %s361, %s362
      %p376 = scmp.eq.s32.totalorder %s45, 1
      %p377 = por %p375, %p376
      %p379 = scmp.ne.s32.totalorder %s362, %s378
      %p380 = scmp.eq.s32.totalorder %s45, 0
      %p381 = por %p379, %p380
      %s382 = ssub.s32 %s39, %s46
      %p383 = scmp.eq.s32.totalorder %s382, 0
      %s385 = sadd.s32 %s384, 1
      %s386 = scalar_select %p383, %s384, %s385
      %p389 = pneg %p383
      %p390 = scmp.eq.s32.totalorder %s39, 1
      %p391 = por %p389, %p390
      %p392 = scmp.ne.s32.totalorder %s384, %s387
      %p393 = scmp.eq.s32.totalorder %s39, 0
      %p394 = por %p392, %p393
      %p395 = scmp.ne.s32.totalorder %s384, %s387
      %p396 = scmp.eq.s32.totalorder %s44, 1
      %p397 = por %p395, %p396
      %p398 = scmp.ne.s32.totalorder %s387, %s388
      %p399 = scmp.eq.s32.totalorder %s44, 0
      %p400 = por %p398, %p399
      %p401 = scmp.ne.s32.totalorder %s387, %s388
      %p402 = scmp.eq.s32.totalorder %s45, 1
      %p403 = por %p401, %p402
      %p405 = scmp.ne.s32.totalorder %s388, %s404
      %p406 = scmp.eq.s32.totalorder %s45, 0
      %p407 = por %p405, %p406
      %s408 = ssub.s32 %s39, %s46
      %p409 = scmp.eq.s32.totalorder %s408, 0
      %s411 = sadd.s32 %s410, 1
      %s412 = scalar_select %p409, %s410, %s411
      %p415 = pneg %p409
      %p416 = scmp.eq.s32.totalorder %s39, 1
      %p417 = por %p415, %p416
      %p418 = scmp.ne.s32.totalorder %s410, %s413
      %p419 = scmp.eq.s32.totalorder %s39, 0
      %p420 = por %p418, %p419
      %p421 = scmp.ne.s32.totalorder %s410, %s413
      %p422 = scmp.eq.s32.totalorder %s44, 1
      %p423 = por %p421, %p422
      %p424 = scmp.ne.s32.totalorder %s413, %s414
      %p425 = scmp.eq.s32.totalorder %s44, 0
      %p426 = por %p424, %p425
      %p427 = scmp.ne.s32.totalorder %s413, %s414
      %p428 = scmp.eq.s32.totalorder %s45, 1
      %p429 = por %p427, %p428
      %p431 = scmp.ne.s32.totalorder %s414, %s430
      %p432 = scmp.eq.s32.totalorder %s45, 0
      %p433 = por %p431, %p432
      %p434 = scmp.le.s32.totalorder 1, %s39
      %p435 = scmp.lt.s32.totalorder %s39, 3
      %p436 = pnand %p434, %p435
      %p437 = pneg %p436
      // Predicated region
      $region9: #{tpu_custom_call.1} parent=5 // pred_check
        _
      $region10: #{tpu_custom_call.1} parent=5 // pred_check_branch
        %439 = sbr.rel (%p436) target = $region12
      $region11: #{tpu_custom_call.1} parent=5 // pred_region
        %s440 = ssub.s32 %s39, 1
        // Predicated region
        $region13: #{tpu_custom_call.1} parent=11 // pred_check
          %p441 = pneg %p112
        $region14: #{tpu_custom_call.1} parent=11 // pred_check_branch
          %443 = sbr.rel (%p441) target = $region16
        $region15: #{tpu_custom_call.1} parent=11 // pred_region
          %s445 = ssub.s32 2304, 2304
          %446 = vsyncadd [#allocation6], %s445
          %s447 = sshll.u32 [#allocation5], 4
          %s448 = int_to_ptr.vmem [resolvable:$true] %s447
          %453 = dma.hbm_to_vmem [thread:$0]  %s2, 2304, %s448, [#allocation6], 64, 64, 4
        $region16: #{tpu_custom_call.1} parent=11 // pred_fallthru
          _
        // Predicated region
        $region17: #{tpu_custom_call.1} parent=11 // pred_check
          %p454 = pneg %p133
        $region18: #{tpu_custom_call.1} parent=11 // pred_check_branch
          %456 = sbr.rel (%p454) target = $region20
        $region19: #{tpu_custom_call.1} parent=11 // pred_region
          _
        $region20: #{tpu_custom_call.1} parent=11 // pred_fallthru
          _
        // Predicated region
        $region21: #{tpu_custom_call.1} parent=11 // pred_check
          %p457 = pneg %p154
        $region22: #{tpu_custom_call.1} parent=11 // pred_check_branch
          %459 = sbr.rel (%p457) target = $region24
        $region23: #{tpu_custom_call.1} parent=11 // pred_region
          %s461 = ssub.s32 48, 48
          %462 = vsyncadd [#allocation6], %s461
          %s463 = sshll.u32 [#allocation7], 4
          %s464 = int_to_ptr.vmem [resolvable:$true] %s463
          %469 = dma.hbm_to_vmem [thread:$0]  %s4, 48, %s464, [#allocation6], 16, 16, 1
        $region24: #{tpu_custom_call.1} parent=11 // pred_fallthru
          _
        // Predicated region
        $region25: #{tpu_custom_call.1} parent=11 // pred_check
          %p470 = pneg %p175
        $region26: #{tpu_custom_call.1} parent=11 // pred_check_branch
          %472 = sbr.rel (%p470) target = $region28
        $region27: #{tpu_custom_call.1} parent=11 // pred_region
          %s474 = ssub.s32 48, 48
          %475 = vsyncadd [#allocation9], %s474
          %s476 = sshll.u32 [#allocation8], 4
          %s477 = int_to_ptr.vmem [resolvable:$true] %s476
          %482 = dma.hbm_to_vmem [thread:$0]  %s5, 48, %s477, [#allocation9], 16, 16, 1
        $region28: #{tpu_custom_call.1} parent=11 // pred_fallthru
          _
        // Predicated region
        $region29: #{tpu_custom_call.1} parent=11 // pred_check
          %p483 = pneg %p196
        $region30: #{tpu_custom_call.1} parent=11 // pred_check_branch
          %485 = sbr.rel (%p483) target = $region32
        $region31: #{tpu_custom_call.1} parent=11 // pred_region
          _
        $region32: #{tpu_custom_call.1} parent=11 // pred_fallthru
          _
        // Predicated region
        $region33: #{tpu_custom_call.1} parent=11 // pred_check
          %p486 = pneg %p217
        $region34: #{tpu_custom_call.1} parent=11 // pred_check_branch
          %488 = sbr.rel (%p486) target = $region36
        $region35: #{tpu_custom_call.1} parent=11 // pred_region
          %s490 = ssub.s32 48, 48
          %491 = vsyncadd [#allocation9], %s490
          %s492 = sshll.u32 [#allocation10], 4
          %s493 = int_to_ptr.vmem [resolvable:$true] %s492
          %498 = dma.hbm_to_vmem [thread:$0]  %s7, 48, %s493, [#allocation9], 16, 16, 1
        $region36: #{tpu_custom_call.1} parent=11 // pred_fallthru
          _
        // Predicated region
        $region37: #{tpu_custom_call.1} parent=11 // pred_check
          %p499 = pneg %p238
        $region38: #{tpu_custom_call.1} parent=11 // pred_check_branch
          %501 = sbr.rel (%p499) target = $region40
        $region39: #{tpu_custom_call.1} parent=11 // pred_region
          %s503 = ssub.s32 48, 48
          %504 = vsyncadd [#allocation12], %s503
          %s505 = sshll.u32 [#allocation11], 4
          %s506 = int_to_ptr.vmem [resolvable:$true] %s505
          %511 = dma.hbm_to_vmem [thread:$0]  %s8, 48, %s506, [#allocation12], 16, 16, 1
        $region40: #{tpu_custom_call.1} parent=11 // pred_fallthru
          _
        // Predicated region
        $region41: #{tpu_custom_call.1} parent=11 // pred_check
          %p512 = pneg %p259
        $region42: #{tpu_custom_call.1} parent=11 // pred_check_branch
          %514 = sbr.rel (%p512) target = $region44
        $region43: #{tpu_custom_call.1} parent=11 // pred_region
          %s516 = ssub.s32 48, 48
          %517 = vsyncadd [#allocation12], %s516
          %s518 = sshll.u32 [#allocation13], 4
          %s519 = int_to_ptr.vmem [resolvable:$true] %s518
          %524 = dma.hbm_to_vmem [thread:$0]  %s9, 48, %s519, [#allocation12], 16, 16, 1
        $region44: #{tpu_custom_call.1} parent=11 // pred_fallthru
          _
        // Predicated region
        $region45: #{tpu_custom_call.1} parent=11 // pred_check
          %p525 = pneg %p280
        $region46: #{tpu_custom_call.1} parent=11 // pred_check_branch
          %527 = sbr.rel (%p525) target = $region48
        $region47: #{tpu_custom_call.1} parent=11 // pred_region
          %s529 = ssub.s32 48, 48
          %530 = vsyncadd [#allocation15], %s529
          %s531 = sshll.u32 [#allocation14], 4
          %s532 = int_to_ptr.vmem [resolvable:$true] %s531
          %537 = dma.hbm_to_vmem [thread:$0]  %s10, 48, %s532, [#allocation15], 16, 16, 1
        $region48: #{tpu_custom_call.1} parent=11 // pred_fallthru
          _
        // Predicated region
        $region49: #{tpu_custom_call.1} parent=11 // pred_check
          %p538 = pneg %p301
        $region50: #{tpu_custom_call.1} parent=11 // pred_check_branch
          %540 = sbr.rel (%p538) target = $region52
        $region51: #{tpu_custom_call.1} parent=11 // pred_region
          _
        $region52: #{tpu_custom_call.1} parent=11 // pred_fallthru
          _
        // Predicated region
        $region53: #{tpu_custom_call.1} parent=11 // pred_check
          %p541 = pneg %p322
        $region54: #{tpu_custom_call.1} parent=11 // pred_check_branch
          %543 = sbr.rel (%p541) target = $region56
        $region55: #{tpu_custom_call.1} parent=11 // pred_region
          _
        $region56: #{tpu_custom_call.1} parent=11 // pred_fallthru
          _
      $region12: #{tpu_custom_call.1} parent=5 // pred_fallthru
        _
      %p544 = scmp.lt.s32.totalorder %s39, 2
      // Predicated region
      $region57: #{tpu_custom_call.1} parent=5 // pred_check
        %p545 = pneg %p544
      $region58: #{tpu_custom_call.1} parent=5 // pred_check_branch
        %547 = sbr.rel (%p545) target = $region60
      $region59: #{tpu_custom_call.1} parent=5 // pred_region
        // Predicated region
        $region61: #{tpu_custom_call.1} parent=59 // pred_check
          %p548 = pneg %p59
        $region62: #{tpu_custom_call.1} parent=59 // pred_check_branch
          %550 = sbr.rel (%p548) target = $region64
        $region63: #{tpu_custom_call.1} parent=59 // pred_region
          %s551 = sand.u32 %s49, 1
          %s552 = scalar_lea.sflag [#allocation3], %s551
          %s553 = sand.u32 %s49, 1
          %s554 = smul.addr %s553, 8
          %s555 = scalar_lea.vmem [#allocation2], %s554
          %s557 = ssub.s32 128, 128
          %558 = vsyncadd %s552, %s557
          %s559 = smul.addr %s39, 128
          %s560 = scalar_lea.hbm %s0, %s559
          %s562 = sshll.u32 %s555, 4
          %s563 = int_to_ptr.vmem [resolvable:$true] %s562
          %565 = dma.hbm_to_vmem [thread:$0]  %s560, 128, %s563, %s552
        $region64: #{tpu_custom_call.1} parent=59 // pred_fallthru
          _
        // Predicated region
        $region65: #{tpu_custom_call.1} parent=59 // pred_check
          %p566 = pneg %p85
        $region66: #{tpu_custom_call.1} parent=59 // pred_check_branch
          %568 = sbr.rel (%p566) target = $region68
        $region67: #{tpu_custom_call.1} parent=59 // pred_region
          %p569 = scmp.lt.s32.totalorder %s39, 1
          %s570 = scalar_select %p569, %s39, 1
          %s571 = smul.addr %s570, 2
          %s572 = smul.addr %s571, 8
          %s573 = scalar_lea.vmem %s1, %s572
        $region68: #{tpu_custom_call.1} parent=59 // pred_fallthru
          _
      $region60: #{tpu_custom_call.1} parent=5 // pred_fallthru
        _
      %p574 = scmp.le.s32.totalorder 1, %s39
      %p575 = scmp.lt.s32.totalorder %s39, 3
      %p576 = pnand %p574, %p575
      %p577 = pneg %p576
      // Predicated region
      $region69: #{tpu_custom_call.1} parent=5 // pred_check
        _
      $region70: #{tpu_custom_call.1} parent=5 // pred_check_branch
        %579 = sbr.rel (%p576) target = $region72
      $region71: #{tpu_custom_call.1} parent=5 // pred_region
        %s580 = ssub.s32 %s39, 1
        %s581 = sand.u32 %s52, 1
        %s582 = scalar_lea.sflag [#allocation3], %s581
        %s583 = sand.u32 %s52, 1
        %s584 = smul.addr %s583, 8
        %s585 = scalar_lea.vmem [#allocation2], %s584
        // Predicated region
        $region73: #{tpu_custom_call.1} parent=71 // pred_check
          %p586 = pneg %p65
        $region74: #{tpu_custom_call.1} parent=71 // pred_check_branch
          %588 = sbr.rel (%p586) target = $region76
        $region75: #{tpu_custom_call.1} parent=71 // pred_region
          %589 = dma.done %s582, 128
        $region76: #{tpu_custom_call.1} parent=71 // pred_fallthru
          _
        // Predicated region
        $region77: #{tpu_custom_call.1} parent=71 // pred_check
          %p590 = pneg %p112
        $region78: #{tpu_custom_call.1} parent=71 // pred_check_branch
          %592 = sbr.rel (%p590) target = $region80
        $region79: #{tpu_custom_call.1} parent=71 // pred_region
          %593 = dma.done [#allocation6], 2304
        $region80: #{tpu_custom_call.1} parent=71 // pred_fallthru
          _
        // Predicated region
        $region81: #{tpu_custom_call.1} parent=71 // pred_check
          %p594 = pneg %p154
        $region82: #{tpu_custom_call.1} parent=71 // pred_check_branch
          %596 = sbr.rel (%p594) target = $region84
        $region83: #{tpu_custom_call.1} parent=71 // pred_region
          %597 = dma.done [#allocation6], 48
        $region84: #{tpu_custom_call.1} parent=71 // pred_fallthru
          _
        // Predicated region
        $region85: #{tpu_custom_call.1} parent=71 // pred_check
          %p598 = pneg %p175
        $region86: #{tpu_custom_call.1} parent=71 // pred_check_branch
          %600 = sbr.rel (%p598) target = $region88
        $region87: #{tpu_custom_call.1} parent=71 // pred_region
          %601 = dma.done [#allocation9], 48
        $region88: #{tpu_custom_call.1} parent=71 // pred_fallthru
          _
        // Predicated region
        $region89: #{tpu_custom_call.1} parent=71 // pred_check
          %p602 = pneg %p217
        $region90: #{tpu_custom_call.1} parent=71 // pred_check_branch
          %604 = sbr.rel (%p602) target = $region92
        $region91: #{tpu_custom_call.1} parent=71 // pred_region
          %605 = dma.done [#allocation9], 48
        $region92: #{tpu_custom_call.1} parent=71 // pred_fallthru
          _
        // Predicated region
        $region93: #{tpu_custom_call.1} parent=71 // pred_check
          %p606 = pneg %p238
        $region94: #{tpu_custom_call.1} parent=71 // pred_check_branch
          %608 = sbr.rel (%p606) target = $region96
        $region95: #{tpu_custom_call.1} parent=71 // pred_region
          %609 = dma.done [#allocation12], 48
        $region96: #{tpu_custom_call.1} parent=71 // pred_fallthru
          _
        // Predicated region
        $region97: #{tpu_custom_call.1} parent=71 // pred_check
          %p610 = pneg %p259
        $region98: #{tpu_custom_call.1} parent=71 // pred_check_branch
          %612 = sbr.rel (%p610) target = $region100
        $region99: #{tpu_custom_call.1} parent=71 // pred_region
          %613 = dma.done [#allocation12], 48
        $region100: #{tpu_custom_call.1} parent=71 // pred_fallthru
          _
        // Predicated region
        $region101: #{tpu_custom_call.1} parent=71 // pred_check
          %p614 = pneg %p280
        $region102: #{tpu_custom_call.1} parent=71 // pred_check_branch
          %616 = sbr.rel (%p614) target = $region104
        $region103: #{tpu_custom_call.1} parent=71 // pred_region
          %617 = dma.done [#allocation15], 48
        $region104: #{tpu_custom_call.1} parent=71 // pred_fallthru
          _
        %s618 = sand.u32 %s52, 1
        %s619 = scalar_lea.sflag [#allocation3], %s618
        %s620 = sand.u32 %s52, 1
        %s621 = smul.addr %s620, 8
        %s622 = scalar_lea.vmem [#allocation2], %s621
        %p623 = pneg %p65
        %p624 = pneg %p62
        %p625 = scmp.lt.s32.totalorder %s44, 1
        %s626 = scalar_select %p625, %s44, 1
        %s627 = smul.addr %s626, 2
        %s628 = smul.addr %s627, 8
        %s629 = scalar_lea.vmem %s1, %s628
        %p630 = pneg %p91
        %p631 = pneg %p88
        %p632 = pneg %p112
        %p633 = pneg %p109
        %p634 = pneg %p133
        %p635 = pneg %p130
        %p636 = pneg %p154
        %p637 = pneg %p151
        %p638 = pneg %p175
        %p639 = pneg %p172
        %p640 = pneg %p196
        %p641 = pneg %p193
        %p642 = pneg %p217
        %p643 = pneg %p214
        %p644 = pneg %p238
        %p645 = pneg %p235
        %p646 = pneg %p259
        %p647 = pneg %p256
        %p648 = pneg %p280
        %p649 = pneg %p277
        %p650 = pneg %p301
        %p651 = pneg %p298
        %p652 = pneg %p322
        %p653 = pneg %p319
        %p654 = pneg %p348
        %p655 = pneg %p345
        %s656 = sand.u32 %s335, 1
        %s657 = scalar_lea.sflag [#allocation4], %s656
        %s658 = sand.u32 %s335, 1
        %s659 = smul.addr %s658, 16
        %s660 = scalar_lea.vmem [#allocation16], %s659
        %p661 = pneg %p374
        %p662 = pneg %p371
        %s663 = sand.u32 %s44, 1
        %s664 = scalar_lea.sflag [#allocation18], %s663
        %s665 = sand.u32 %s361, 1
        %s666 = scalar_lea.vmem [#allocation17], %s665
        %p667 = pneg %p400
        %p668 = pneg %p397
        %s669 = sand.u32 %s44, 1
        %s670 = scalar_lea.sflag [#allocation18], %s669
        %s671 = sand.u32 %s387, 1
        %s672 = scalar_lea.vmem [#allocation19], %s671
        %p673 = pneg %p426
        %p674 = pneg %p423
        %s675 = sand.u32 %s413, 1
        %s676 = scalar_lea.sflag [#allocation21], %s675
        %s677 = sand.u32 %s413, 1
        %s678 = scalar_lea.vmem [#allocation20], %s677
        %p679 = scmp.lt.s32.totalorder %s44, 1
        %s680 = scalar_select %p679, %s44, 1
        %s681 = smul.addr %s680, 2
        %s682 = smul.addr %s681, 8
        %s683 = scalar_lea.vmem %s1, %s682
        %v685 = vld [vmem:[%s585] sm:$0xff]
        %v686 = vld [vmem:[%s683] sm:$0xff]
        %v687 = vld [vmem:[%s683 + $0x8] sm:$0xff]
        %v688 = vpack.c.bf16 %v685, %v685
        %v689 = vld [vmem:[#allocation5] sm:$0xf]
        %v690 = vld [vmem:[#allocation5 + $0x4] sm:$0xf]
        %v691 = vld [vmem:[#allocation5 + $0x8] sm:$0xf]
        %v692 = vld [vmem:[#allocation5 + $0xc] sm:$0xf]
        %v697 = vunpack.c.l.b16 %v689
        %v698 = vunpack.c.l.b16 %v690
        %v699 = vunpack.c.l.b16 %v691
        %v700 = vunpack.c.l.b16 %v692
        %v701 = vpack.c.b16 %v698, %v697
        %v702 = vpack.c.b16 %v700, %v699
        %vm705 = vcmask 261120
        %v707 = vsel %vm705, %v688, 0
        %709 = vmatprep.subr.bf16.mxu0 0
        %710 = vmatpush1.bf16.msra.mxu0 %v701
        %711 = vmatprep.subr.bf16.mxu0 0
        %712 = vmatpush1.bf16.msra.mxu0 %v702
        %713 = vmatprep.subr.bf16.mxu0 0
        %714 = vmatpush1.bf16.msra.mxu0 0
        %715 = vmatprep.subr.bf16.mxu0 0
        %716 = vmatpush1.bf16.msra.mxu0 0
        %717 = vmatprep.subr.bf16.mxu0 0
        %718 = vmatpush1.bf16.msra.mxu0 0
        %719 = vmatprep.subr.bf16.mxu0 0
        %720 = vmatpush1.bf16.msra.mxu0 0
        %721 = vmatprep.subr.bf16.mxu0 0
        %722 = vmatpush1.bf16.msra.mxu0 0
        %723 = vmatprep.subr.bf16.mxu0 0
        %724 = vmatpush1.bf16.msra.mxu0 0
        %725 = vmatprep.subr.bf16.mxu0 0
        %726 = vmatpush1.bf16.msra.mxu0 0
        %727 = vmatprep.subr.bf16.mxu0 0
        %728 = vmatpush1.bf16.msra.mxu0 0
        %729 = vmatprep.subr.bf16.mxu0 0
        %730 = vmatpush1.bf16.msra.mxu0 0
        %731 = vmatprep.subr.bf16.mxu0 0
        %732 = vmatpush1.bf16.msra.mxu0 0
        %733 = vmatprep.subr.bf16.mxu0 0
        %734 = vmatpush1.bf16.msra.mxu0 0
        %735 = vmatprep.subr.bf16.mxu0 0
        %736 = vmatpush1.bf16.msra.mxu0 0
        %737 = vmatprep.subr.bf16.mxu0 0
        %738 = vmatpush1.bf16.msra.mxu0 0
        %739 = vmatprep.subr.bf16.mxu0 0
        %740 = vmatpush1.bf16.msra.mxu0 0
        %741 = vmatprep.mubr.bf16.mxu0 0
        %742 = vmatmul.mubr.bf16.gmra.mrb[0].mxu0 %v707
        %v743 = vpop.f32.mrb[0].mxu0
        %v744 = vadd.f32 0.0, %v743
        %v745 = vpop.f32.mrb[0].mxu0
        %v746 = vpop.f32.mrb[0].mxu0
        %v747 = vpop.f32.mrb[0].mxu0
        %748 = vdwg.mxu0
        %v749 = vrot.slane %v744, 7
        %v750 = vlaneseq
        %v751 = vshrl.u32 %v750, 7
        %vm752 = vcmp.ge.s32.totalorder %v751, 1
        %v753 = vsel %vm752, 1, 0
        %vm754 = vcmp.eq.s32.totalorder %v753, 1
        %v755 = vsel %vm754, %v749, 0.0
        %v756 = vadd.f32 %v755, 0.0
        %s757 = scalar_lea.vmem [#allocation5], 16
        %v758 = vld [vmem:[%s757] sm:$0xf]
        %v759 = vld [vmem:[%s757 + $0x4] sm:$0xf]
        %v760 = vld [vmem:[%s757 + $0x8] sm:$0xf]
        %v761 = vld [vmem:[%s757 + $0xc] sm:$0xf]
        %v766 = vunpack.c.l.b16 %v758
        %v767 = vunpack.c.l.b16 %v759
        %v768 = vunpack.c.l.b16 %v760
        %v769 = vunpack.c.l.b16 %v761
        %v770 = vpack.c.b16 %v767, %v766
        %v771 = vpack.c.b16 %v769, %v768
        %774 = vmatprep.subr.bf16.mxu0 0
        %775 = vmatpush1.bf16.msra.mxu0 %v770
        %776 = vmatprep.subr.bf16.mxu0 0
        %777 = vmatpush1.bf16.msra.mxu0 %v771
        %778 = vmatprep.subr.bf16.mxu0 0
        %779 = vmatpush1.bf16.msra.mxu0 0
        %780 = vmatprep.subr.bf16.mxu0 0
        %781 = vmatpush1.bf16.msra.mxu0 0
        %782 = vmatprep.subr.bf16.mxu0 0
        %783 = vmatpush1.bf16.msra.mxu0 0
        %784 = vmatprep.subr.bf16.mxu0 0
        %785 = vmatpush1.bf16.msra.mxu0 0
        %786 = vmatprep.subr.bf16.mxu0 0
        %787 = vmatpush1.bf16.msra.mxu0 0
        %788 = vmatprep.subr.bf16.mxu0 0
        %789 = vmatpush1.bf16.msra.mxu0 0
        %790 = vmatprep.subr.bf16.mxu0 0
        %791 = vmatpush1.bf16.msra.mxu0 0
        %792 = vmatprep.subr.bf16.mxu0 0
        %793 = vmatpush1.bf16.msra.mxu0 0
        %794 = vmatprep.subr.bf16.mxu0 0
        %795 = vmatpush1.bf16.msra.mxu0 0
        %796 = vmatprep.subr.bf16.mxu0 0
        %797 = vmatpush1.bf16.msra.mxu0 0
        %798 = vmatprep.subr.bf16.mxu0 0
        %799 = vmatpush1.bf16.msra.mxu0 0
        %800 = vmatprep.subr.bf16.mxu0 0
        %801 = vmatpush1.bf16.msra.mxu0 0
        %802 = vmatprep.subr.bf16.mxu0 0
        %803 = vmatpush1.bf16.msra.mxu0 0
        %804 = vmatprep.subr.bf16.mxu0 0
        %805 = vmatpush1.bf16.msra.mxu0 0
        %806 = vmatprep.mubr.bf16.mxu0 0
        %807 = vmatmul.mubr.bf16.gmra.mrb[0].mxu0 %v707
        %v808 = vpop.f32.mrb[0].mxu0
        %v809 = vadd.f32 0.0, %v808
        %v810 = vpop.f32.mrb[0].mxu0
        %v811 = vpop.f32.mrb[0].mxu0
        %v812 = vpop.f32.mrb[0].mxu0
        %813 = vdwg.mxu0
        %v814 = vadd.f32 %v756, %v809
        %s815 = scalar_lea.vmem [#allocation5], 32
        %v816 = vld [vmem:[%s815] sm:$0xf]
        %v817 = vld [vmem:[%s815 + $0x4] sm:$0xf]
        %v818 = vld [vmem:[%s815 + $0x8] sm:$0xf]
        %v819 = vld [vmem:[%s815 + $0xc] sm:$0xf]
        %v824 = vunpack.c.l.b16 %v816
        %v825 = vunpack.c.l.b16 %v817
        %v826 = vunpack.c.l.b16 %v818
        %v827 = vunpack.c.l.b16 %v819
        %v828 = vpack.c.b16 %v825, %v824
        %v829 = vpack.c.b16 %v827, %v826
        %832 = vmatprep.subr.bf16.mxu0 0
        %833 = vmatpush1.bf16.msra.mxu0 %v828
        %834 = vmatprep.subr.bf16.mxu0 0
        %835 = vmatpush1.bf16.msra.mxu0 %v829
        %836 = vmatprep.subr.bf16.mxu0 0
        %837 = vmatpush1.bf16.msra.mxu0 0
        %838 = vmatprep.subr.bf16.mxu0 0
        %839 = vmatpush1.bf16.msra.mxu0 0
        %840 = vmatprep.subr.bf16.mxu0 0
        %841 = vmatpush1.bf16.msra.mxu0 0
        %842 = vmatprep.subr.bf16.mxu0 0
        %843 = vmatpush1.bf16.msra.mxu0 0
        %844 = vmatprep.subr.bf16.mxu0 0
        %845 = vmatpush1.bf16.msra.mxu0 0
        %846 = vmatprep.subr.bf16.mxu0 0
        %847 = vmatpush1.bf16.msra.mxu0 0
        %848 = vmatprep.subr.bf16.mxu0 0
        %849 = vmatpush1.bf16.msra.mxu0 0
        %850 = vmatprep.subr.bf16.mxu0 0
        %851 = vmatpush1.bf16.msra.mxu0 0
        %852 = vmatprep.subr.bf16.mxu0 0
        %853 = vmatpush1.bf16.msra.mxu0 0
        %854 = vmatprep.subr.bf16.mxu0 0
        %855 = vmatpush1.bf16.msra.mxu0 0
        %856 = vmatprep.subr.bf16.mxu0 0
        %857 = vmatpush1.bf16.msra.mxu0 0
        %858 = vmatprep.subr.bf16.mxu0 0
        %859 = vmatpush1.bf16.msra.mxu0 0
        %860 = vmatprep.subr.bf16.mxu0 0
        %861 = vmatpush1.bf16.msra.mxu0 0
        %862 = vmatprep.subr.bf16.mxu0 0
        %863 = vmatpush1.bf16.msra.mxu0 0
        %864 = vmatprep.mubr.bf16.mxu0 0
        %865 = vmatmul.mubr.bf16.gmra.mrb[0].mxu0 %v707
        %v866 = vpop.f32.mrb[0].mxu0
        %v867 = vadd.f32 0.0, %v866
        %v868 = vpop.f32.mrb[0].mxu0
        %v869 = vpop.f32.mrb[0].mxu0
        %v870 = vpop.f32.mrb[0].mxu0
        %871 = vdwg.mxu0
        %v872 = vrot.slane %v867, 1
        %vm873 = vcmp.lt.s32.totalorder %v751, 7
        %v874 = vsel %vm873, 1, 0
        %vm875 = vcmp.eq.s32.totalorder %v874, 1
        %v876 = vsel %vm875, %v872, 0.0
        %v877 = vadd.f32 %v814, %v876
        %v878 = vld [vmem:[%s3] sm:$0x1]
        %v880 = vlaneseq
        %v881 = vshrl.u32 %v880, 7
        %v882 = vsub.s32 0, %v881
        %v883 = vrot.slane %v878, %v882
        %v885 = vadd.f32 %v877, %v883
        %v886 = vmax.f32 %v885, 0.0
        %v887 = vsel %vm705, %v886, 0.0
        %888 = vadd.xlane.f32.xlu0 %v887
        %v889 = vpop.xlane.xlu0 %888
        %v890 = vrcp.pop 32.0
        %v891 = vmul.f32 %v889, %v890
        %v892 = vsub.f32 %v886, %v891
        %v893 = vmul.f32 %v892, %v892
        %v894 = vsel %vm705, %v893, 0.0
        %895 = vadd.xlane.f32.xlu0 %v894
        %v896 = vpop.xlane.xlu0 %895
        %v897 = vmul.f32 %v896, %v890
        %v898 = vadd.f32 %v897, 1e-05
        %v899 = vrsqrt.pop %v898
        %v900 = vmul.f32 %v892, %v899
        %v901 = vld [vmem:[#allocation7] sm:$0x1]
        %v903 = vlaneseq
        %v904 = vshrl.u32 %v903, 7
        %v905 = vsub.s32 0, %v904
        %v906 = vrot.slane %v901, %v905
        %v908 = vmul.f32 %v900, %v906
        %v909 = vld [vmem:[#allocation8] sm:$0x1]
        %v911 = vlaneseq
        %v912 = vshrl.u32 %v911, 7
        %v913 = vsub.s32 0, %v912
        %v914 = vrot.slane %v909, %v913
        %v916 = vadd.f32 %v908, %v914
        %v917 = vpack.c.bf16 %v916, %v916
        %v918 = vld [vmem:[%s6] sm:$0xf]
        %v919 = vld [vmem:[%s6 + $0x4] sm:$0xf]
        %v920 = vld [vmem:[%s6 + $0x8] sm:$0xf]
        %v921 = vld [vmem:[%s6 + $0xc] sm:$0xf]
        %v926 = vunpack.c.l.b16 %v918
        %v927 = vunpack.c.l.b16 %v919
        %v928 = vunpack.c.l.b16 %v920
        %v929 = vunpack.c.l.b16 %v921
        %v930 = vpack.c.b16 %v927, %v926
        %v931 = vpack.c.b16 %v929, %v928
        %v935 = vsel %vm705, %v917, 0
        %937 = vmatprep.subr.bf16.mxu0 0
        %938 = vmatpush1.bf16.msra.mxu0 %v930
        %939 = vmatprep.subr.bf16.mxu0 0
        %940 = vmatpush1.bf16.msra.mxu0 %v931
        %941 = vmatprep.subr.bf16.mxu0 0
        %942 = vmatpush1.bf16.msra.mxu0 0
        %943 = vmatprep.subr.bf16.mxu0 0
        %944 = vmatpush1.bf16.msra.mxu0 0
        %945 = vmatprep.subr.bf16.mxu0 0
        %946 = vmatpush1.bf16.msra.mxu0 0
        %947 = vmatprep.subr.bf16.mxu0 0
        %948 = vmatpush1.bf16.msra.mxu0 0
        %949 = vmatprep.subr.bf16.mxu0 0
        %950 = vmatpush1.bf16.msra.mxu0 0
        %951 = vmatprep.subr.bf16.mxu0 0
        %952 = vmatpush1.bf16.msra.mxu0 0
        %953 = vmatprep.subr.bf16.mxu0 0
        %954 = vmatpush1.bf16.msra.mxu0 0
        %955 = vmatprep.subr.bf16.mxu0 0
        %956 = vmatpush1.bf16.msra.mxu0 0
        %957 = vmatprep.subr.bf16.mxu0 0
        %958 = vmatpush1.bf16.msra.mxu0 0
        %959 = vmatprep.subr.bf16.mxu0 0
        %960 = vmatpush1.bf16.msra.mxu0 0
        %961 = vmatprep.subr.bf16.mxu0 0
        %962 = vmatpush1.bf16.msra.mxu0 0
        %963 = vmatprep.subr.bf16.mxu0 0
        %964 = vmatpush1.bf16.msra.mxu0 0
        %965 = vmatprep.subr.bf16.mxu0 0
        %966 = vmatpush1.bf16.msra.mxu0 0
        %967 = vmatprep.subr.bf16.mxu0 0
        %968 = vmatpush1.bf16.msra.mxu0 0
        %969 = vmatprep.mubr.bf16.mxu0 0
        %970 = vmatmul.mubr.bf16.gmra.mrb[0].mxu0 %v935
        %v971 = vpop.f32.mrb[0].mxu0
        %v972 = vadd.f32 0.0, %v971
        %v973 = vpop.f32.mrb[0].mxu0
        %v974 = vpop.f32.mrb[0].mxu0
        %v975 = vpop.f32.mrb[0].mxu0
        %976 = vdwg.mxu0
        %v977 = vrot.slane %v972, 7
        %v978 = vsel %vm754, %v977, 0.0
        %v979 = vadd.f32 %v978, 0.0
        %s980 = scalar_lea.vmem %s6, 16
        %v981 = vld [vmem:[%s980] sm:$0xf]
        %v982 = vld [vmem:[%s980 + $0x4] sm:$0xf]
        %v983 = vld [vmem:[%s980 + $0x8] sm:$0xf]
        %v984 = vld [vmem:[%s980 + $0xc] sm:$0xf]
        %v989 = vunpack.c.l.b16 %v981
        %v990 = vunpack.c.l.b16 %v982
        %v991 = vunpack.c.l.b16 %v983
        %v992 = vunpack.c.l.b16 %v984
        %v993 = vpack.c.b16 %v990, %v989
        %v994 = vpack.c.b16 %v992, %v991
        %997 = vmatprep.subr.bf16.mxu0 0
        %998 = vmatpush1.bf16.msra.mxu0 %v993
        %999 = vmatprep.subr.bf16.mxu0 0
        %1000 = vmatpush1.bf16.msra.mxu0 %v994
        %1001 = vmatprep.subr.bf16.mxu0 0
        %1002 = vmatpush1.bf16.msra.mxu0 0
        %1003 = vmatprep.subr.bf16.mxu0 0
        %1004 = vmatpush1.bf16.msra.mxu0 0
        %1005 = vmatprep.subr.bf16.mxu0 0
        %1006 = vmatpush1.bf16.msra.mxu0 0
        %1007 = vmatprep.subr.bf16.mxu0 0
        %1008 = vmatpush1.bf16.msra.mxu0 0
        %1009 = vmatprep.subr.bf16.mxu0 0
        %1010 = vmatpush1.bf16.msra.mxu0 0
        %1011 = vmatprep.subr.bf16.mxu0 0
        %1012 = vmatpush1.bf16.msra.mxu0 0
        %1013 = vmatprep.subr.bf16.mxu0 0
        %1014 = vmatpush1.bf16.msra.mxu0 0
        %1015 = vmatprep.subr.bf16.mxu0 0
        %1016 = vmatpush1.bf16.msra.mxu0 0
        %1017 = vmatprep.subr.bf16.mxu0 0
        %1018 = vmatpush1.bf16.msra.mxu0 0
        %1019 = vmatprep.subr.bf16.mxu0 0
        %1020 = vmatpush1.bf16.msra.mxu0 0
        %1021 = vmatprep.subr.bf16.mxu0 0
        %1022 = vmatpush1.bf16.msra.mxu0 0
        %1023 = vmatprep.subr.bf16.mxu0 0
        %1024 = vmatpush1.bf16.msra.mxu0 0
        %1025 = vmatprep.subr.bf16.mxu0 0
        %1026 = vmatpush1.bf16.msra.mxu0 0
        %1027 = vmatprep.subr.bf16.mxu0 0
        %1028 = vmatpush1.bf16.msra.mxu0 0
        %1029 = vmatprep.mubr.bf16.mxu0 0
        %1030 = vmatmul.mubr.bf16.gmra.mrb[0].mxu0 %v935
        %v1031 = vpop.f32.mrb[0].mxu0
        %v1032 = vadd.f32 0.0, %v1031
        %v1033 = vpop.f32.mrb[0].mxu0
        %v1034 = vpop.f32.mrb[0].mxu0
        %v1035 = vpop.f32.mrb[0].mxu0
        %1036 = vdwg.mxu0
        %v1037 = vadd.f32 %v979, %v1032
        %s1038 = scalar_lea.vmem %s6, 32
        %v1039 = vld [vmem:[%s1038] sm:$0xf]
        %v1040 = vld [vmem:[%s1038 + $0x4] sm:$0xf]
        %v1041 = vld [vmem:[%s1038 + $0x8] sm:$0xf]
        %v1042 = vld [vmem:[%s1038 + $0xc] sm:$0xf]
        %v1047 = vunpack.c.l.b16 %v1039
        %v1048 = vunpack.c.l.b16 %v1040
        %v1049 = vunpack.c.l.b16 %v1041
        %v1050 = vunpack.c.l.b16 %v1042
        %v1051 = vpack.c.b16 %v1048, %v1047
        %v1052 = vpack.c.b16 %v1050, %v1049
        %1055 = vmatprep.subr.bf16.mxu0 0
        %1056 = vmatpush1.bf16.msra.mxu0 %v1051
        %1057 = vmatprep.subr.bf16.mxu0 0
        %1058 = vmatpush1.bf16.msra.mxu0 %v1052
        %1059 = vmatprep.subr.bf16.mxu0 0
        %1060 = vmatpush1.bf16.msra.mxu0 0
        %1061 = vmatprep.subr.bf16.mxu0 0
        %1062 = vmatpush1.bf16.msra.mxu0 0
        %1063 = vmatprep.subr.bf16.mxu0 0
        %1064 = vmatpush1.bf16.msra.mxu0 0
        %1065 = vmatprep.subr.bf16.mxu0 0
        %1066 = vmatpush1.bf16.msra.mxu0 0
        %1067 = vmatprep.subr.bf16.mxu0 0
        %1068 = vmatpush1.bf16.msra.mxu0 0
        %1069 = vmatprep.subr.bf16.mxu0 0
        %1070 = vmatpush1.bf16.msra.mxu0 0
        %1071 = vmatprep.subr.bf16.mxu0 0
        %1072 = vmatpush1.bf16.msra.mxu0 0
        %1073 = vmatprep.subr.bf16.mxu0 0
        %1074 = vmatpush1.bf16.msra.mxu0 0
        %1075 = vmatprep.subr.bf16.mxu0 0
        %1076 = vmatpush1.bf16.msra.mxu0 0
        %1077 = vmatprep.subr.bf16.mxu0 0
        %1078 = vmatpush1.bf16.msra.mxu0 0
        %1079 = vmatprep.subr.bf16.mxu0 0
        %1080 = vmatpush1.bf16.msra.mxu0 0
        %1081 = vmatprep.subr.bf16.mxu0 0
        %1082 = vmatpush1.bf16.msra.mxu0 0
        %1083 = vmatprep.subr.bf16.mxu0 0
        %1084 = vmatpush1.bf16.msra.mxu0 0
        %1085 = vmatprep.subr.bf16.mxu0 0
        %1086 = vmatpush1.bf16.msra.mxu0 0
        %1087 = vmatprep.mubr.bf16.mxu0 0
        %1088 = vmatmul.mubr.bf16.gmra.mrb[0].mxu0 %v935
        %v1089 = vpop.f32.mrb[0].mxu0
        %v1090 = vadd.f32 0.0, %v1089
        %v1091 = vpop.f32.mrb[0].mxu0
        %v1092 = vpop.f32.mrb[0].mxu0
        %v1093 = vpop.f32.mrb[0].mxu0
        %1094 = vdwg.mxu0
        %v1095 = vrot.slane %v1090, 1
        %v1096 = vsel %vm875, %v1095, 0.0
        %v1097 = vadd.f32 %v1037, %v1096
        %v1098 = vld [vmem:[#allocation10] sm:$0x1]
        %v1100 = vlaneseq
        %v1101 = vshrl.u32 %v1100, 7
        %v1102 = vsub.s32 0, %v1101
        %v1103 = vrot.slane %v1098, %v1102
        %v1105 = vadd.f32 %v1097, %v1103
        %v1106 = vmax.f32 %v1105, 0.0
        %v1107 = vsel %vm705, %v1106, 0.0
        %1108 = vadd.xlane.f32.xlu0 %v1107
        %v1109 = vpop.xlane.xlu0 %1108
        %v1110 = vmul.f32 %v1109, %v890
        %v1111 = vsub.f32 %v1106, %v1110
        %v1112 = vmul.f32 %v1111, %v1111
        %v1113 = vsel %vm705, %v1112, 0.0
        %1114 = vadd.xlane.f32.xlu0 %v1113
        %v1115 = vpop.xlane.xlu0 %1114
        %v1116 = vmul.f32 %v1115, %v890
        %v1117 = vadd.f32 %v1116, 1e-05
        %v1118 = vrsqrt.pop %v1117
        %v1119 = vmul.f32 %v1111, %v1118
        %v1120 = vld [vmem:[#allocation11] sm:$0x1]
        %v1122 = vlaneseq
        %v1123 = vshrl.u32 %v1122, 7
        %v1124 = vsub.s32 0, %v1123
        %v1125 = vrot.slane %v1120, %v1124
        %v1127 = vmul.f32 %v1119, %v1125
        %v1128 = vld [vmem:[#allocation13] sm:$0x1]
        %v1130 = vlaneseq
        %v1131 = vshrl.u32 %v1130, 7
        %v1132 = vsub.s32 0, %v1131
        %v1133 = vrot.slane %v1128, %v1132
        %v1135 = vadd.f32 %v1127, %v1133
        %v1136 = vld [vmem:[#allocation14] sm:$0x1]
        %v1138 = vlaneseq
        %v1139 = vshrl.u32 %v1138, 7
        %v1140 = vsub.s32 0, %v1139
        %v1141 = vrot.slane %v1136, %v1140
        %v1143 = vmul.f32 %v1135, %v1141
        %v1144 = vsel %vm705, %v1143, 0.0
        %1145 = vadd.xlane.f32.xlu0 %v1144
        %v1146 = vpop.xlane.xlu0 %1145
        %v1147 = vld [vmem:[%s11] sm:$0x1]
        %v1149 = vlaneseq
        %v1150 = vshrl.u32 %v1149, 7
        %v1151 = vsub.s32 0, %v1150
        %v1152 = vrot.slane %v1147, %v1151
        %v1154 = vadd.f32 %v1146, %v1152
        %1155 = vxpose.xlu0.b32.start [1/16] %v1154, 128
        %1156 = vxpose.xlu0.b32.cont [2/16] 0.0, 128
        %1157 = vxpose.xlu0.b32.cont [3/16] 0.0, 128
        %1158 = vxpose.xlu0.b32.cont [4/16] 0.0, 128
        %1159 = vxpose.xlu0.b32.cont [5/16] 0.0, 128
        %1160 = vxpose.xlu0.b32.cont [6/16] 0.0, 128
        %1161 = vxpose.xlu0.b32.cont [7/16] 0.0, 128
        %1162 = vxpose.xlu0.b32.cont [8/16] 0.0, 128
        %1163 = vxpose.xlu0.b32.cont [9/16] 0.0, 128
        %1164 = vxpose.xlu0.b32.cont [10/16] 0.0, 128
        %1165 = vxpose.xlu0.b32.cont [11/16] 0.0, 128
        %1166 = vxpose.xlu0.b32.cont [12/16] 0.0, 128
        %1167 = vxpose.xlu0.b32.cont [13/16] 0.0, 128
        %1168 = vxpose.xlu0.b32.cont [14/16] 0.0, 128
        %1169 = vxpose.xlu0.b32.cont [15/16] 0.0, 128
        %1170 = vxpose.xlu0.b32.end [16/16] 0.0, 128
        %v1171 = vpop.trf.xlu0
        %v1172 = vpop.trf.xlu0
        %v1173 = vpop.trf.xlu0
        %v1174 = vpop.trf.xlu0
        %v1175 = vpop.trf.xlu0
        %v1176 = vpop.trf.xlu0
        %v1177 = vpop.trf.xlu0
        %v1178 = vpop.trf.xlu0
        %v1179 = vpop.trf.xlu0
        %v1180 = vpop.trf.xlu0
        %v1181 = vpop.trf.xlu0
        %v1182 = vpop.trf.xlu0
        %v1183 = vpop.trf.xlu0
        %v1184 = vpop.trf.xlu0
        %v1185 = vpop.trf.xlu0
        %v1186 = vpop.trf.xlu0
        %vm1187 = vcmask 57344
        %1188 = vst.msk [vmem:[%s666] sm:$0x1] %vm1187, %v1171
        %v1189 = vlaneseq
        %v1190 = vand.u32 %v1189, 127
        %1191 = vset.pattern.permute.xlu0 0
        %1192 = vperm.xlu0 %1191, %v686
        %v1193 = vpop.permute.xlu0 %1192
        %1194 = vset.pattern.permute.xlu0 0
        %1195 = vperm.xlu0 %1194, %v687
        %v1196 = vpop.permute.xlu0 %1195
        %vm1197 = vcmp.eq.s32.totalorder %v1190, %v1193
        %vm1198 = vcmp.eq.s32.totalorder %v1190, %v1196
        %v1199 = vsel %vm1197, 1, 0
        %v1200 = vsel %vm1198, 1, 0
        %v1201 = vcvt.s32.f32 %v1199
        %v1202 = vcvt.s32.f32 %v1200
        %vm1203 = vcmask 64512
        %v1205 = vsel %vm1203, %v1201, 0
        %v1208 = vsel %vm1203, %v1202, 0
        %1210 = vmatprep.subr.mxu0 0.0
        %1211 = vmatpush1.msra.mxu0 %v685
        %1212 = vmatprep.subr.mxu0 0.0
        %1213 = vmatpush1.msra.mxu0 0.0
        %1214 = vmatprep.subr.mxu0 0.0
        %1215 = vmatpush1.msra.mxu0 0.0
        %1216 = vmatprep.subr.mxu0 0.0
        %1217 = vmatpush1.msra.mxu0 0.0
        %1218 = vmatprep.subr.mxu0 0.0
        %1219 = vmatpush1.msra.mxu0 0.0
        %1220 = vmatprep.subr.mxu0 0.0
        %1221 = vmatpush1.msra.mxu0 0.0
        %1222 = vmatprep.subr.mxu0 0.0
        %1223 = vmatpush1.msra.mxu0 0.0
        %1224 = vmatprep.subr.mxu0 0.0
        %1225 = vmatpush1.msra.mxu0 0.0
        %1226 = vmatprep.subr.mxu0 0.0
        %1227 = vmatpush1.msra.mxu0 0.0
        %1228 = vmatprep.subr.mxu0 0.0
        %1229 = vmatpush1.msra.mxu0 0.0
        %1230 = vmatprep.subr.mxu0 0.0
        %1231 = vmatpush1.msra.mxu0 0.0
        %1232 = vmatprep.subr.mxu0 0.0
        %1233 = vmatpush1.msra.mxu0 0.0
        %1234 = vmatprep.subr.mxu0 0.0
        %1235 = vmatpush1.msra.mxu0 0.0
        %1236 = vmatprep.subr.mxu0 0.0
        %1237 = vmatpush1.msra.mxu0 0.0
        %1238 = vmatprep.subr.mxu0 0.0
        %1239 = vmatpush1.msra.mxu0 0.0
        %1240 = vmatprep.subr.mxu0 0.0
        %1241 = vmatpush1.msra.mxu0 0.0
        %1242 = vmatprep.subr.mxu0 0.0
        %1243 = vmatpush1.msra.mxu0 0.0
        %1244 = vmatprep.subr.mxu0 0.0
        %1245 = vmatpush1.msra.mxu0 0.0
        %1246 = vmatprep.subr.mxu0 0.0
        %1247 = vmatpush1.msra.mxu0 0.0
        %1248 = vmatprep.subr.mxu0 0.0
        %1249 = vmatpush1.msra.mxu0 0.0
        %1250 = vmatprep.subr.mxu0 0.0
        %1251 = vmatpush1.msra.mxu0 0.0
        %1252 = vmatprep.subr.mxu0 0.0
        %1253 = vmatpush1.msra.mxu0 0.0
        %1254 = vmatprep.subr.mxu0 0.0
        %1255 = vmatpush1.msra.mxu0 0.0
        %1256 = vmatprep.subr.mxu0 0.0
        %1257 = vmatpush1.msra.mxu0 0.0
        %1258 = vmatprep.subr.mxu0 0.0
        %1259 = vmatpush1.msra.mxu0 0.0
        %1260 = vmatprep.subr.mxu0 0.0
        %1261 = vmatpush1.msra.mxu0 0.0
        %1262 = vmatprep.subr.mxu0 0.0
        %1263 = vmatpush1.msra.mxu0 0.0
        %1264 = vmatprep.subr.mxu0 0.0
        %1265 = vmatpush1.msra.mxu0 0.0
        %1266 = vmatprep.subr.mxu0 0.0
        %1267 = vmatpush1.msra.mxu0 0.0
        %1268 = vmatprep.subr.mxu0 0.0
        %1269 = vmatpush1.msra.mxu0 0.0
        %1270 = vmatprep.subr.mxu0 0.0
        %1271 = vmatpush1.msra.mxu0 0.0
        %1272 = vmatprep.subr.mxu0 0.0
        %1273 = vmatpush1.msra.mxu0 0.0
        %1274 = vmatprep.mubr.f32.mxu0 0.0
        %1275 = vmatmul.mubr.f32.gmra.mrb[0].mxu0 %v1205
        %v1276 = vpop.f32.mrb[0].mxu0
        %v1277 = vadd.f32 0.0, %v1276
        %v1278 = vpop.f32.mrb[0].mxu0
        %1279 = vmatprep.mubr.f32.mxu0 0.0
        %1280 = vmatmul.mubr.f32.gmra.mrb[0].mxu0 %v1208
        %v1281 = vpop.f32.mrb[0].mxu0
        %v1282 = vadd.f32 0.0, %v1281
        %v1283 = vpop.f32.mrb[0].mxu0
        %1284 = vdwg.mxu0
        %v1285 = vpack.c.bf16 %v1282, %v1277
        %s1286 = scalar_lea.vmem [#allocation5], 48
        %v1287 = vld [vmem:[%s1286] sm:$0xf]
        %v1288 = vld [vmem:[%s1286 + $0x4] sm:$0xf]
        %v1289 = vld [vmem:[%s1286 + $0x8] sm:$0xf]
        %v1290 = vld [vmem:[%s1286 + $0xc] sm:$0xf]
        %v1295 = vunpack.c.l.b16 %v1287
        %v1296 = vunpack.c.l.b16 %v1288
        %v1297 = vunpack.c.l.b16 %v1289
        %v1298 = vunpack.c.l.b16 %v1290
        %v1299 = vpack.c.b16 %v1296, %v1295
        %v1300 = vpack.c.b16 %v1298, %v1297
        %v1304 = vsel %vm705, %v1285, 0
        %1306 = vmatprep.subr.bf16.mxu0 0
        %1307 = vmatpush1.bf16.msra.mxu0 %v1299
        %1308 = vmatprep.subr.bf16.mxu0 0
        %1309 = vmatpush1.bf16.msra.mxu0 %v1300
        %1310 = vmatprep.subr.bf16.mxu0 0
        %1311 = vmatpush1.bf16.msra.mxu0 0
        %1312 = vmatprep.subr.bf16.mxu0 0
        %1313 = vmatpush1.bf16.msra.mxu0 0
        %1314 = vmatprep.subr.bf16.mxu0 0
        %1315 = vmatpush1.bf16.msra.mxu0 0
        %1316 = vmatprep.subr.bf16.mxu0 0
        %1317 = vmatpush1.bf16.msra.mxu0 0
        %1318 = vmatprep.subr.bf16.mxu0 0
        %1319 = vmatpush1.bf16.msra.mxu0 0
        %1320 = vmatprep.subr.bf16.mxu0 0
        %1321 = vmatpush1.bf16.msra.mxu0 0
        %1322 = vmatprep.subr.bf16.mxu0 0
        %1323 = vmatpush1.bf16.msra.mxu0 0
        %1324 = vmatprep.subr.bf16.mxu0 0
        %1325 = vmatpush1.bf16.msra.mxu0 0
        %1326 = vmatprep.subr.bf16.mxu0 0
        %1327 = vmatpush1.bf16.msra.mxu0 0
        %1328 = vmatprep.subr.bf16.mxu0 0
        %1329 = vmatpush1.bf16.msra.mxu0 0
        %1330 = vmatprep.subr.bf16.mxu0 0
        %1331 = vmatpush1.bf16.msra.mxu0 0
        %1332 = vmatprep.subr.bf16.mxu0 0
        %1333 = vmatpush1.bf16.msra.mxu0 0
        %1334 = vmatprep.subr.bf16.mxu0 0
        %1335 = vmatpush1.bf16.msra.mxu0 0
        %1336 = vmatprep.subr.bf16.mxu0 0
        %1337 = vmatpush1.bf16.msra.mxu0 0
        %1338 = vmatprep.mubr.bf16.mxu0 0
        %1339 = vmatmul.mubr.bf16.gmra.mrb[0].mxu0 %v1304
        %v1340 = vpop.f32.mrb[0].mxu0
        %v1341 = vadd.f32 0.0, %v1340
        %v1342 = vpop.f32.mrb[0].mxu0
        %v1343 = vpop.f32.mrb[0].mxu0
        %v1344 = vadd.f32 0.0, %v1343
        %v1345 = vpop.f32.mrb[0].mxu0
        %1346 = vdwg.mxu0
        %v1347 = vrot.slane %v1341, 7
        %v1348 = vrot.slane %v1344, 7
        %vm1349 = vcmp.lt.s32.totalorder %v751, 1
        %v1350 = vsel %vm1349, %v1347, %v1348
        %v1351 = vsel %vm1349, %v1348, %v1347
        %v1352 = vadd.s32 %v751, 8
        %vm1353 = vcmp.ge.s32.totalorder %v1352, 1
        %v1354 = vsel %vm1353, 1, 0
        %vm1355 = vcmp.eq.s32.totalorder %v1354, 1
        %v1356 = vsel %vm754, %v1351, 0.0
        %v1357 = vsel %vm1355, %v1350, 0.0
        %v1358 = vadd.f32 %v1356, 0.0
        %v1359 = vadd.f32 %v1357, 0.0
        %s1360 = scalar_lea.vmem [#allocation5], 64
        %v1361 = vld [vmem:[%s1360] sm:$0xf]
        %v1362 = vld [vmem:[%s1360 + $0x4] sm:$0xf]
        %v1363 = vld [vmem:[%s1360 + $0x8] sm:$0xf]
        %v1364 = vld [vmem:[%s1360 + $0xc] sm:$0xf]
        %v1369 = vunpack.c.l.b16 %v1361
        %v1370 = vunpack.c.l.b16 %v1362
        %v1371 = vunpack.c.l.b16 %v1363
        %v1372 = vunpack.c.l.b16 %v1364
        %v1373 = vpack.c.b16 %v1370, %v1369
        %v1374 = vpack.c.b16 %v1372, %v1371
        %1377 = vmatprep.subr.bf16.mxu0 0
        %1378 = vmatpush1.bf16.msra.mxu0 %v1373
        %1379 = vmatprep.subr.bf16.mxu0 0
        %1380 = vmatpush1.bf16.msra.mxu0 %v1374
        %1381 = vmatprep.subr.bf16.mxu0 0
        %1382 = vmatpush1.bf16.msra.mxu0 0
        %1383 = vmatprep.subr.bf16.mxu0 0
        %1384 = vmatpush1.bf16.msra.mxu0 0
        %1385 = vmatprep.subr.bf16.mxu0 0
        %1386 = vmatpush1.bf16.msra.mxu0 0
        %1387 = vmatprep.subr.bf16.mxu0 0
        %1388 = vmatpush1.bf16.msra.mxu0 0
        %1389 = vmatprep.subr.bf16.mxu0 0
        %1390 = vmatpush1.bf16.msra.mxu0 0
        %1391 = vmatprep.subr.bf16.mxu0 0
        %1392 = vmatpush1.bf16.msra.mxu0 0
        %1393 = vmatprep.subr.bf16.mxu0 0
        %1394 = vmatpush1.bf16.msra.mxu0 0
        %1395 = vmatprep.subr.bf16.mxu0 0
        %1396 = vmatpush1.bf16.msra.mxu0 0
        %1397 = vmatprep.subr.bf16.mxu0 0
        %1398 = vmatpush1.bf16.msra.mxu0 0
        %1399 = vmatprep.subr.bf16.mxu0 0
        %1400 = vmatpush1.bf16.msra.mxu0 0
        %1401 = vmatprep.subr.bf16.mxu0 0
        %1402 = vmatpush1.bf16.msra.mxu0 0
        %1403 = vmatprep.subr.bf16.mxu0 0
        %1404 = vmatpush1.bf16.msra.mxu0 0
        %1405 = vmatprep.subr.bf16.mxu0 0
        %1406 = vmatpush1.bf16.msra.mxu0 0
        %1407 = vmatprep.subr.bf16.mxu0 0
        %1408 = vmatpush1.bf16.msra.mxu0 0
        %1409 = vmatprep.mubr.bf16.mxu0 0
        %1410 = vmatmul.mubr.bf16.gmra.mrb[0].mxu0 %v1304
        %v1411 = vpop.f32.mrb[0].mxu0
        %v1412 = vadd.f32 0.0, %v1411
        %v1413 = vpop.f32.mrb[0].mxu0
        %v1414 = vpop.f32.mrb[0].mxu0
        %v1415 = vadd.f32 0.0, %v1414
        %v1416 = vpop.f32.mrb[0].mxu0
        %1417 = vdwg.mxu0
        %v1418 = vadd.f32 %v1358, %v1412
        %v1419 = vadd.f32 %v1359, %v1415
        %s1420 = scalar_lea.vmem [#allocation5], 80
        %v1421 = vld [vmem:[%s1420] sm:$0xf]
        %v1422 = vld [vmem:[%s1420 + $0x4] sm:$0xf]
        %v1423 = vld [vmem:[%s1420 + $0x8] sm:$0xf]
        %v1424 = vld [vmem:[%s1420 + $0xc] sm:$0xf]
        %v1429 = vunpack.c.l.b16 %v1421
        %v1430 = vunpack.c.l.b16 %v1422
        %v1431 = vunpack.c.l.b16 %v1423
        %v1432 = vunpack.c.l.b16 %v1424
        %v1433 = vpack.c.b16 %v1430, %v1429
        %v1434 = vpack.c.b16 %v1432, %v1431
        %1437 = vmatprep.subr.bf16.mxu0 0
        %1438 = vmatpush1.bf16.msra.mxu0 %v1433
        %1439 = vmatprep.subr.bf16.mxu0 0
        %1440 = vmatpush1.bf16.msra.mxu0 %v1434
        %1441 = vmatprep.subr.bf16.mxu0 0
        %1442 = vmatpush1.bf16.msra.mxu0 0
        %1443 = vmatprep.subr.bf16.mxu0 0
        %1444 = vmatpush1.bf16.msra.mxu0 0
        %1445 = vmatprep.subr.bf16.mxu0 0
        %1446 = vmatpush1.bf16.msra.mxu0 0
        %1447 = vmatprep.subr.bf16.mxu0 0
        %1448 = vmatpush1.bf16.msra.mxu0 0
        %1449 = vmatprep.subr.bf16.mxu0 0
        %1450 = vmatpush1.bf16.msra.mxu0 0
        %1451 = vmatprep.subr.bf16.mxu0 0
        %1452 = vmatpush1.bf16.msra.mxu0 0
        %1453 = vmatprep.subr.bf16.mxu0 0
        %1454 = vmatpush1.bf16.msra.mxu0 0
        %1455 = vmatprep.subr.bf16.mxu0 0
        %1456 = vmatpush1.bf16.msra.mxu0 0
        %1457 = vmatprep.subr.bf16.mxu0 0
        %1458 = vmatpush1.bf16.msra.mxu0 0
        %1459 = vmatprep.subr.bf16.mxu0 0
        %1460 = vmatpush1.bf16.msra.mxu0 0
        %1461 = vmatprep.subr.bf16.mxu0 0
        %1462 = vmatpush1.bf16.msra.mxu0 0
        %1463 = vmatprep.subr.bf16.mxu0 0
        %1464 = vmatpush1.bf16.msra.mxu0 0
        %1465 = vmatprep.subr.bf16.mxu0 0
        %1466 = vmatpush1.bf16.msra.mxu0 0
        %1467 = vmatprep.subr.bf16.mxu0 0
        %1468 = vmatpush1.bf16.msra.mxu0 0
        %1469 = vmatprep.mubr.bf16.mxu0 0
        %1470 = vmatmul.mubr.bf16.gmra.mrb[0].mxu0 %v1304
        %v1471 = vpop.f32.mrb[0].mxu0
        %v1472 = vadd.f32 0.0, %v1471
        %v1473 = vpop.f32.mrb[0].mxu0
        %v1474 = vpop.f32.mrb[0].mxu0
        %v1475 = vadd.f32 0.0, %v1474
        %v1476 = vpop.f32.mrb[0].mxu0
        %1477 = vdwg.mxu0
        %v1478 = vrot.slane %v1472, 1
        %v1479 = vrot.slane %v1475, 1
        %v1480 = vsel %vm873, %v1478, %v1479
        %v1481 = vsel %vm873, %v1479, %v1478
        %vm1482 = vcmp.lt.s32.totalorder %v751, 15
        %vm1483 = vcmp.lt.s32.totalorder %v1352, 15
        %v1484 = vsel %vm1482, 1, 0
        %v1485 = vsel %vm1483, 1, 0
        %vm1486 = vcmp.eq.s32.totalorder %v1484, 1
        %vm1487 = vcmp.eq.s32.totalorder %v1485, 1
        %v1488 = vsel %vm1486, %v1480, 0.0
        %v1489 = vsel %vm1487, %v1481, 0.0
        %v1490 = vadd.f32 %v1418, %v1488
        %v1491 = vadd.f32 %v1419, %v1489
        %s1492 = scalar_lea.vmem %s3, 1
        %v1493 = vld [vmem:[%s1492] sm:$0x1]
        %v1495 = vlaneseq
        %v1496 = vshrl.u32 %v1495, 7
        %v1497 = vsub.s32 0, %v1496
        %v1498 = vrot.slane %v1493, %v1497
        %v1500 = vadd.f32 %v1490, %v1498
        %v1501 = vadd.f32 %v1491, %v1498
        %v1502 = vmax.f32 %v1500, 0.0
        %v1503 = vmax.f32 %v1501, 0.0
        %v1504 = vsel %vm705, %v1502, 0.0
        %1505 = vadd.xlane.f32.xlu0 %v1504
        %v1506 = vpop.xlane.xlu0 %1505
        %v1507 = vsel %vm705, %v1503, 0.0
        %1508 = vadd.xlane.f32.xlu0 %v1507
        %v1509 = vpop.xlane.xlu0 %1508
        %v1510 = vmul.f32 %v1506, %v890
        %v1511 = vmul.f32 %v1509, %v890
        %v1512 = vsub.f32 %v1502, %v1510
        %v1513 = vsub.f32 %v1503, %v1511
        %v1514 = vmul.f32 %v1512, %v1512
        %v1515 = vmul.f32 %v1513, %v1513
        %v1516 = vsel %vm705, %v1514, 0.0
        %1517 = vadd.xlane.f32.xlu0 %v1516
        %v1518 = vpop.xlane.xlu0 %1517
        %v1519 = vsel %vm705, %v1515, 0.0
        %1520 = vadd.xlane.f32.xlu0 %v1519
        %v1521 = vpop.xlane.xlu0 %1520
        %v1522 = vmul.f32 %v1518, %v890
        %v1523 = vmul.f32 %v1521, %v890
        %v1524 = vadd.f32 %v1522, 1e-05
        %v1525 = vadd.f32 %v1523, 1e-05
        %v1526 = vrsqrt.pop %v1524
        %v1527 = vrsqrt.pop %v1525
        %v1528 = vmul.f32 %v1512, %v1526
        %v1529 = vmul.f32 %v1513, %v1527
        %s1530 = scalar_lea.vmem [#allocation7], 1
        %v1531 = vld [vmem:[%s1530] sm:$0x1]
        %v1533 = vlaneseq
        %v1534 = vshrl.u32 %v1533, 7
        %v1535 = vsub.s32 0, %v1534
        %v1536 = vrot.slane %v1531, %v1535
        %v1538 = vmul.f32 %v1528, %v1536
        %v1539 = vmul.f32 %v1529, %v1536
        %s1540 = scalar_lea.vmem [#allocation8], 1
        %v1541 = vld [vmem:[%s1540] sm:$0x1]
        %v1543 = vlaneseq
        %v1544 = vshrl.u32 %v1543, 7
        %v1545 = vsub.s32 0, %v1544
        %v1546 = vrot.slane %v1541, %v1545
        %v1548 = vadd.f32 %v1538, %v1546
        %v1549 = vadd.f32 %v1539, %v1546
        %v1550 = vpack.c.bf16 %v1549, %v1548
        %s1551 = scalar_lea.vmem %s6, 48
        %v1552 = vld [vmem:[%s1551] sm:$0xf]
        %v1553 = vld [vmem:[%s1551 + $0x4] sm:$0xf]
        %v1554 = vld [vmem:[%s1551 + $0x8] sm:$0xf]
        %v1555 = vld [vmem:[%s1551 + $0xc] sm:$0xf]
        %v1560 = vunpack.c.l.b16 %v1552
        %v1561 = vunpack.c.l.b16 %v1553
        %v1562 = vunpack.c.l.b16 %v1554
        %v1563 = vunpack.c.l.b16 %v1555
        %v1564 = vpack.c.b16 %v1561, %v1560
        %v1565 = vpack.c.b16 %v1563, %v1562
        %v1569 = vsel %vm705, %v1550, 0
        %1571 = vmatprep.subr.bf16.mxu0 0
        %1572 = vmatpush1.bf16.msra.mxu0 %v1564
        %1573 = vmatprep.subr.bf16.mxu0 0
        %1574 = vmatpush1.bf16.msra.mxu0 %v1565
        %1575 = vmatprep.subr.bf16.mxu0 0
        %1576 = vmatpush1.bf16.msra.mxu0 0
        %1577 = vmatprep.subr.bf16.mxu0 0
        %1578 = vmatpush1.bf16.msra.mxu0 0
        %1579 = vmatprep.subr.bf16.mxu0 0
        %1580 = vmatpush1.bf16.msra.mxu0 0
        %1581 = vmatprep.subr.bf16.mxu0 0
        %1582 = vmatpush1.bf16.msra.mxu0 0
        %1583 = vmatprep.subr.bf16.mxu0 0
        %1584 = vmatpush1.bf16.msra.mxu0 0
        %1585 = vmatprep.subr.bf16.mxu0 0
        %1586 = vmatpush1.bf16.msra.mxu0 0
        %1587 = vmatprep.subr.bf16.mxu0 0
        %1588 = vmatpush1.bf16.msra.mxu0 0
        %1589 = vmatprep.subr.bf16.mxu0 0
        %1590 = vmatpush1.bf16.msra.mxu0 0
        %1591 = vmatprep.subr.bf16.mxu0 0
        %1592 = vmatpush1.bf16.msra.mxu0 0
        %1593 = vmatprep.subr.bf16.mxu0 0
        %1594 = vmatpush1.bf16.msra.mxu0 0
        %1595 = vmatprep.subr.bf16.mxu0 0
        %1596 = vmatpush1.bf16.msra.mxu0 0
        %1597 = vmatprep.subr.bf16.mxu0 0
        %1598 = vmatpush1.bf16.msra.mxu0 0
        %1599 = vmatprep.subr.bf16.mxu0 0
        %1600 = vmatpush1.bf16.msra.mxu0 0
        %1601 = vmatprep.subr.bf16.mxu0 0
        %1602 = vmatpush1.bf16.msra.mxu0 0
        %1603 = vmatprep.mubr.bf16.mxu0 0
        %1604 = vmatmul.mubr.bf16.gmra.mrb[0].mxu0 %v1569
        %v1605 = vpop.f32.mrb[0].mxu0
        %v1606 = vadd.f32 0.0, %v1605
        %v1607 = vpop.f32.mrb[0].mxu0
        %v1608 = vpop.f32.mrb[0].mxu0
        %v1609 = vadd.f32 0.0, %v1608
        %v1610 = vpop.f32.mrb[0].mxu0
        %1611 = vdwg.mxu0
        %v1612 = vrot.slane %v1606, 7
        %v1613 = vrot.slane %v1609, 7
        %v1614 = vsel %vm1349, %v1612, %v1613
        %v1615 = vsel %vm1349, %v1613, %v1612
        %v1616 = vsel %vm754, %v1615, 0.0
        %v1617 = vsel %vm1355, %v1614, 0.0
        %v1618 = vadd.f32 %v1616, 0.0
        %v1619 = vadd.f32 %v1617, 0.0
        %s1620 = scalar_lea.vmem %s6, 64
        %v1621 = vld [vmem:[%s1620] sm:$0xf]
        %v1622 = vld [vmem:[%s1620 + $0x4] sm:$0xf]
        %v1623 = vld [vmem:[%s1620 + $0x8] sm:$0xf]
        %v1624 = vld [vmem:[%s1620 + $0xc] sm:$0xf]
        %v1629 = vunpack.c.l.b16 %v1621
        %v1630 = vunpack.c.l.b16 %v1622
        %v1631 = vunpack.c.l.b16 %v1623
        %v1632 = vunpack.c.l.b16 %v1624
        %v1633 = vpack.c.b16 %v1630, %v1629
        %v1634 = vpack.c.b16 %v1632, %v1631
        %1637 = vmatprep.subr.bf16.mxu0 0
        %1638 = vmatpush1.bf16.msra.mxu0 %v1633
        %1639 = vmatprep.subr.bf16.mxu0 0
        %1640 = vmatpush1.bf16.msra.mxu0 %v1634
        %1641 = vmatprep.subr.bf16.mxu0 0
        %1642 = vmatpush1.bf16.msra.mxu0 0
        %1643 = vmatprep.subr.bf16.mxu0 0
        %1644 = vmatpush1.bf16.msra.mxu0 0
        %1645 = vmatprep.subr.bf16.mxu0 0
        %1646 = vmatpush1.bf16.msra.mxu0 0
        %1647 = vmatprep.subr.bf16.mxu0 0
        %1648 = vmatpush1.bf16.msra.mxu0 0
        %1649 = vmatprep.subr.bf16.mxu0 0
        %1650 = vmatpush1.bf16.msra.mxu0 0
        %1651 = vmatprep.subr.bf16.mxu0 0
        %1652 = vmatpush1.bf16.msra.mxu0 0
        %1653 = vmatprep.subr.bf16.mxu0 0
        %1654 = vmatpush1.bf16.msra.mxu0 0
        %1655 = vmatprep.subr.bf16.mxu0 0
        %1656 = vmatpush1.bf16.msra.mxu0 0
        %1657 = vmatprep.subr.bf16.mxu0 0
        %1658 = vmatpush1.bf16.msra.mxu0 0
        %1659 = vmatprep.subr.bf16.mxu0 0
        %1660 = vmatpush1.bf16.msra.mxu0 0
        %1661 = vmatprep.subr.bf16.mxu0 0
        %1662 = vmatpush1.bf16.msra.mxu0 0
        %1663 = vmatprep.subr.bf16.mxu0 0
        %1664 = vmatpush1.bf16.msra.mxu0 0
        %1665 = vmatprep.subr.bf16.mxu0 0
        %1666 = vmatpush1.bf16.msra.mxu0 0
        %1667 = vmatprep.subr.bf16.mxu0 0
        %1668 = vmatpush1.bf16.msra.mxu0 0
        %1669 = vmatprep.mubr.bf16.mxu0 0
        %1670 = vmatmul.mubr.bf16.gmra.mrb[0].mxu0 %v1569
        %v1671 = vpop.f32.mrb[0].mxu0
        %v1672 = vadd.f32 0.0, %v1671
        %v1673 = vpop.f32.mrb[0].mxu0
        %v1674 = vpop.f32.mrb[0].mxu0
        %v1675 = vadd.f32 0.0, %v1674
        %v1676 = vpop.f32.mrb[0].mxu0
        %1677 = vdwg.mxu0
        %v1678 = vadd.f32 %v1618, %v1672
        %v1679 = vadd.f32 %v1619, %v1675
        %s1680 = scalar_lea.vmem %s6, 80
        %v1681 = vld [vmem:[%s1680] sm:$0xf]
        %v1682 = vld [vmem:[%s1680 + $0x4] sm:$0xf]
        %v1683 = vld [vmem:[%s1680 + $0x8] sm:$0xf]
        %v1684 = vld [vmem:[%s1680 + $0xc] sm:$0xf]
        %v1689 = vunpack.c.l.b16 %v1681
        %v1690 = vunpack.c.l.b16 %v1682
        %v1691 = vunpack.c.l.b16 %v1683
        %v1692 = vunpack.c.l.b16 %v1684
        %v1693 = vpack.c.b16 %v1690, %v1689
        %v1694 = vpack.c.b16 %v1692, %v1691
        %1697 = vmatprep.subr.bf16.mxu0 0
        %1698 = vmatpush1.bf16.msra.mxu0 %v1693
        %1699 = vmatprep.subr.bf16.mxu0 0
        %1700 = vmatpush1.bf16.msra.mxu0 %v1694
        %1701 = vmatprep.subr.bf16.mxu0 0
        %1702 = vmatpush1.bf16.msra.mxu0 0
        %1703 = vmatprep.subr.bf16.mxu0 0
        %1704 = vmatpush1.bf16.msra.mxu0 0
        %1705 = vmatprep.subr.bf16.mxu0 0
        %1706 = vmatpush1.bf16.msra.mxu0 0
        %1707 = vmatprep.subr.bf16.mxu0 0
        %1708 = vmatpush1.bf16.msra.mxu0 0
        %1709 = vmatprep.subr.bf16.mxu0 0
        %1710 = vmatpush1.bf16.msra.mxu0 0
        %1711 = vmatprep.subr.bf16.mxu0 0
        %1712 = vmatpush1.bf16.msra.mxu0 0
        %1713 = vmatprep.subr.bf16.mxu0 0
        %1714 = vmatpush1.bf16.msra.mxu0 0
        %1715 = vmatprep.subr.bf16.mxu0 0
        %1716 = vmatpush1.bf16.msra.mxu0 0
        %1717 = vmatprep.subr.bf16.mxu0 0
        %1718 = vmatpush1.bf16.msra.mxu0 0
        %1719 = vmatprep.subr.bf16.mxu0 0
        %1720 = vmatpush1.bf16.msra.mxu0 0
        %1721 = vmatprep.subr.bf16.mxu0 0
        %1722 = vmatpush1.bf16.msra.mxu0 0
        %1723 = vmatprep.subr.bf16.mxu0 0
        %1724 = vmatpush1.bf16.msra.mxu0 0
        %1725 = vmatprep.subr.bf16.mxu0 0
        %1726 = vmatpush1.bf16.msra.mxu0 0
        %1727 = vmatprep.subr.bf16.mxu0 0
        %1728 = vmatpush1.bf16.msra.mxu0 0
        %1729 = vmatprep.mubr.bf16.mxu0 0
        %1730 = vmatmul.mubr.bf16.gmra.mrb[0].mxu0 %v1569
        %v1731 = vpop.f32.mrb[0].mxu0
        %v1732 = vadd.f32 0.0, %v1731
        %v1733 = vpop.f32.mrb[0].mxu0
        %v1734 = vpop.f32.mrb[0].mxu0
        %v1735 = vadd.f32 0.0, %v1734
        %v1736 = vpop.f32.mrb[0].mxu0
        %1737 = vdwg.mxu0
        %v1738 = vrot.slane %v1732, 1
        %v1739 = vrot.slane %v1735, 1
        %v1740 = vsel %vm873, %v1738, %v1739
        %v1741 = vsel %vm873, %v1739, %v1738
        %v1742 = vsel %vm1486, %v1740, 0.0
        %v1743 = vsel %vm1487, %v1741, 0.0
        %v1744 = vadd.f32 %v1678, %v1742
        %v1745 = vadd.f32 %v1679, %v1743
        %s1746 = scalar_lea.vmem [#allocation10], 1
        %v1747 = vld [vmem:[%s1746] sm:$0x1]
        %v1749 = vlaneseq
        %v1750 = vshrl.u32 %v1749, 7
        %v1751 = vsub.s32 0, %v1750
        %v1752 = vrot.slane %v1747, %v1751
        %v1754 = vadd.f32 %v1744, %v1752
        %v1755 = vadd.f32 %v1745, %v1752
        %v1756 = vmax.f32 %v1754, 0.0
        %v1757 = vmax.f32 %v1755, 0.0
        %v1758 = vsel %vm705, %v1756, 0.0
        %1759 = vadd.xlane.f32.xlu0 %v1758
        %v1760 = vpop.xlane.xlu0 %1759
        %v1761 = vsel %vm705, %v1757, 0.0
        %1762 = vadd.xlane.f32.xlu0 %v1761
        %v1763 = vpop.xlane.xlu0 %1762
        %v1764 = vmul.f32 %v1760, %v890
        %v1765 = vmul.f32 %v1763, %v890
        %v1766 = vsub.f32 %v1756, %v1764
        %v1767 = vsub.f32 %v1757, %v1765
        %v1768 = vmul.f32 %v1766, %v1766
        %v1769 = vmul.f32 %v1767, %v1767
        %v1770 = vsel %vm705, %v1768, 0.0
        %1771 = vadd.xlane.f32.xlu0 %v1770
        %v1772 = vpop.xlane.xlu0 %1771
        %v1773 = vsel %vm705, %v1769, 0.0
        %1774 = vadd.xlane.f32.xlu0 %v1773
        %v1775 = vpop.xlane.xlu0 %1774
        %v1776 = vmul.f32 %v1772, %v890
        %v1777 = vmul.f32 %v1775, %v890
        %v1778 = vadd.f32 %v1776, 1e-05
        %v1779 = vadd.f32 %v1777, 1e-05
        %v1780 = vrsqrt.pop %v1778
        %v1781 = vrsqrt.pop %v1779
        %v1782 = vmul.f32 %v1766, %v1780
        %v1783 = vmul.f32 %v1767, %v1781
        %s1784 = scalar_lea.vmem [#allocation11], 1
        %v1785 = vld [vmem:[%s1784] sm:$0x1]
        %v1787 = vlaneseq
        %v1788 = vshrl.u32 %v1787, 7
        %v1789 = vsub.s32 0, %v1788
        %v1790 = vrot.slane %v1785, %v1789
        %v1792 = vmul.f32 %v1782, %v1790
        %v1793 = vmul.f32 %v1783, %v1790
        %s1794 = scalar_lea.vmem [#allocation13], 1
        %v1795 = vld [vmem:[%s1794] sm:$0x1]
        %v1797 = vlaneseq
        %v1798 = vshrl.u32 %v1797, 7
        %v1799 = vsub.s32 0, %v1798
        %v1800 = vrot.slane %v1795, %v1799
        %v1802 = vadd.f32 %v1792, %v1800
        %v1803 = vadd.f32 %v1793, %v1800
        %s1804 = scalar_lea.vmem [#allocation14], 1
        %v1805 = vld [vmem:[%s1804] sm:$0x1]
        %v1807 = vlaneseq
        %v1808 = vshrl.u32 %v1807, 7
        %v1809 = vsub.s32 0, %v1808
        %v1810 = vrot.slane %v1805, %v1809
        %v1812 = vmul.f32 %v1802, %v1810
        %v1813 = vmul.f32 %v1803, %v1810
        %v1814 = vsel %vm705, %v1812, 0.0
        %1815 = vadd.xlane.f32.xlu0 %v1814
        %v1816 = vpop.xlane.xlu0 %1815
        %v1817 = vsel %vm705, %v1813, 0.0
        %1818 = vadd.xlane.f32.xlu0 %v1817
        %v1819 = vpop.xlane.xlu0 %1818
        %s1820 = scalar_lea.vmem %s11, 1
        %v1821 = vld [vmem:[%s1820] sm:$0x1]
        %v1823 = vlaneseq
        %v1824 = vshrl.u32 %v1823, 7
        %v1825 = vsub.s32 0, %v1824
        %v1826 = vrot.slane %v1821, %v1825
        %v1828 = vadd.f32 %v1816, %v1826
        %v1829 = vadd.f32 %v1819, %v1826
        %s1830 = scalar_lea.vmem [#allocation5], 96
        %v1831 = vld [vmem:[%s1830] sm:$0xf]
        %v1832 = vld [vmem:[%s1830 + $0x4] sm:$0xf]
        %v1833 = vld [vmem:[%s1830 + $0x8] sm:$0xf]
        %v1834 = vld [vmem:[%s1830 + $0xc] sm:$0xf]
        %v1839 = vunpack.c.l.b16 %v1831
        %v1840 = vunpack.c.l.b16 %v1832
        %v1841 = vunpack.c.l.b16 %v1833
        %v1842 = vunpack.c.l.b16 %v1834
        %v1843 = vpack.c.b16 %v1840, %v1839
        %v1844 = vpack.c.b16 %v1842, %v1841
        %1847 = vmatprep.subr.bf16.mxu0 0
        %1848 = vmatpush1.bf16.msra.mxu0 %v1843
        %1849 = vmatprep.subr.bf16.mxu0 0
        %1850 = vmatpush1.bf16.msra.mxu0 %v1844
        %1851 = vmatprep.subr.bf16.mxu0 0
        %1852 = vmatpush1.bf16.msra.mxu0 0
        %1853 = vmatprep.subr.bf16.mxu0 0
        %1854 = vmatpush1.bf16.msra.mxu0 0
        %1855 = vmatprep.subr.bf16.mxu0 0
        %1856 = vmatpush1.bf16.msra.mxu0 0
        %1857 = vmatprep.subr.bf16.mxu0 0
        %1858 = vmatpush1.bf16.msra.mxu0 0
        %1859 = vmatprep.subr.bf16.mxu0 0
        %1860 = vmatpush1.bf16.msra.mxu0 0
        %1861 = vmatprep.subr.bf16.mxu0 0
        %1862 = vmatpush1.bf16.msra.mxu0 0
        %1863 = vmatprep.subr.bf16.mxu0 0
        %1864 = vmatpush1.bf16.msra.mxu0 0
        %1865 = vmatprep.subr.bf16.mxu0 0
        %1866 = vmatpush1.bf16.msra.mxu0 0
        %1867 = vmatprep.subr.bf16.mxu0 0
        %1868 = vmatpush1.bf16.msra.mxu0 0
        %1869 = vmatprep.subr.bf16.mxu0 0
        %1870 = vmatpush1.bf16.msra.mxu0 0
        %1871 = vmatprep.subr.bf16.mxu0 0
        %1872 = vmatpush1.bf16.msra.mxu0 0
        %1873 = vmatprep.subr.bf16.mxu0 0
        %1874 = vmatpush1.bf16.msra.mxu0 0
        %1875 = vmatprep.subr.bf16.mxu0 0
        %1876 = vmatpush1.bf16.msra.mxu0 0
        %1877 = vmatprep.subr.bf16.mxu0 0
        %1878 = vmatpush1.bf16.msra.mxu0 0
        %1879 = vmatprep.mubr.bf16.mxu0 0
        %1880 = vmatmul.mubr.bf16.gmra.mrb[0].mxu0 %v1304
        %v1881 = vpop.f32.mrb[0].mxu0
        %v1882 = vadd.f32 0.0, %v1881
        %v1883 = vpop.f32.mrb[0].mxu0
        %v1884 = vpop.f32.mrb[0].mxu0
        %v1885 = vadd.f32 0.0, %v1884
        %v1886 = vpop.f32.mrb[0].mxu0
        %1887 = vdwg.mxu0
        %v1888 = vrot.slane %v1882, 7
        %v1889 = vrot.slane %v1885, 7
        %v1890 = vsel %vm1349, %v1888, %v1889
        %v1891 = vsel %vm1349, %v1889, %v1888
        %v1892 = vsel %vm754, %v1891, 0.0
        %v1893 = vsel %vm1355, %v1890, 0.0
        %v1894 = vadd.f32 %v1892, 0.0
        %v1895 = vadd.f32 %v1893, 0.0
        %s1896 = scalar_lea.vmem [#allocation5], 112
        %v1897 = vld [vmem:[%s1896] sm:$0xf]
        %v1898 = vld [vmem:[%s1896 + $0x4] sm:$0xf]
        %v1899 = vld [vmem:[%s1896 + $0x8] sm:$0xf]
        %v1900 = vld [vmem:[%s1896 + $0xc] sm:$0xf]
        %v1905 = vunpack.c.l.b16 %v1897
        %v1906 = vunpack.c.l.b16 %v1898
        %v1907 = vunpack.c.l.b16 %v1899
        %v1908 = vunpack.c.l.b16 %v1900
        %v1909 = vpack.c.b16 %v1906, %v1905
        %v1910 = vpack.c.b16 %v1908, %v1907
        %1913 = vmatprep.subr.bf16.mxu0 0
        %1914 = vmatpush1.bf16.msra.mxu0 %v1909
        %1915 = vmatprep.subr.bf16.mxu0 0
        %1916 = vmatpush1.bf16.msra.mxu0 %v1910
        %1917 = vmatprep.subr.bf16.mxu0 0
        %1918 = vmatpush1.bf16.msra.mxu0 0
        %1919 = vmatprep.subr.bf16.mxu0 0
        %1920 = vmatpush1.bf16.msra.mxu0 0
        %1921 = vmatprep.subr.bf16.mxu0 0
        %1922 = vmatpush1.bf16.msra.mxu0 0
        %1923 = vmatprep.subr.bf16.mxu0 0
        %1924 = vmatpush1.bf16.msra.mxu0 0
        %1925 = vmatprep.subr.bf16.mxu0 0
        %1926 = vmatpush1.bf16.msra.mxu0 0
        %1927 = vmatprep.subr.bf16.mxu0 0
        %1928 = vmatpush1.bf16.msra.mxu0 0
        %1929 = vmatprep.subr.bf16.mxu0 0
        %1930 = vmatpush1.bf16.msra.mxu0 0
        %1931 = vmatprep.subr.bf16.mxu0 0
        %1932 = vmatpush1.bf16.msra.mxu0 0
        %1933 = vmatprep.subr.bf16.mxu0 0
        %1934 = vmatpush1.bf16.msra.mxu0 0
        %1935 = vmatprep.subr.bf16.mxu0 0
        %1936 = vmatpush1.bf16.msra.mxu0 0
        %1937 = vmatprep.subr.bf16.mxu0 0
        %1938 = vmatpush1.bf16.msra.mxu0 0
        %1939 = vmatprep.subr.bf16.mxu0 0
        %1940 = vmatpush1.bf16.msra.mxu0 0
        %1941 = vmatprep.subr.bf16.mxu0 0
        %1942 = vmatpush1.bf16.msra.mxu0 0
        %1943 = vmatprep.subr.bf16.mxu0 0
        %1944 = vmatpush1.bf16.msra.mxu0 0
        %1945 = vmatprep.mubr.bf16.mxu0 0
        %1946 = vmatmul.mubr.bf16.gmra.mrb[0].mxu0 %v1304
        %v1947 = vpop.f32.mrb[0].mxu0
        %v1948 = vadd.f32 0.0, %v1947
        %v1949 = vpop.f32.mrb[0].mxu0
        %v1950 = vpop.f32.mrb[0].mxu0
        %v1951 = vadd.f32 0.0, %v1950
        %v1952 = vpop.f32.mrb[0].mxu0
        %1953 = vdwg.mxu0
        %v1954 = vadd.f32 %v1894, %v1948
        %v1955 = vadd.f32 %v1895, %v1951
        %s1956 = scalar_lea.vmem [#allocation5], 128
        %v1957 = vld [vmem:[%s1956] sm:$0xf]
        %v1958 = vld [vmem:[%s1956 + $0x4] sm:$0xf]
        %v1959 = vld [vmem:[%s1956 + $0x8] sm:$0xf]
        %v1960 = vld [vmem:[%s1956 + $0xc] sm:$0xf]
        %v1965 = vunpack.c.l.b16 %v1957
        %v1966 = vunpack.c.l.b16 %v1958
        %v1967 = vunpack.c.l.b16 %v1959
        %v1968 = vunpack.c.l.b16 %v1960
        %v1969 = vpack.c.b16 %v1966, %v1965
        %v1970 = vpack.c.b16 %v1968, %v1967
        %1973 = vmatprep.subr.bf16.mxu0 0
        %1974 = vmatpush1.bf16.msra.mxu0 %v1969
        %1975 = vmatprep.subr.bf16.mxu0 0
        %1976 = vmatpush1.bf16.msra.mxu0 %v1970
        %1977 = vmatprep.subr.bf16.mxu0 0
        %1978 = vmatpush1.bf16.msra.mxu0 0
        %1979 = vmatprep.subr.bf16.mxu0 0
        %1980 = vmatpush1.bf16.msra.mxu0 0
        %1981 = vmatprep.subr.bf16.mxu0 0
        %1982 = vmatpush1.bf16.msra.mxu0 0
        %1983 = vmatprep.subr.bf16.mxu0 0
        %1984 = vmatpush1.bf16.msra.mxu0 0
        %1985 = vmatprep.subr.bf16.mxu0 0
        %1986 = vmatpush1.bf16.msra.mxu0 0
        %1987 = vmatprep.subr.bf16.mxu0 0
        %1988 = vmatpush1.bf16.msra.mxu0 0
        %1989 = vmatprep.subr.bf16.mxu0 0
        %1990 = vmatpush1.bf16.msra.mxu0 0
        %1991 = vmatprep.subr.bf16.mxu0 0
        %1992 = vmatpush1.bf16.msra.mxu0 0
        %1993 = vmatprep.subr.bf16.mxu0 0
        %1994 = vmatpush1.bf16.msra.mxu0 0
        %1995 = vmatprep.subr.bf16.mxu0 0
        %1996 = vmatpush1.bf16.msra.mxu0 0
        %1997 = vmatprep.subr.bf16.mxu0 0
        %1998 = vmatpush1.bf16.msra.mxu0 0
        %1999 = vmatprep.subr.bf16.mxu0 0
        %2000 = vmatpush1.bf16.msra.mxu0 0
        %2001 = vmatprep.subr.bf16.mxu0 0
        %2002 = vmatpush1.bf16.msra.mxu0 0
        %2003 = vmatprep.subr.bf16.mxu0 0
        %2004 = vmatpush1.bf16.msra.mxu0 0
        %2005 = vmatprep.mubr.bf16.mxu0 0
        %2006 = vmatmul.mubr.bf16.gmra.mrb[0].mxu0 %v1304
        %v2007 = vpop.f32.mrb[0].mxu0
        %v2008 = vadd.f32 0.0, %v2007
        %v2009 = vpop.f32.mrb[0].mxu0
        %v2010 = vpop.f32.mrb[0].mxu0
        %v2011 = vadd.f32 0.0, %v2010
        %v2012 = vpop.f32.mrb[0].mxu0
        %2013 = vdwg.mxu0
        %v2014 = vrot.slane %v2008, 1
        %v2015 = vrot.slane %v2011, 1
        %v2016 = vsel %vm873, %v2014, %v2015
        %v2017 = vsel %vm873, %v2015, %v2014
        %v2018 = vsel %vm1486, %v2016, 0.0
        %v2019 = vsel %vm1487, %v2017, 0.0
        %v2020 = vadd.f32 %v1954, %v2018
        %v2021 = vadd.f32 %v1955, %v2019
        %s2022 = scalar_lea.vmem %s3, 2
        %v2023 = vld [vmem:[%s2022] sm:$0x1]
        %v2025 = vlaneseq
        %v2026 = vshrl.u32 %v2025, 7
        %v2027 = vsub.s32 0, %v2026
        %v2028 = vrot.slane %v2023, %v2027
        %v2030 = vadd.f32 %v2020, %v2028
        %v2031 = vadd.f32 %v2021, %v2028
        %v2032 = vmax.f32 %v2030, 0.0
        %v2033 = vmax.f32 %v2031, 0.0
        %v2034 = vsel %vm705, %v2032, 0.0
        %2035 = vadd.xlane.f32.xlu0 %v2034
        %v2036 = vpop.xlane.xlu0 %2035
        %v2037 = vsel %vm705, %v2033, 0.0
        %2038 = vadd.xlane.f32.xlu0 %v2037
        %v2039 = vpop.xlane.xlu0 %2038
        %v2040 = vmul.f32 %v2036, %v890
        %v2041 = vmul.f32 %v2039, %v890
        %v2042 = vsub.f32 %v2032, %v2040
        %v2043 = vsub.f32 %v2033, %v2041
        %v2044 = vmul.f32 %v2042, %v2042
        %v2045 = vmul.f32 %v2043, %v2043
        %v2046 = vsel %vm705, %v2044, 0.0
        %2047 = vadd.xlane.f32.xlu0 %v2046
        %v2048 = vpop.xlane.xlu0 %2047
        %v2049 = vsel %vm705, %v2045, 0.0
        %2050 = vadd.xlane.f32.xlu0 %v2049
        %v2051 = vpop.xlane.xlu0 %2050
        %v2052 = vmul.f32 %v2048, %v890
        %v2053 = vmul.f32 %v2051, %v890
        %v2054 = vadd.f32 %v2052, 1e-05
        %v2055 = vadd.f32 %v2053, 1e-05
        %v2056 = vrsqrt.pop %v2054
        %v2057 = vrsqrt.pop %v2055
        %v2058 = vmul.f32 %v2042, %v2056
        %v2059 = vmul.f32 %v2043, %v2057
        %s2060 = scalar_lea.vmem [#allocation7], 2
        %v2061 = vld [vmem:[%s2060] sm:$0x1]
        %v2063 = vlaneseq
        %v2064 = vshrl.u32 %v2063, 7
        %v2065 = vsub.s32 0, %v2064
        %v2066 = vrot.slane %v2061, %v2065
        %v2068 = vmul.f32 %v2058, %v2066
        %v2069 = vmul.f32 %v2059, %v2066
        %s2070 = scalar_lea.vmem [#allocation8], 2
        %v2071 = vld [vmem:[%s2070] sm:$0x1]
        %v2073 = vlaneseq
        %v2074 = vshrl.u32 %v2073, 7
        %v2075 = vsub.s32 0, %v2074
        %v2076 = vrot.slane %v2071, %v2075
        %v2078 = vadd.f32 %v2068, %v2076
        %v2079 = vadd.f32 %v2069, %v2076
        %v2080 = vpack.c.bf16 %v2079, %v2078
        %s2081 = scalar_lea.vmem %s6, 96
        %v2082 = vld [vmem:[%s2081] sm:$0xf]
        %v2083 = vld [vmem:[%s2081 + $0x4] sm:$0xf]
        %v2084 = vld [vmem:[%s2081 + $0x8] sm:$0xf]
        %v2085 = vld [vmem:[%s2081 + $0xc] sm:$0xf]
        %v2090 = vunpack.c.l.b16 %v2082
        %v2091 = vunpack.c.l.b16 %v2083
        %v2092 = vunpack.c.l.b16 %v2084
        %v2093 = vunpack.c.l.b16 %v2085
        %v2094 = vpack.c.b16 %v2091, %v2090
        %v2095 = vpack.c.b16 %v2093, %v2092
        %v2099 = vsel %vm705, %v2080, 0
        %2101 = vmatprep.subr.bf16.mxu0 0
        %2102 = vmatpush1.bf16.msra.mxu0 %v2094
        %2103 = vmatprep.subr.bf16.mxu0 0
        %2104 = vmatpush1.bf16.msra.mxu0 %v2095
        %2105 = vmatprep.subr.bf16.mxu0 0
        %2106 = vmatpush1.bf16.msra.mxu0 0
        %2107 = vmatprep.subr.bf16.mxu0 0
        %2108 = vmatpush1.bf16.msra.mxu0 0
        %2109 = vmatprep.subr.bf16.mxu0 0
        %2110 = vmatpush1.bf16.msra.mxu0 0
        %2111 = vmatprep.subr.bf16.mxu0 0
        %2112 = vmatpush1.bf16.msra.mxu0 0
        %2113 = vmatprep.subr.bf16.mxu0 0
        %2114 = vmatpush1.bf16.msra.mxu0 0
        %2115 = vmatprep.subr.bf16.mxu0 0
        %2116 = vmatpush1.bf16.msra.mxu0 0
        %2117 = vmatprep.subr.bf16.mxu0 0
        %2118 = vmatpush1.bf16.msra.mxu0 0
        %2119 = vmatprep.subr.bf16.mxu0 0
        %2120 = vmatpush1.bf16.msra.mxu0 0
        %2121 = vmatprep.subr.bf16.mxu0 0
        %2122 = vmatpush1.bf16.msra.mxu0 0
        %2123 = vmatprep.subr.bf16.mxu0 0
        %2124 = vmatpush1.bf16.msra.mxu0 0
        %2125 = vmatprep.subr.bf16.mxu0 0
        %2126 = vmatpush1.bf16.msra.mxu0 0
        %2127 = vmatprep.subr.bf16.mxu0 0
        %2128 = vmatpush1.bf16.msra.mxu0 0
        %2129 = vmatprep.subr.bf16.mxu0 0
        %2130 = vmatpush1.bf16.msra.mxu0 0
        %2131 = vmatprep.subr.bf16.mxu0 0
        %2132 = vmatpush1.bf16.msra.mxu0 0
        %2133 = vmatprep.mubr.bf16.mxu0 0
        %2134 = vmatmul.mubr.bf16.gmra.mrb[0].mxu0 %v2099
        %v2135 = vpop.f32.mrb[0].mxu0
        %v2136 = vadd.f32 0.0, %v2135
        %v2137 = vpop.f32.mrb[0].mxu0
        %v2138 = vpop.f32.mrb[0].mxu0
        %v2139 = vadd.f32 0.0, %v2138
        %v2140 = vpop.f32.mrb[0].mxu0
        %2141 = vdwg.mxu0
        %v2142 = vrot.slane %v2136, 7
        %v2143 = vrot.slane %v2139, 7
        %v2144 = vsel %vm1349, %v2142, %v2143
        %v2145 = vsel %vm1349, %v2143, %v2142
        %v2146 = vsel %vm754, %v2145, 0.0
        %v2147 = vsel %vm1355, %v2144, 0.0
        %v2148 = vadd.f32 %v2146, 0.0
        %v2149 = vadd.f32 %v2147, 0.0
        %s2150 = scalar_lea.vmem %s6, 112
        %v2151 = vld [vmem:[%s2150] sm:$0xf]
        %v2152 = vld [vmem:[%s2150 + $0x4] sm:$0xf]
        %v2153 = vld [vmem:[%s2150 + $0x8] sm:$0xf]
        %v2154 = vld [vmem:[%s2150 + $0xc] sm:$0xf]
        %v2159 = vunpack.c.l.b16 %v2151
        %v2160 = vunpack.c.l.b16 %v2152
        %v2161 = vunpack.c.l.b16 %v2153
        %v2162 = vunpack.c.l.b16 %v2154
        %v2163 = vpack.c.b16 %v2160, %v2159
        %v2164 = vpack.c.b16 %v2162, %v2161
        %2167 = vmatprep.subr.bf16.mxu0 0
        %2168 = vmatpush1.bf16.msra.mxu0 %v2163
        %2169 = vmatprep.subr.bf16.mxu0 0
        %2170 = vmatpush1.bf16.msra.mxu0 %v2164
        %2171 = vmatprep.subr.bf16.mxu0 0
        %2172 = vmatpush1.bf16.msra.mxu0 0
        %2173 = vmatprep.subr.bf16.mxu0 0
        %2174 = vmatpush1.bf16.msra.mxu0 0
        %2175 = vmatprep.subr.bf16.mxu0 0
        %2176 = vmatpush1.bf16.msra.mxu0 0
        %2177 = vmatprep.subr.bf16.mxu0 0
        %2178 = vmatpush1.bf16.msra.mxu0 0
        %2179 = vmatprep.subr.bf16.mxu0 0
        %2180 = vmatpush1.bf16.msra.mxu0 0
        %2181 = vmatprep.subr.bf16.mxu0 0
        %2182 = vmatpush1.bf16.msra.mxu0 0
        %2183 = vmatprep.subr.bf16.mxu0 0
        %2184 = vmatpush1.bf16.msra.mxu0 0
        %2185 = vmatprep.subr.bf16.mxu0 0
        %2186 = vmatpush1.bf16.msra.mxu0 0
        %2187 = vmatprep.subr.bf16.mxu0 0
        %2188 = vmatpush1.bf16.msra.mxu0 0
        %2189 = vmatprep.subr.bf16.mxu0 0
        %2190 = vmatpush1.bf16.msra.mxu0 0
        %2191 = vmatprep.subr.bf16.mxu0 0
        %2192 = vmatpush1.bf16.msra.mxu0 0
        %2193 = vmatprep.subr.bf16.mxu0 0
        %2194 = vmatpush1.bf16.msra.mxu0 0
        %2195 = vmatprep.subr.bf16.mxu0 0
        %2196 = vmatpush1.bf16.msra.mxu0 0
        %2197 = vmatprep.subr.bf16.mxu0 0
        %2198 = vmatpush1.bf16.msra.mxu0 0
        %2199 = vmatprep.mubr.bf16.mxu0 0
        %2200 = vmatmul.mubr.bf16.gmra.mrb[0].mxu0 %v2099
        %v2201 = vpop.f32.mrb[0].mxu0
        %v2202 = vadd.f32 0.0, %v2201
        %v2203 = vpop.f32.mrb[0].mxu0
        %v2204 = vpop.f32.mrb[0].mxu0
        %v2205 = vadd.f32 0.0, %v2204
        %v2206 = vpop.f32.mrb[0].mxu0
        %2207 = vdwg.mxu0
        %v2208 = vadd.f32 %v2148, %v2202
        %v2209 = vadd.f32 %v2149, %v2205
        %s2210 = scalar_lea.vmem %s6, 128
        %v2211 = vld [vmem:[%s2210] sm:$0xf]
        %v2212 = vld [vmem:[%s2210 + $0x4] sm:$0xf]
        %v2213 = vld [vmem:[%s2210 + $0x8] sm:$0xf]
        %v2214 = vld [vmem:[%s2210 + $0xc] sm:$0xf]
        %v2219 = vunpack.c.l.b16 %v2211
        %v2220 = vunpack.c.l.b16 %v2212
        %v2221 = vunpack.c.l.b16 %v2213
        %v2222 = vunpack.c.l.b16 %v2214
        %v2223 = vpack.c.b16 %v2220, %v2219
        %v2224 = vpack.c.b16 %v2222, %v2221
        %2227 = vmatprep.subr.bf16.mxu0 0
        %2228 = vmatpush1.bf16.msra.mxu0 %v2223
        %2229 = vmatprep.subr.bf16.mxu0 0
        %2230 = vmatpush1.bf16.msra.mxu0 %v2224
        %2231 = vmatprep.subr.bf16.mxu0 0
        %2232 = vmatpush1.bf16.msra.mxu0 0
        %2233 = vmatprep.subr.bf16.mxu0 0
        %2234 = vmatpush1.bf16.msra.mxu0 0
        %2235 = vmatprep.subr.bf16.mxu0 0
        %2236 = vmatpush1.bf16.msra.mxu0 0
        %2237 = vmatprep.subr.bf16.mxu0 0
        %2238 = vmatpush1.bf16.msra.mxu0 0
        %2239 = vmatprep.subr.bf16.mxu0 0
        %2240 = vmatpush1.bf16.msra.mxu0 0
        %2241 = vmatprep.subr.bf16.mxu0 0
        %2242 = vmatpush1.bf16.msra.mxu0 0
        %2243 = vmatprep.subr.bf16.mxu0 0
        %2244 = vmatpush1.bf16.msra.mxu0 0
        %2245 = vmatprep.subr.bf16.mxu0 0
        %2246 = vmatpush1.bf16.msra.mxu0 0
        %2247 = vmatprep.subr.bf16.mxu0 0
        %2248 = vmatpush1.bf16.msra.mxu0 0
        %2249 = vmatprep.subr.bf16.mxu0 0
        %2250 = vmatpush1.bf16.msra.mxu0 0
        %2251 = vmatprep.subr.bf16.mxu0 0
        %2252 = vmatpush1.bf16.msra.mxu0 0
        %2253 = vmatprep.subr.bf16.mxu0 0
        %2254 = vmatpush1.bf16.msra.mxu0 0
        %2255 = vmatprep.subr.bf16.mxu0 0
        %2256 = vmatpush1.bf16.msra.mxu0 0
        %2257 = vmatprep.subr.bf16.mxu0 0
        %2258 = vmatpush1.bf16.msra.mxu0 0
        %2259 = vmatprep.mubr.bf16.mxu0 0
        %2260 = vmatmul.mubr.bf16.gmra.mrb[0].mxu0 %v2099
        %v2261 = vpop.f32.mrb[0].mxu0
        %v2262 = vadd.f32 0.0, %v2261
        %v2263 = vpop.f32.mrb[0].mxu0
        %v2264 = vpop.f32.mrb[0].mxu0
        %v2265 = vadd.f32 0.0, %v2264
        %v2266 = vpop.f32.mrb[0].mxu0
        %2267 = vdwg.mxu0
        %v2268 = vrot.slane %v2262, 1
        %v2269 = vrot.slane %v2265, 1
        %v2270 = vsel %vm873, %v2268, %v2269
        %v2271 = vsel %vm873, %v2269, %v2268
        %v2272 = vsel %vm1486, %v2270, 0.0
        %v2273 = vsel %vm1487, %v2271, 0.0
        %v2274 = vadd.f32 %v2208, %v2272
        %v2275 = vadd.f32 %v2209, %v2273
        %s2276 = scalar_lea.vmem [#allocation10], 2
        %v2277 = vld [vmem:[%s2276] sm:$0x1]
        %v2279 = vlaneseq
        %v2280 = vshrl.u32 %v2279, 7
        %v2281 = vsub.s32 0, %v2280
        %v2282 = vrot.slane %v2277, %v2281
        %v2284 = vadd.f32 %v2274, %v2282
        %v2285 = vadd.f32 %v2275, %v2282
        %v2286 = vmax.f32 %v2284, 0.0
        %v2287 = vmax.f32 %v2285, 0.0
        %v2288 = vsel %vm705, %v2286, 0.0
        %2289 = vadd.xlane.f32.xlu0 %v2288
        %v2290 = vpop.xlane.xlu0 %2289
        %v2291 = vsel %vm705, %v2287, 0.0
        %2292 = vadd.xlane.f32.xlu0 %v2291
        %v2293 = vpop.xlane.xlu0 %2292
        %v2294 = vmul.f32 %v2290, %v890
        %v2295 = vmul.f32 %v2293, %v890
        %v2296 = vsub.f32 %v2286, %v2294
        %v2297 = vsub.f32 %v2287, %v2295
        %v2298 = vmul.f32 %v2296, %v2296
        %v2299 = vmul.f32 %v2297, %v2297
        %v2300 = vsel %vm705, %v2298, 0.0
        %2301 = vadd.xlane.f32.xlu0 %v2300
        %v2302 = vpop.xlane.xlu0 %2301
        %v2303 = vsel %vm705, %v2299, 0.0
        %2304 = vadd.xlane.f32.xlu0 %v2303
        %v2305 = vpop.xlane.xlu0 %2304
        %v2306 = vmul.f32 %v2302, %v890
        %v2307 = vmul.f32 %v2305, %v890
        %v2308 = vadd.f32 %v2306, 1e-05
        %v2309 = vadd.f32 %v2307, 1e-05
        %v2310 = vrsqrt.pop %v2308
        %v2311 = vrsqrt.pop %v2309
        %v2312 = vmul.f32 %v2296, %v2310
        %v2313 = vmul.f32 %v2297, %v2311
        %s2314 = scalar_lea.vmem [#allocation11], 2
        %v2315 = vld [vmem:[%s2314] sm:$0x1]
        %v2317 = vlaneseq
        %v2318 = vshrl.u32 %v2317, 7
        %v2319 = vsub.s32 0, %v2318
        %v2320 = vrot.slane %v2315, %v2319
        %v2322 = vmul.f32 %v2312, %v2320
        %v2323 = vmul.f32 %v2313, %v2320
        %s2324 = scalar_lea.vmem [#allocation13], 2
        %v2325 = vld [vmem:[%s2324] sm:$0x1]
        %v2327 = vlaneseq
        %v2328 = vshrl.u32 %v2327, 7
        %v2329 = vsub.s32 0, %v2328
        %v2330 = vrot.slane %v2325, %v2329
        %v2332 = vadd.f32 %v2322, %v2330
        %v2333 = vadd.f32 %v2323, %v2330
        %s2334 = scalar_lea.vmem [#allocation14], 2
        %v2335 = vld [vmem:[%s2334] sm:$0x1]
        %v2337 = vlaneseq
        %v2338 = vshrl.u32 %v2337, 7
        %v2339 = vsub.s32 0, %v2338
        %v2340 = vrot.slane %v2335, %v2339
        %v2342 = vmul.f32 %v2332, %v2340
        %v2343 = vmul.f32 %v2333, %v2340
        %v2344 = vsel %vm705, %v2342, 0.0
        %2345 = vadd.xlane.f32.xlu0 %v2344
        %v2346 = vpop.xlane.xlu0 %2345
        %v2347 = vsel %vm705, %v2343, 0.0
        %2348 = vadd.xlane.f32.xlu0 %v2347
        %v2349 = vpop.xlane.xlu0 %2348
        %s2350 = scalar_lea.vmem %s11, 2
        %v2351 = vld [vmem:[%s2350] sm:$0x1]
        %v2353 = vlaneseq
        %v2354 = vshrl.u32 %v2353, 7
        %v2355 = vsub.s32 0, %v2354
        %v2356 = vrot.slane %v2351, %v2355
        %v2358 = vadd.f32 %v2346, %v2356
        %v2359 = vadd.f32 %v2349, %v2356
        %2360 = vxpose.xlu0.b32.start [1/16] %v1828, 128
        %2361 = vxpose.xlu0.b32.cont [2/16] %v1829, 128
        %2362 = vxpose.xlu0.b32.cont [3/16] 0.0, 128
        %2363 = vxpose.xlu0.b32.cont [4/16] 0.0, 128
        %2364 = vxpose.xlu0.b32.cont [5/16] 0.0, 128
        %2365 = vxpose.xlu0.b32.cont [6/16] 0.0, 128
        %2366 = vxpose.xlu0.b32.cont [7/16] 0.0, 128
        %2367 = vxpose.xlu0.b32.cont [8/16] 0.0, 128
        %2368 = vxpose.xlu0.b32.cont [9/16] 0.0, 128
        %2369 = vxpose.xlu0.b32.cont [10/16] 0.0, 128
        %2370 = vxpose.xlu0.b32.cont [11/16] 0.0, 128
        %2371 = vxpose.xlu0.b32.cont [12/16] 0.0, 128
        %2372 = vxpose.xlu0.b32.cont [13/16] 0.0, 128
        %2373 = vxpose.xlu0.b32.cont [14/16] 0.0, 128
        %2374 = vxpose.xlu0.b32.cont [15/16] 0.0, 128
        %2375 = vxpose.xlu0.b32.end [16/16] 0.0, 128
        %v2376 = vpop.trf.xlu0
        %v2377 = vpop.trf.xlu0
        %v2378 = vpop.trf.xlu0
        %v2379 = vpop.trf.xlu0
        %v2380 = vpop.trf.xlu0
        %v2381 = vpop.trf.xlu0
        %v2382 = vpop.trf.xlu0
        %v2383 = vpop.trf.xlu0
        %v2384 = vpop.trf.xlu0
        %v2385 = vpop.trf.xlu0
        %v2386 = vpop.trf.xlu0
        %v2387 = vpop.trf.xlu0
        %v2388 = vpop.trf.xlu0
        %v2389 = vpop.trf.xlu0
        %v2390 = vpop.trf.xlu0
        %v2391 = vpop.trf.xlu0
        %vm2392 = vcmask 122880
        %2393 = vst.msk [vmem:[%s672] sm:$0x1] %vm2392, %v2376
        %2394 = vxpose.xlu0.b32.start [1/16] %v2358, 128
        %2395 = vxpose.xlu0.b32.cont [2/16] %v2359, 128
        %2396 = vxpose.xlu0.b32.cont [3/16] 0.0, 128
        %2397 = vxpose.xlu0.b32.cont [4/16] 0.0, 128
        %2398 = vxpose.xlu0.b32.cont [5/16] 0.0, 128
        %2399 = vxpose.xlu0.b32.cont [6/16] 0.0, 128
        %2400 = vxpose.xlu0.b32.cont [7/16] 0.0, 128
        %2401 = vxpose.xlu0.b32.cont [8/16] 0.0, 128
        %2402 = vxpose.xlu0.b32.cont [9/16] 0.0, 128
        %2403 = vxpose.xlu0.b32.cont [10/16] 0.0, 128
        %2404 = vxpose.xlu0.b32.cont [11/16] 0.0, 128
        %2405 = vxpose.xlu0.b32.cont [12/16] 0.0, 128
        %2406 = vxpose.xlu0.b32.cont [13/16] 0.0, 128
        %2407 = vxpose.xlu0.b32.cont [14/16] 0.0, 128
        %2408 = vxpose.xlu0.b32.cont [15/16] 0.0, 128
        %2409 = vxpose.xlu0.b32.end [16/16] 0.0, 128
        %v2410 = vpop.trf.xlu0
        %v2411 = vpop.trf.xlu0
        %v2412 = vpop.trf.xlu0
        %v2413 = vpop.trf.xlu0
        %v2414 = vpop.trf.xlu0
        %v2415 = vpop.trf.xlu0
        %v2416 = vpop.trf.xlu0
        %v2417 = vpop.trf.xlu0
        %v2418 = vpop.trf.xlu0
        %v2419 = vpop.trf.xlu0
        %v2420 = vpop.trf.xlu0
        %v2421 = vpop.trf.xlu0
        %v2422 = vpop.trf.xlu0
        %v2423 = vpop.trf.xlu0
        %v2424 = vpop.trf.xlu0
        %v2425 = vpop.trf.xlu0
        %2426 = vst.msk [vmem:[%s678] sm:$0x1] %vm2392, %v2410
        %v2427 = vmul.f32 %v1828, 6.216606
        %v2428 = vmul.f32 %v1829, 6.216606
        %v2429 = vmul.f32 %v2427, 1.442695
        %v2430 = vpow.pop %v2429
        %v2431 = vmul.f32 %v2428, 1.442695
        %v2432 = vpow.pop %v2431
        %v2433 = vsub.f32 %v2430, 1.0
        %v2434 = vsub.f32 %v2432, 1.0
        %v2435 = vadd.f32 %v2433, 1.0
        %v2436 = vlog2.pop %v2435
        %v2437 = vmul.f32 %v2436, 0.6931472
        %v2438 = vmul.f32 -0.5, %v2433
        %v2439 = vadd.f32 %v2438, 1.0
        %v2440 = vmul.f32 %v2439, %v2433
        %v2441 = vand.u32 2147483647, %v2433
        %vm2442 = vcmp.lt.f32.partialorder %v2441, 0.0004427343
        %v2443 = vsel %vm2442, %v2440, %v2437
        %v2444 = vadd.f32 %v2434, 1.0
        %v2445 = vlog2.pop %v2444
        %v2446 = vmul.f32 %v2445, 0.6931472
        %v2447 = vmul.f32 -0.5, %v2434
        %v2448 = vadd.f32 %v2447, 1.0
        %v2449 = vmul.f32 %v2448, %v2434
        %v2450 = vand.u32 2147483647, %v2434
        %vm2451 = vcmp.lt.f32.partialorder %v2450, 0.0004427343
        %v2452 = vsel %vm2451, %v2449, %v2446
        %v2453 = vrcp.pop 6.216606
        %v2454 = vmul.f32 %v2443, %v2453
        %v2455 = vmul.f32 %v2452, %v2453
        %v2456 = vmax.f32 %v2454, 0.0
        %v2457 = vmax.f32 %v2455, 0.0
        %v2458 = vmin.f32 %v2456, 1.0
        %v2459 = vmin.f32 %v2457, 1.0
        %v2460 = vmul.f32 %v2458, 31.0
        %v2461 = vmul.f32 %v2459, 31.0
        %v2462 = vceil.f32 %v2460
        %v2463 = vceil.f32 %v2461
        %v2464 = vcvt.f32.s32.to.zero.pseudo %v2462
        %v2465 = vcvt.f32.s32.to.zero.pseudo %v2463
        %v2466 = vmax.f32 %v2358, 0.0
        %v2467 = vmax.f32 %v2359, 0.0
        %v2468 = vmin.f32 %v2466, 1.0
        %v2469 = vmin.f32 %v2467, 1.0
        %v2470 = vmul.f32 %v2468, 31.0
        %v2471 = vmul.f32 %v2469, 31.0
        %v2472 = vceil.f32 %v2470
        %v2473 = vceil.f32 %v2471
        %v2474 = vcvt.f32.s32.to.zero.pseudo %v2472
        %v2475 = vcvt.f32.s32.to.zero.pseudo %v2473
        %v2476 = vadd.s32 %v2474, 32
        %v2477 = vadd.s32 %v2475, 32
        %2478 = vset.pattern.permute.xlu0 0
        %2479 = vperm.xlu0 %2478, %v2464
        %v2480 = vpop.permute.xlu0 %2479
        %2481 = vset.pattern.permute.xlu0 0
        %2482 = vperm.xlu0 %2481, %v2465
        %v2483 = vpop.permute.xlu0 %2482
        %vm2484 = vcmp.eq.s32.totalorder %v1190, %v2480
        %vm2485 = vcmp.eq.s32.totalorder %v1190, %v2483
        %2486 = vset.pattern.permute.xlu0 0
        %2487 = vperm.xlu0 %2486, %v2476
        %v2488 = vpop.permute.xlu0 %2487
        %2489 = vset.pattern.permute.xlu0 0
        %2490 = vperm.xlu0 %2489, %v2477
        %v2491 = vpop.permute.xlu0 %2490
        %vm2492 = vcmp.eq.s32.totalorder %v1190, %v2488
        %vm2493 = vcmp.eq.s32.totalorder %v1190, %v2491
        %vm2494 = vmor %vm2484, %vm2492
        %vm2495 = vmor %vm2485, %vm2493
        %v2496 = vsel %vm2494, 1, 0
        %v2497 = vsel %vm2495, 1, 0
        %v2498 = vcvt.s32.f32 %v2496
        %v2499 = vcvt.s32.f32 %v2497
        %v2500 = vld [vmem:[%s12] sm:$0xff]
        %v2501 = vld [vmem:[%s12 + $0x8] sm:$0xff]
        %v2502 = vld [vmem:[%s12 + $0x10] sm:$0xff]
        %v2503 = vld [vmem:[%s12 + $0x18] sm:$0xff]
        %v2504 = vld [vmem:[%s12 + $0x20] sm:$0xff]
        %v2505 = vld [vmem:[%s12 + $0x28] sm:$0xff]
        %v2506 = vld [vmem:[%s12 + $0x30] sm:$0xff]
        %v2507 = vld [vmem:[%s12 + $0x38] sm:$0xff]
        %vm2508 = vcmask 523264
        %v2510 = vsel %vm2508, %v2498, 0
        %v2513 = vsel %vm2508, %v2499, 0
        %2515 = vmatprep.subr.mxu0 0.0
        %2516 = vmatpush1.msra.mxu0 %v2500
        %2517 = vmatprep.subr.mxu0 0.0
        %2518 = vmatpush1.msra.mxu0 %v2501
        %2519 = vmatprep.subr.mxu0 0.0
        %2520 = vmatpush1.msra.mxu0 %v2502
        %2521 = vmatprep.subr.mxu0 0.0
        %2522 = vmatpush1.msra.mxu0 %v2503
        %2523 = vmatprep.subr.mxu0 0.0
        %2524 = vmatpush1.msra.mxu0 %v2504
        %2525 = vmatprep.subr.mxu0 0.0
        %2526 = vmatpush1.msra.mxu0 %v2505
        %2527 = vmatprep.subr.mxu0 0.0
        %2528 = vmatpush1.msra.mxu0 %v2506
        %2529 = vmatprep.subr.mxu0 0.0
        %2530 = vmatpush1.msra.mxu0 %v2507
        %2531 = vmatprep.subr.mxu0 0.0
        %2532 = vmatpush1.msra.mxu0 0.0
        %2533 = vmatprep.subr.mxu0 0.0
        %2534 = vmatpush1.msra.mxu0 0.0
        %2535 = vmatprep.subr.mxu0 0.0
        %2536 = vmatpush1.msra.mxu0 0.0
        %2537 = vmatprep.subr.mxu0 0.0
        %2538 = vmatpush1.msra.mxu0 0.0
        %2539 = vmatprep.subr.mxu0 0.0
        %2540 = vmatpush1.msra.mxu0 0.0
        %2541 = vmatprep.subr.mxu0 0.0
        %2542 = vmatpush1.msra.mxu0 0.0
        %2543 = vmatprep.subr.mxu0 0.0
        %2544 = vmatpush1.msra.mxu0 0.0
        %2545 = vmatprep.subr.mxu0 0.0
        %2546 = vmatpush1.msra.mxu0 0.0
        %2547 = vmatprep.subr.mxu0 0.0
        %2548 = vmatpush1.msra.mxu0 0.0
        %2549 = vmatprep.subr.mxu0 0.0
        %2550 = vmatpush1.msra.mxu0 0.0
        %2551 = vmatprep.subr.mxu0 0.0
        %2552 = vmatpush1.msra.mxu0 0.0
        %2553 = vmatprep.subr.mxu0 0.0
        %2554 = vmatpush1.msra.mxu0 0.0
        %2555 = vmatprep.subr.mxu0 0.0
        %2556 = vmatpush1.msra.mxu0 0.0
        %2557 = vmatprep.subr.mxu0 0.0
        %2558 = vmatpush1.msra.mxu0 0.0
        %2559 = vmatprep.subr.mxu0 0.0
        %2560 = vmatpush1.msra.mxu0 0.0
        %2561 = vmatprep.subr.mxu0 0.0
        %2562 = vmatpush1.msra.mxu0 0.0
        %2563 = vmatprep.subr.mxu0 0.0
        %2564 = vmatpush1.msra.mxu0 0.0
        %2565 = vmatprep.subr.mxu0 0.0
        %2566 = vmatpush1.msra.mxu0 0.0
        %2567 = vmatprep.subr.mxu0 0.0
        %2568 = vmatpush1.msra.mxu0 0.0
        %2569 = vmatprep.subr.mxu0 0.0
        %2570 = vmatpush1.msra.mxu0 0.0
        %2571 = vmatprep.subr.mxu0 0.0
        %2572 = vmatpush1.msra.mxu0 0.0
        %2573 = vmatprep.subr.mxu0 0.0
        %2574 = vmatpush1.msra.mxu0 0.0
        %2575 = vmatprep.subr.mxu0 0.0
        %2576 = vmatpush1.msra.mxu0 0.0
        %2577 = vmatprep.subr.mxu0 0.0
        %2578 = vmatpush1.msra.mxu0 0.0
        %2579 = vmatprep.mubr.f32.mxu0 0.0
        %2580 = vmatmul.mubr.f32.gmra.mrb[0].mxu0 %v2510
        %v2581 = vpop.f32.mrb[0].mxu0
        %v2582 = vadd.f32 0.0, %v2581
        %v2583 = vpop.f32.mrb[0].mxu0
        %2584 = vmatprep.mubr.f32.mxu0 0.0
        %2585 = vmatmul.mubr.f32.gmra.mrb[0].mxu0 %v2513
        %v2586 = vpop.f32.mrb[0].mxu0
        %v2587 = vadd.f32 0.0, %v2586
        %v2588 = vpop.f32.mrb[0].mxu0
        %2589 = vdwg.mxu0
        %v2590 = vmul.f32 %v1277, 2.0
        %v2591 = vmul.f32 %v1282, 2.0
        %v2592 = vadd.f32 %v2590, %v2582
        %v2593 = vadd.f32 %v2591, %v2587
        %2594 = vst.msk [vmem:[%s660] sm:$0xff] %vm705, %v2592
        %2595 = vst.msk [vmem:[%s660 + $0x8] sm:$0xff] %vm705, %v2593
        %s2596 = sand.u32 %s335, 1
        %s2597 = scalar_lea.sflag [#allocation4], %s2596
        %s2598 = sand.u32 %s335, 1
        %s2599 = smul.addr %s2598, 16
        %s2600 = scalar_lea.vmem [#allocation16], %s2599
        %s2601 = sand.u32 %s44, 1
        %s2602 = scalar_lea.sflag [#allocation18], %s2601
        %s2603 = sand.u32 %s361, 1
        %s2604 = scalar_lea.vmem [#allocation17], %s2603
        %s2605 = sand.u32 %s44, 1
        %s2606 = scalar_lea.sflag [#allocation18], %s2605
        %s2607 = sand.u32 %s387, 1
        %s2608 = scalar_lea.vmem [#allocation19], %s2607
        %s2609 = sand.u32 %s413, 1
        %s2610 = scalar_lea.sflag [#allocation21], %s2609
        %s2611 = sand.u32 %s413, 1
        %s2612 = scalar_lea.vmem [#allocation20], %s2611
        // Predicated region
        $region105: #{tpu_custom_call.1} parent=71 // pred_check
          %p2613 = pneg %p345
        $region106: #{tpu_custom_call.1} parent=71 // pred_check_branch
          %2615 = sbr.rel (%p2613) target = $region108
        $region107: #{tpu_custom_call.1} parent=71 // pred_region
          %s2617 = ssub.s32 256, 256
          %2618 = vsyncadd %s2597, %s2617
          %s2619 = smul.addr %s44, 2
          %s2620 = smul.addr %s2619, 128
          %s2621 = scalar_lea.hbm %s13, %s2620
          %s2622 = sshll.u32 %s2600, 4
          %s2623 = int_to_ptr.vmem [resolvable:$true] %s2622
          %2628 = dma.vmem_to_hbm [thread:$0]  %s2623, 256, %s2621, %s2597, 128, 128, 8
        $region108: #{tpu_custom_call.1} parent=71 // pred_fallthru
          _
        // Predicated region
        $region109: #{tpu_custom_call.1} parent=71 // pred_check
          %p2629 = pneg %p371
        $region110: #{tpu_custom_call.1} parent=71 // pred_check_branch
          %2631 = sbr.rel (%p2629) target = $region112
        $region111: #{tpu_custom_call.1} parent=71 // pred_region
          %s2633 = ssub.s32 16, 16
          %2634 = vsyncadd %s2602, %s2633
          %s2635 = smul.addr %s44, 16
          %s2636 = scalar_lea.hbm %s14, %s2635
          %s2638 = sshll.u32 %s2604, 4
          %s2639 = int_to_ptr.vmem [resolvable:$true] %s2638
          %2641 = dma.vmem_to_hbm [thread:$0]  %s2639, 16, %s2636, %s2602
        $region112: #{tpu_custom_call.1} parent=71 // pred_fallthru
          _
        // Predicated region
        $region113: #{tpu_custom_call.1} parent=71 // pred_check
          %p2642 = pneg %p397
        $region114: #{tpu_custom_call.1} parent=71 // pred_check_branch
          %2644 = sbr.rel (%p2642) target = $region116
        $region115: #{tpu_custom_call.1} parent=71 // pred_region
          %s2646 = ssub.s32 16, 16
          %2647 = vsyncadd %s2606, %s2646
          %s2648 = smul.addr %s44, 16
          %s2649 = scalar_lea.hbm %s15, %s2648
          %s2651 = sshll.u32 %s2608, 4
          %s2652 = int_to_ptr.vmem [resolvable:$true] %s2651
          %2654 = dma.vmem_to_hbm [thread:$0]  %s2652, 16, %s2649, %s2606
        $region116: #{tpu_custom_call.1} parent=71 // pred_fallthru
          _
        // Predicated region
        $region117: #{tpu_custom_call.1} parent=71 // pred_check
          %p2655 = pneg %p423
        $region118: #{tpu_custom_call.1} parent=71 // pred_check_branch
          %2657 = sbr.rel (%p2655) target = $region120
        $region119: #{tpu_custom_call.1} parent=71 // pred_region
          %s2659 = ssub.s32 16, 16
          %2660 = vsyncadd %s2610, %s2659
          %s2661 = smul.addr %s44, 16
          %s2662 = scalar_lea.hbm %s16, %s2661
          %s2664 = sshll.u32 %s2612, 4
          %s2665 = int_to_ptr.vmem [resolvable:$true] %s2664
          %2667 = dma.vmem_to_hbm [thread:$0]  %s2665, 16, %s2662, %s2610
        $region120: #{tpu_custom_call.1} parent=71 // pred_fallthru
          _
      $region72: #{tpu_custom_call.1} parent=5 // pred_fallthru
        _
      %p2668 = scmp.le.s32.totalorder 2, %s39
      // Predicated region
      $region121: #{tpu_custom_call.1} parent=5 // pred_check
        %p2669 = pneg %p2668
      $region122: #{tpu_custom_call.1} parent=5 // pred_check_branch
        %2671 = sbr.rel (%p2669) target = $region124
      $region123: #{tpu_custom_call.1} parent=5 // pred_region
        %s2672 = ssub.s32 %s39, 2
        // Predicated region
        $region125: #{tpu_custom_call.1} parent=123 // pred_check
          %p2673 = pneg %p351
        $region126: #{tpu_custom_call.1} parent=123 // pred_check_branch
          %2675 = sbr.rel (%p2673) target = $region128
        $region127: #{tpu_custom_call.1} parent=123 // pred_region
          %s2676 = sand.u32 %s336, 1
          %s2677 = scalar_lea.sflag [#allocation4], %s2676
          %s2678 = sand.u32 %s336, 1
          %s2679 = smul.addr %s2678, 16
          %s2680 = scalar_lea.vmem [#allocation16], %s2679
          %2681 = dma.done %s2677, 256
        $region128: #{tpu_custom_call.1} parent=123 // pred_fallthru
          _
        // Predicated region
        $region129: #{tpu_custom_call.1} parent=123 // pred_check
          %p2682 = pneg %p377
        $region130: #{tpu_custom_call.1} parent=123 // pred_check_branch
          %2684 = sbr.rel (%p2682) target = $region132
        $region131: #{tpu_custom_call.1} parent=123 // pred_region
          %s2685 = sand.u32 %s45, 1
          %s2686 = scalar_lea.sflag [#allocation18], %s2685
          %s2687 = sand.u32 %s362, 1
          %s2688 = scalar_lea.vmem [#allocation17], %s2687
          %2689 = dma.done %s2686, 16
        $region132: #{tpu_custom_call.1} parent=123 // pred_fallthru
          _
        // Predicated region
        $region133: #{tpu_custom_call.1} parent=123 // pred_check
          %p2690 = pneg %p403
        $region134: #{tpu_custom_call.1} parent=123 // pred_check_branch
          %2692 = sbr.rel (%p2690) target = $region136
        $region135: #{tpu_custom_call.1} parent=123 // pred_region
          %s2693 = sand.u32 %s45, 1
          %s2694 = scalar_lea.sflag [#allocation18], %s2693
          %s2695 = sand.u32 %s388, 1
          %s2696 = scalar_lea.vmem [#allocation19], %s2695
          %2697 = dma.done %s2694, 16
        $region136: #{tpu_custom_call.1} parent=123 // pred_fallthru
          _
        // Predicated region
        $region137: #{tpu_custom_call.1} parent=123 // pred_check
          %p2698 = pneg %p429
        $region138: #{tpu_custom_call.1} parent=123 // pred_check_branch
          %2700 = sbr.rel (%p2698) target = $region140
        $region139: #{tpu_custom_call.1} parent=123 // pred_region
          %s2701 = sand.u32 %s414, 1
          %s2702 = scalar_lea.sflag [#allocation21], %s2701
          %s2703 = sand.u32 %s414, 1
          %s2704 = scalar_lea.vmem [#allocation20], %s2703
          %2705 = dma.done %s2702, 16
        $region140: #{tpu_custom_call.1} parent=123 // pred_fallthru
          _
      $region124: #{tpu_custom_call.1} parent=5 // pred_fallthru
        _
    $region6: #{tpu_custom_call.1} parent=1 // loop_footer
      %s43 = sadd.s32 1, %s39
    $region7: #{tpu_custom_call.1} parent=1 // loop_footer_branch
      %38 = sbr.rel target = $region3
    $region8: #{tpu_custom_call.1} parent=1 // loop_exit
      _
    %2706 = vsyncpa [#allocation3], 1
    %s2707 = scalar_lea.sflag [#allocation3], 1
    %2708 = vsyncpa %s2707, 1
    %2709 = vsyncpa [#allocation6], 1
    %2710 = vsyncpa [#allocation9], 1
    %2711 = vsyncpa [#allocation12], 1
    %2712 = vsyncpa [#allocation15], 1
    %2713 = vsyncpa [#allocation4], 1
    %s2714 = scalar_lea.sflag [#allocation4], 1
    %2715 = vsyncpa %s2714, 1
    %2716 = vsyncpa [#allocation18], 1
    %s2717 = scalar_lea.sflag [#allocation18], 1
    %2718 = vsyncpa %s2717, 1
    %2719 = vsyncpa [#allocation21], 1
    %s2720 = scalar_lea.sflag [#allocation21], 1
    %2721 = vsyncpa %s2720, 1

</llo_original>
